<compile_context>
chip_gen: v7x
topology: tpu7x:2x2x1
jax: 0.10.0
libtpu: 0.0.40
codegen_flags: <defaults>
</compile_context>

<pallas_src>
import jax
import jax.numpy as jnp
from jax.experimental import pallas as pl
from jax.experimental.pallas import tpu as pltpu

IN_FEATURES = 28 * 28 * 3          # 2352
K_PAD = 2432                       # 19 * 128 (zero-padded contraction dim)
HIDDEN = 512
OUT_FEATURES = 10
OUT_PAD = 128                      # lane-dense output slab
TB_MAX = 512                       # max batch-tile rows per grid step


def _cdiv(a, b):
    return (a + b - 1) // b


def _round_up(x, m):
    return _cdiv(x, m) * m


def mlp_kernel(x_ref, w1_ref, b1_ref, w2_ref, b2_ref, w3_ref, b3_ref, o_ref):
    # Layer 1: Linear + ReLU (bf16 operands, f32 accumulation on the MXU)
    h1 = jnp.dot(x_ref[...], w1_ref[...],
                 preferred_element_type=jnp.float32) + b1_ref[...]
    h1 = jnp.maximum(h1, 0.0).astype(jnp.bfloat16)
    # Layer 2: Linear + ReLU
    h2 = jnp.dot(h1, w2_ref[...],
                 preferred_element_type=jnp.float32) + b2_ref[...]
    h2 = jnp.maximum(h2, 0.0).astype(jnp.bfloat16)
    # Layer 3: Linear (logits) -> lane-dense (TB, 128) bf16 store
    o_ref[...] = (jnp.dot(h2, w3_ref[...],
                          preferred_element_type=jnp.float32)
                  + b3_ref[...]).astype(o_ref.dtype)


@jax.jit
def neural_network_forward(x_nchw, params):
    """x_nchw: (B, 3, 28, 28) float32. Returns (B, 10) float32 logits."""
    w1, b1, w2, b2, w3, b3 = params   # w*: bf16 (padded), b1/b2: f32, b3: f32 (padded)
    B = x_nchw.shape[0]

    # --- batch-tile selection ---------------------------------------------
    # Balance tile count so an awkward B doesn't pad up to a whole extra tile,
    # and give v7x's second TensorCore work (>= 2 grid steps) once B >= 16.
    n_tiles = _cdiv(B, TB_MAX)
    if B >= 16:
        n_tiles = max(n_tiles, 2)
    TB = _round_up(_cdiv(B, n_tiles), 8)
    B_pad = _round_up(B, TB)
    grid_b = B_pad // TB

    # --- preprocessing: flatten -> bf16 -> pad (one fused HBM pass under jit)
    # nn.Flatten(): (B, C, H, W) -> (B, C*H*W), row-major over (C, H, W).
    x_flat = x_nchw.reshape(B, IN_FEATURES).astype(jnp.bfloat16)
    x_bf16 = jnp.pad(x_flat, ((0, B_pad - B), (0, K_PAD - IN_FEATURES)))

    out_padded = pl.pallas_call(
        mlp_kernel,
        out_shape=jax.ShapeDtypeStruct((B_pad, OUT_PAD), jnp.bfloat16),
        grid=(grid_b,),
        in_specs=[
            pl.BlockSpec((TB, K_PAD), lambda i: (i, 0)),          # x: batch-tiled
            pl.BlockSpec((K_PAD, HIDDEN), lambda i: (0, 0)),      # w1: resident
            pl.BlockSpec((1, HIDDEN), lambda i: (0, 0)),          # b1
            pl.BlockSpec((HIDDEN, HIDDEN), lambda i: (0, 0)),     # w2
            pl.BlockSpec((1, HIDDEN), lambda i: (0, 0)),          # b2
            pl.BlockSpec((HIDDEN, OUT_PAD), lambda i: (0, 0)),    # w3
            pl.BlockSpec((1, OUT_PAD), lambda i: (0, 0)),         # b3
        ],
        out_specs=pl.BlockSpec((TB, OUT_PAD), lambda i: (i, 0)),
        compiler_params=pltpu.CompilerParams(
            dimension_semantics=("parallel",),
            vmem_limit_bytes=32 << 20,
        ),
    )(x_bf16, w1, b1, w2, b2, w3, b3)

    return out_padded[:B, :OUT_FEATURES].astype(jnp.float32)


def init_params(key):
    """Init mimicking nn.Linear's U(-1/sqrt(fan_in), 1/sqrt(fan_in)); weights are
    stored (fan_in, fan_out), cast to bf16, and zero-padded to the kernel's
    padded K / output-lane dims. Biases stay f32."""
    ks = jax.random.split(key, 6)

    def linear(kw, kb, fan_in, fan_out):
        bound = 1.0 / jnp.sqrt(float(fan_in))
        w = jax.random.uniform(kw, (fan_in, fan_out), jnp.float32, -bound, bound)
        b = jax.random.uniform(kb, (1, fan_out), jnp.float32, -bound, bound)
        return w, b

    w1f, b1 = linear(ks[0], ks[1], IN_FEATURES, HIDDEN)
    w2f, b2 = linear(ks[2], ks[3], HIDDEN, HIDDEN)
    w3f, b3 = linear(ks[4], ks[5], HIDDEN, OUT_FEATURES)

    # Pad + cast for the kernel (zero rows/lanes contribute nothing).
    w1 = jnp.pad(w1f, ((0, K_PAD - IN_FEATURES), (0, 0))).astype(jnp.bfloat16)
    w2 = w2f.astype(jnp.bfloat16)
    w3 = jnp.pad(w3f, ((0, 0), (0, OUT_PAD - OUT_FEATURES))).astype(jnp.bfloat16)
    b3p = jnp.pad(b3, ((0, 0), (0, OUT_PAD - OUT_FEATURES)))
    return (w1, b1, w2, b2, w3, b3p)


if __name__ == "__main__":
    key = jax.random.PRNGKey(0)
    k_params, k_x = jax.random.split(key)

    params = init_params(k_params)
    # Small batch of "images": (B, C, H, W) = (2, 3, 28, 28), matching the
    # 28*28*3 input dimension of the first Linear.
    x = jax.random.normal(k_x, (2, 3, 28, 28), dtype=jnp.float32)

    out = neural_network_forward(x, params)
    out = jax.block_until_ready(out)

    # Reference: same bf16-weight / f32-accumulate forward in plain JAX
    # (kernel output is rounded to bf16 once at the end, hence 2e-2 tolerance).
    w1, b1, w2, b2, w3, b3 = params
    xf = x.reshape(x.shape[0], -1).astype(jnp.bfloat16)
    h = jnp.maximum(
        jnp.dot(xf, w1[:IN_FEATURES, :], preferred_element_type=jnp.float32) + b1, 0.0
    ).astype(jnp.bfloat16)
    h = jnp.maximum(
        jnp.dot(h, w2, preferred_element_type=jnp.float32) + b2, 0.0
    ).astype(jnp.bfloat16)
    ref = (jnp.dot(h, w3[:, :OUT_FEATURES], preferred_element_type=jnp.float32)
           + b3[:, :OUT_FEATURES])

    assert out.shape == (2, 10)
    assert jnp.allclose(out, ref, atol=2e-2, rtol=2e-2)

    print("KERNEL_OK")
</pallas_src>

<mosaic_0001>
module attributes {stable_mosaic.version = 11 : i64} {
  func.func @mlp_kernel(%arg0: i32, %arg1: memref<8x2432xbf16, #tpu.memory_space<vmem>>, %arg2: memref<2432x512xbf16, #tpu.memory_space<vmem>>, %arg3: memref<1x512xf32, #tpu.memory_space<vmem>>, %arg4: memref<512x512xbf16, #tpu.memory_space<vmem>>, %arg5: memref<1x512xf32, #tpu.memory_space<vmem>>, %arg6: memref<512x128xbf16, #tpu.memory_space<vmem>>, %arg7: memref<1x128xf32, #tpu.memory_space<vmem>>, %arg8: memref<8x128xbf16, #tpu.memory_space<vmem>>) attributes {dimension_semantics = [#tpu.dimension_semantics<parallel>], iteration_bounds = array<i64: 1>, scalar_prefetch = 0 : i64, scratch_operands = 0 : i64, tpu.core_type = #tpu.core_type<tc>, window_params = [{transform_indices = @transform_0, window_bounds = array<i64: 8, 2432>}, {pipeline_mode = #tpu.pipeline_mode<synchronous>, transform_indices = @transform_1, window_bounds = array<i64: 2432, 512>}, {pipeline_mode = #tpu.pipeline_mode<synchronous>, transform_indices = @transform_2, window_bounds = array<i64: 1, 512>}, {pipeline_mode = #tpu.pipeline_mode<synchronous>, transform_indices = @transform_3, window_bounds = array<i64: 512, 512>}, {pipeline_mode = #tpu.pipeline_mode<synchronous>, transform_indices = @transform_4, window_bounds = array<i64: 1, 512>}, {pipeline_mode = #tpu.pipeline_mode<synchronous>, transform_indices = @transform_5, window_bounds = array<i64: 512, 128>}, {pipeline_mode = #tpu.pipeline_mode<synchronous>, transform_indices = @transform_6, window_bounds = array<i64: 1, 128>}, {transform_indices = @transform_7, window_bounds = array<i64: 8, 128>}]} {
    %c0 = arith.constant 0 : index
    %c0_0 = arith.constant 0 : index
    %0 = vector.load %arg1[%c0, %c0_0] : memref<8x2432xbf16, #tpu.memory_space<vmem>>, vector<8x2432xbf16>
    %c0_1 = arith.constant 0 : index
    %c0_2 = arith.constant 0 : index
    %1 = vector.load %arg2[%c0_1, %c0_2] : memref<2432x512xbf16, #tpu.memory_space<vmem>>, vector<2432x512xbf16>
    %cst = arith.constant dense<0.000000e+00> : vector<8x512xf32>
    %2 = tpu.matmul %0, %1, %cst {dimension_numbers = #tpu.dot_dimension_numbers<[1], [0], [0], [1], [0, 0, 1, 1], [], []>} : vector<8x2432xbf16>, vector<2432x512xbf16>, vector<8x512xf32> -> vector<8x512xf32>
    %c0_3 = arith.constant 0 : index
    %c0_4 = arith.constant 0 : index
    %3 = vector.load %arg3[%c0_3, %c0_4] : memref<1x512xf32, #tpu.memory_space<vmem>>, vector<1x512xf32>
    %4 = vector.broadcast %3 : vector<1x512xf32> to vector<8x512xf32>
    %5 = arith.addf %2, %4 : vector<8x512xf32>
    %cst_5 = arith.constant 0.000000e+00 : f32
    %6 = vector.broadcast %cst_5 : f32 to vector<8x512xf32>
    %7 = arith.maximumf %5, %6 : vector<8x512xf32>
    %8 = arith.truncf %7 : vector<8x512xf32> to vector<8x512xbf16>
    %c0_6 = arith.constant 0 : index
    %c0_7 = arith.constant 0 : index
    %9 = vector.load %arg4[%c0_6, %c0_7] : memref<512x512xbf16, #tpu.memory_space<vmem>>, vector<512x512xbf16>
    %cst_8 = arith.constant dense<0.000000e+00> : vector<8x512xf32>
    %10 = tpu.matmul %8, %9, %cst_8 {dimension_numbers = #tpu.dot_dimension_numbers<[1], [0], [0], [1], [0, 0, 1, 1], [], []>} : vector<8x512xbf16>, vector<512x512xbf16>, vector<8x512xf32> -> vector<8x512xf32>
    %c0_9 = arith.constant 0 : index
    %c0_10 = arith.constant 0 : index
    %11 = vector.load %arg5[%c0_9, %c0_10] : memref<1x512xf32, #tpu.memory_space<vmem>>, vector<1x512xf32>
    %12 = vector.broadcast %11 : vector<1x512xf32> to vector<8x512xf32>
    %13 = arith.addf %10, %12 : vector<8x512xf32>
    %cst_11 = arith.constant 0.000000e+00 : f32
    %14 = vector.broadcast %cst_11 : f32 to vector<8x512xf32>
    %15 = arith.maximumf %13, %14 : vector<8x512xf32>
    %16 = arith.truncf %15 : vector<8x512xf32> to vector<8x512xbf16>
    %c0_12 = arith.constant 0 : index
    %c0_13 = arith.constant 0 : index
    %17 = vector.load %arg6[%c0_12, %c0_13] : memref<512x128xbf16, #tpu.memory_space<vmem>>, vector<512x128xbf16>
    %cst_14 = arith.constant dense<0.000000e+00> : vector<8x128xf32>
    %18 = tpu.matmul %16, %17, %cst_14 {dimension_numbers = #tpu.dot_dimension_numbers<[1], [0], [0], [1], [0, 0, 1, 1], [], []>} : vector<8x512xbf16>, vector<512x128xbf16>, vector<8x128xf32> -> vector<8x128xf32>
    %c0_15 = arith.constant 0 : index
    %c0_16 = arith.constant 0 : index
    %19 = vector.load %arg7[%c0_15, %c0_16] : memref<1x128xf32, #tpu.memory_space<vmem>>, vector<1x128xf32>
    %20 = vector.broadcast %19 : vector<1x128xf32> to vector<8x128xf32>
    %21 = arith.addf %18, %20 : vector<8x128xf32>
    %22 = arith.truncf %21 : vector<8x128xf32> to vector<8x128xbf16>
    %c0_17 = arith.constant 0 : index
    %c0_18 = arith.constant 0 : index
    %23 = vector.load %arg8[%c0_17, %c0_18] : memref<8x128xbf16, #tpu.memory_space<vmem>>, vector<8x128xbf16>
    tpu.vector_store %arg8[%c0_17, %c0_18], %22 {strides = array<i32>} : memref<8x128xbf16, #tpu.memory_space<vmem>>, vector<8x128xbf16>,
    return
  }
  func.func @transform_0(%arg0: i32) -> (i32, i32) {
    %c0_i32 = arith.constant 0 : i32
    %c0_i32_0 = arith.constant 0 : i32
    return %arg0, %c0_i32 : i32, i32
  }
  func.func @transform_1(%arg0: i32) -> (i32, i32) {
    %c0_i32 = arith.constant 0 : i32
    %c0_i32_0 = arith.constant 0 : i32
    %c0_i32_1 = arith.constant 0 : i32
    return %c0_i32, %c0_i32_0 : i32, i32
  }
  func.func @transform_2(%arg0: i32) -> (i32, i32) {
    %c0_i32 = arith.constant 0 : i32
    %c0_i32_0 = arith.constant 0 : i32
    %c0_i32_1 = arith.constant 0 : i32
    return %c0_i32, %c0_i32_0 : i32, i32
  }
  func.func @transform_3(%arg0: i32) -> (i32, i32) {
    %c0_i32 = arith.constant 0 : i32
    %c0_i32_0 = arith.constant 0 : i32
    %c0_i32_1 = arith.constant 0 : i32
    return %c0_i32, %c0_i32_0 : i32, i32
  }
  func.func @transform_4(%arg0: i32) -> (i32, i32) {
    %c0_i32 = arith.constant 0 : i32
    %c0_i32_0 = arith.constant 0 : i32
    %c0_i32_1 = arith.constant 0 : i32
    return %c0_i32, %c0_i32_0 : i32, i32
  }
  func.func @transform_5(%arg0: i32) -> (i32, i32) {
    %c0_i32 = arith.constant 0 : i32
    %c0_i32_0 = arith.constant 0 : i32
    %c0_i32_1 = arith.constant 0 : i32
    return %c0_i32, %c0_i32_0 : i32, i32
  }
  func.func @transform_6(%arg0: i32) -> (i32, i32) {
    %c0_i32 = arith.constant 0 : i32
    %c0_i32_0 = arith.constant 0 : i32
    %c0_i32_1 = arith.constant 0 : i32
    return %c0_i32, %c0_i32_0 : i32, i32
  }
  func.func @transform_7(%arg0: i32) -> (i32, i32) {
    %c0_i32 = arith.constant 0 : i32
    %c0_i32_0 = arith.constant 0 : i32
    return %arg0, %c0_i32 : i32, i32
  }
}

</mosaic_0001>

<llo_original>
// kernel: neural_network_forward.1
$region0: #{neural_network_forward.1}
  #allocation0 [shape = 'u32[]', space=smem, size = 0x4, offset = 0x4, fixed_abs, tag = 'smem constant byte address 0x4 - core index']
  #allocation1 [shape = 'u32[144,128]{1,0:T(1,128)}', space=vmem, size = 0x12000, scoped, tag = 'internal scratch']
  %s0 = inlined_call_operand.vmem [shape: bf16[8,2432], index: 0, kind: input, shape index: {}]
  %s1 = inlined_call_operand.hbm [shape: bf16[2432,512], index: 1, kind: input, shape index: {}]
  %s2 = inlined_call_operand.hbm [shape: f32[1,512], index: 2, kind: input, shape index: {}]
  %s3 = inlined_call_operand.hbm [shape: bf16[512,512], index: 3, kind: input, shape index: {}]
  %s4 = inlined_call_operand.hbm [shape: f32[1,512], index: 4, kind: input, shape index: {}]
  %s5 = inlined_call_operand.hbm [shape: bf16[512,128], index: 5, kind: input, shape index: {}]
  %s6 = inlined_call_operand.hbm [shape: f32[1,128], index: 6, kind: input, shape index: {}]
  %s7 = inlined_call_operand.vmem [shape: bf16[8,128], index: 7, kind: output, shape index: {}]
  %s8 = sld [smem:[#allocation0]]
  $region62: #{neural_network_forward.1} parent=0
    _
  %s10 = ssub.s32 1, %s8
  %s11 = scalar_select 0, %s10, %s8
  $region1: #{neural_network_forward.1} parent=0
    #allocation2 [shape = 'u8[2490368]{0}', space=vmem, size = 0x260000, scoped, tag = 'input window, operand 1, single buffered']
    #allocation3 [shape = 's32[1]{0}', space=sflag, size = 0x4, scoped, tag = 'scoped memory for neural_network_forward.1']
    #allocation4 [shape = 'u8[2048]{0}', space=vmem, size = 0x800, scoped, tag = 'input window, operand 2, single buffered']
    #allocation5 [shape = 's32[1]{0}', space=sflag, size = 0x4, scoped, tag = 'scoped memory for neural_network_forward.1']
    #allocation6 [shape = 'u8[524288]{0}', space=vmem, size = 0x80000, scoped, tag = 'input window, operand 3, single buffered']
    #allocation7 [shape = 'u8[2048]{0}', space=vmem, size = 0x800, scoped, tag = 'input window, operand 4, single buffered']
    #allocation8 [shape = 's32[1]{0}', space=sflag, size = 0x4, scoped, tag = 'scoped memory for neural_network_forward.1']
    #allocation9 [shape = 'u8[131072]{0}', space=vmem, size = 0x20000, scoped, tag = 'input window, operand 5, single buffered']
    #allocation10 [shape = 'u8[512]{0}', space=vmem, size = 0x400, scoped, tag = 'input window, operand 6, single buffered']
    #allocation11 [shape = 's32[1]{0}', space=sflag, size = 0x4, scoped, tag = 'scoped memory for neural_network_forward.1']
    %12 = vsyncpa [#allocation3], 0
    %13 = vsyncpa [#allocation5], 0
    %14 = vsyncpa [#allocation8], 0
    %15 = vsyncpa [#allocation11], 0
    // Predicated region
    $region2: #{neural_network_forward.1} parent=1 // pred_check
      _
    $region3: #{neural_network_forward.1} parent=1 // pred_check_branch
      %17 = sbr.rel (0) target = $region5
    $region4: #{neural_network_forward.1} parent=1 // pred_region
      _
    $region5: #{neural_network_forward.1} parent=1 // pred_fallthru
      _
    // Predicated region
    $region6: #{neural_network_forward.1} parent=1 // pred_check
      _
    $region7: #{neural_network_forward.1} parent=1 // pred_check_branch
      %19 = sbr.rel (0) target = $region9
    $region8: #{neural_network_forward.1} parent=1 // pred_region
      %s21 = ssub.s32 77824, 77824
      %22 = vsyncadd [#allocation3], %s21
      %s23 = sshll.u32 [#allocation2], 4
      %s24 = int_to_ptr.vmem [resolvable:$true] %s23
      %29 = dma.hbm_to_vmem [thread:$0]  %s1, 77824, %s24, [#allocation3], 256, 256, 16
    $region9: #{neural_network_forward.1} parent=1 // pred_fallthru
      _
    // Predicated region
    $region10: #{neural_network_forward.1} parent=1 // pred_check
      _
    $region11: #{neural_network_forward.1} parent=1 // pred_check_branch
      %31 = sbr.rel (0) target = $region13
    $region12: #{neural_network_forward.1} parent=1 // pred_region
      %s33 = ssub.s32 64, 64
      %34 = vsyncadd [#allocation5], %s33
      %s36 = sshll.u32 [#allocation4], 4
      %s37 = int_to_ptr.vmem [resolvable:$true] %s36
      %39 = dma.hbm_to_vmem [thread:$0]  %s2, 64, %s37, [#allocation5]
    $region13: #{neural_network_forward.1} parent=1 // pred_fallthru
      _
    // Predicated region
    $region14: #{neural_network_forward.1} parent=1 // pred_check
      _
    $region15: #{neural_network_forward.1} parent=1 // pred_check_branch
      %41 = sbr.rel (0) target = $region17
    $region16: #{neural_network_forward.1} parent=1 // pred_region
      %s43 = ssub.s32 16384, 16384
      %44 = vsyncadd [#allocation5], %s43
      %s45 = sshll.u32 [#allocation6], 4
      %s46 = int_to_ptr.vmem [resolvable:$true] %s45
      %51 = dma.hbm_to_vmem [thread:$0]  %s3, 16384, %s46, [#allocation5], 256, 256, 16
    $region17: #{neural_network_forward.1} parent=1 // pred_fallthru
      _
    // Predicated region
    $region18: #{neural_network_forward.1} parent=1 // pred_check
      _
    $region19: #{neural_network_forward.1} parent=1 // pred_check_branch
      %53 = sbr.rel (0) target = $region21
    $region20: #{neural_network_forward.1} parent=1 // pred_region
      %s55 = ssub.s32 64, 64
      %56 = vsyncadd [#allocation8], %s55
      %s58 = sshll.u32 [#allocation7], 4
      %s59 = int_to_ptr.vmem [resolvable:$true] %s58
      %61 = dma.hbm_to_vmem [thread:$0]  %s4, 64, %s59, [#allocation8]
    $region21: #{neural_network_forward.1} parent=1 // pred_fallthru
      _
    // Predicated region
    $region22: #{neural_network_forward.1} parent=1 // pred_check
      _
    $region23: #{neural_network_forward.1} parent=1 // pred_check_branch
      %63 = sbr.rel (0) target = $region25
    $region24: #{neural_network_forward.1} parent=1 // pred_region
      %s65 = ssub.s32 4096, 4096
      %66 = vsyncadd [#allocation8], %s65
      %s67 = sshll.u32 [#allocation9], 4
      %s68 = int_to_ptr.vmem [resolvable:$true] %s67
      %73 = dma.hbm_to_vmem [thread:$0]  %s5, 4096, %s68, [#allocation8], 64, 64, 4
    $region25: #{neural_network_forward.1} parent=1 // pred_fallthru
      _
    // Predicated region
    $region26: #{neural_network_forward.1} parent=1 // pred_check
      _
    $region27: #{neural_network_forward.1} parent=1 // pred_check_branch
      %75 = sbr.rel (0) target = $region29
    $region28: #{neural_network_forward.1} parent=1 // pred_region
      %s77 = ssub.s32 16, 16
      %78 = vsyncadd [#allocation11], %s77
      %s80 = sshll.u32 [#allocation10], 4
      %s81 = int_to_ptr.vmem [resolvable:$true] %s80
      %83 = dma.hbm_to_vmem [thread:$0]  %s6, 16, %s81, [#allocation11]
    $region29: #{neural_network_forward.1} parent=1 // pred_fallthru
      _
    // Predicated region
    $region30: #{neural_network_forward.1} parent=1 // pred_check
      _
    $region31: #{neural_network_forward.1} parent=1 // pred_check_branch
      %85 = sbr.rel (0) target = $region33
    $region32: #{neural_network_forward.1} parent=1 // pred_region
      %86 = dma.done [#allocation3], 77824
    $region33: #{neural_network_forward.1} parent=1 // pred_fallthru
      _
    // Predicated region
    $region34: #{neural_network_forward.1} parent=1 // pred_check
      _
    $region35: #{neural_network_forward.1} parent=1 // pred_check_branch
      %88 = sbr.rel (0) target = $region37
    $region36: #{neural_network_forward.1} parent=1 // pred_region
      %89 = dma.done [#allocation5], 64
    $region37: #{neural_network_forward.1} parent=1 // pred_fallthru
      _
    // Predicated region
    $region38: #{neural_network_forward.1} parent=1 // pred_check
      _
    $region39: #{neural_network_forward.1} parent=1 // pred_check_branch
      %91 = sbr.rel (0) target = $region41
    $region40: #{neural_network_forward.1} parent=1 // pred_region
      %92 = dma.done [#allocation5], 16384
    $region41: #{neural_network_forward.1} parent=1 // pred_fallthru
      _
    // Predicated region
    $region42: #{neural_network_forward.1} parent=1 // pred_check
      _
    $region43: #{neural_network_forward.1} parent=1 // pred_check_branch
      %94 = sbr.rel (0) target = $region45
    $region44: #{neural_network_forward.1} parent=1 // pred_region
      %95 = dma.done [#allocation8], 64
    $region45: #{neural_network_forward.1} parent=1 // pred_fallthru
      _
    // Predicated region
    $region46: #{neural_network_forward.1} parent=1 // pred_check
      _
    $region47: #{neural_network_forward.1} parent=1 // pred_check_branch
      %97 = sbr.rel (0) target = $region49
    $region48: #{neural_network_forward.1} parent=1 // pred_region
      %98 = dma.done [#allocation8], 4096
    $region49: #{neural_network_forward.1} parent=1 // pred_fallthru
      _
    // Predicated region
    $region50: #{neural_network_forward.1} parent=1 // pred_check
      _
    $region51: #{neural_network_forward.1} parent=1 // pred_check_branch
      %100 = sbr.rel (0) target = $region53
    $region52: #{neural_network_forward.1} parent=1 // pred_region
      %101 = dma.done [#allocation11], 16
    $region53: #{neural_network_forward.1} parent=1 // pred_fallthru
      _
    %v103 = vld [vmem:[%s0] sm:$0xff]
    %v104 = vld [vmem:[%s0 + $0x8] sm:$0xff]
    %v105 = vld [vmem:[%s0 + $0x10] sm:$0xff]
    %v106 = vld [vmem:[%s0 + $0x18] sm:$0xff]
    %v107 = vld [vmem:[%s0 + $0x20] sm:$0xff]
    %v108 = vld [vmem:[%s0 + $0x28] sm:$0xff]
    %v109 = vld [vmem:[%s0 + $0x30] sm:$0xff]
    %v110 = vld [vmem:[%s0 + $0x38] sm:$0xff]
    %v111 = vld [vmem:[%s0 + $0x40] sm:$0xff]
    %v112 = vld [vmem:[%s0 + $0x48] sm:$0xf]
    %v113 = vld [vmem:[#allocation2] sm:$0xff]
    %v114 = vld [vmem:[#allocation2 + $0x8] sm:$0xff]
    %v115 = vld [vmem:[#allocation2 + $0x10] sm:$0xff]
    %v116 = vld [vmem:[#allocation2 + $0x18] sm:$0xff]
    %v117 = vld [vmem:[#allocation2 + $0x20] sm:$0xff]
    %v118 = vld [vmem:[#allocation2 + $0x28] sm:$0xff]
    %v119 = vld [vmem:[#allocation2 + $0x30] sm:$0xff]
    %v120 = vld [vmem:[#allocation2 + $0x38] sm:$0xff]
    %v121 = vld [vmem:[#allocation2 + $0x40] sm:$0xff]
    %v122 = vld [vmem:[#allocation2 + $0x48] sm:$0xff]
    %v123 = vld [vmem:[#allocation2 + $0x50] sm:$0xff]
    %v124 = vld [vmem:[#allocation2 + $0x58] sm:$0xff]
    %v125 = vld [vmem:[#allocation2 + $0x60] sm:$0xff]
    %v126 = vld [vmem:[#allocation2 + $0x68] sm:$0xff]
    %v127 = vld [vmem:[#allocation2 + $0x70] sm:$0xff]
    %v128 = vld [vmem:[#allocation2 + $0x78] sm:$0xff]
    %v129 = vld [vmem:[#allocation2 + $0x80] sm:$0xff]
    %v130 = vld [vmem:[#allocation2 + $0x88] sm:$0xff]
    %v131 = vld [vmem:[#allocation2 + $0x90] sm:$0xff]
    %v132 = vld [vmem:[#allocation2 + $0x98] sm:$0xff]
    %v133 = vld [vmem:[#allocation2 + $0xa0] sm:$0xff]
    %v134 = vld [vmem:[#allocation2 + $0xa8] sm:$0xff]
    %v135 = vld [vmem:[#allocation2 + $0xb0] sm:$0xff]
    %v136 = vld [vmem:[#allocation2 + $0xb8] sm:$0xff]
    %v137 = vld [vmem:[#allocation2 + $0xc0] sm:$0xff]
    %v138 = vld [vmem:[#allocation2 + $0xc8] sm:$0xff]
    %v139 = vld [vmem:[#allocation2 + $0xd0] sm:$0xff]
    %v140 = vld [vmem:[#allocation2 + $0xd8] sm:$0xff]
    %v141 = vld [vmem:[#allocation2 + $0xe0] sm:$0xff]
    %v142 = vld [vmem:[#allocation2 + $0xe8] sm:$0xff]
    %v143 = vld [vmem:[#allocation2 + $0xf0] sm:$0xff]
    %v144 = vld [vmem:[#allocation2 + $0xf8] sm:$0xff]
    %v145 = vld [vmem:[#allocation2 + $0x100] sm:$0xff]
    %v146 = vld [vmem:[#allocation2 + $0x108] sm:$0xff]
    %v147 = vld [vmem:[#allocation2 + $0x110] sm:$0xff]
    %v148 = vld [vmem:[#allocation2 + $0x118] sm:$0xff]
    %v149 = vld [vmem:[#allocation2 + $0x120] sm:$0xff]
    %v150 = vld [vmem:[#allocation2 + $0x128] sm:$0xff]
    %v151 = vld [vmem:[#allocation2 + $0x130] sm:$0xff]
    %v152 = vld [vmem:[#allocation2 + $0x138] sm:$0xff]
    %v153 = vld [vmem:[#allocation2 + $0x140] sm:$0xff]
    %v154 = vld [vmem:[#allocation2 + $0x148] sm:$0xff]
    %v155 = vld [vmem:[#allocation2 + $0x150] sm:$0xff]
    %v156 = vld [vmem:[#allocation2 + $0x158] sm:$0xff]
    %v157 = vld [vmem:[#allocation2 + $0x160] sm:$0xff]
    %v158 = vld [vmem:[#allocation2 + $0x168] sm:$0xff]
    %v159 = vld [vmem:[#allocation2 + $0x170] sm:$0xff]
    %v160 = vld [vmem:[#allocation2 + $0x178] sm:$0xff]
    %v161 = vld [vmem:[#allocation2 + $0x180] sm:$0xff]
    %v162 = vld [vmem:[#allocation2 + $0x188] sm:$0xff]
    %v163 = vld [vmem:[#allocation2 + $0x190] sm:$0xff]
    %v164 = vld [vmem:[#allocation2 + $0x198] sm:$0xff]
    %v165 = vld [vmem:[#allocation2 + $0x1a0] sm:$0xff]
    %v166 = vld [vmem:[#allocation2 + $0x1a8] sm:$0xff]
    %v167 = vld [vmem:[#allocation2 + $0x1b0] sm:$0xff]
    %v168 = vld [vmem:[#allocation2 + $0x1b8] sm:$0xff]
    %v169 = vld [vmem:[#allocation2 + $0x1c0] sm:$0xff]
    %v170 = vld [vmem:[#allocation2 + $0x1c8] sm:$0xff]
    %v171 = vld [vmem:[#allocation2 + $0x1d0] sm:$0xff]
    %v172 = vld [vmem:[#allocation2 + $0x1d8] sm:$0xff]
    %v173 = vld [vmem:[#allocation2 + $0x1e0] sm:$0xff]
    %v174 = vld [vmem:[#allocation2 + $0x1e8] sm:$0xff]
    %v175 = vld [vmem:[#allocation2 + $0x1f0] sm:$0xff]
    %v176 = vld [vmem:[#allocation2 + $0x1f8] sm:$0xff]
    %v177 = vld [vmem:[#allocation2 + $0x200] sm:$0xff]
    %v178 = vld [vmem:[#allocation2 + $0x208] sm:$0xff]
    %v179 = vld [vmem:[#allocation2 + $0x210] sm:$0xff]
    %v180 = vld [vmem:[#allocation2 + $0x218] sm:$0xff]
    %v181 = vld [vmem:[#allocation2 + $0x220] sm:$0xff]
    %v182 = vld [vmem:[#allocation2 + $0x228] sm:$0xff]
    %v183 = vld [vmem:[#allocation2 + $0x230] sm:$0xff]
    %v184 = vld [vmem:[#allocation2 + $0x238] sm:$0xff]
    %v185 = vld [vmem:[#allocation2 + $0x240] sm:$0xff]
    %v186 = vld [vmem:[#allocation2 + $0x248] sm:$0xff]
    %v187 = vld [vmem:[#allocation2 + $0x250] sm:$0xff]
    %v188 = vld [vmem:[#allocation2 + $0x258] sm:$0xff]
    %v189 = vld [vmem:[#allocation2 + $0x260] sm:$0xff]
    %v190 = vld [vmem:[#allocation2 + $0x268] sm:$0xff]
    %v191 = vld [vmem:[#allocation2 + $0x270] sm:$0xff]
    %v192 = vld [vmem:[#allocation2 + $0x278] sm:$0xff]
    %v193 = vld [vmem:[#allocation2 + $0x280] sm:$0xff]
    %v194 = vld [vmem:[#allocation2 + $0x288] sm:$0xff]
    %v195 = vld [vmem:[#allocation2 + $0x290] sm:$0xff]
    %v196 = vld [vmem:[#allocation2 + $0x298] sm:$0xff]
    %v197 = vld [vmem:[#allocation2 + $0x2a0] sm:$0xff]
    %v198 = vld [vmem:[#allocation2 + $0x2a8] sm:$0xff]
    %v199 = vld [vmem:[#allocation2 + $0x2b0] sm:$0xff]
    %v200 = vld [vmem:[#allocation2 + $0x2b8] sm:$0xff]
    %v201 = vld [vmem:[#allocation2 + $0x2c0] sm:$0xff]
    %v202 = vld [vmem:[#allocation2 + $0x2c8] sm:$0xff]
    %v203 = vld [vmem:[#allocation2 + $0x2d0] sm:$0xff]
    %v204 = vld [vmem:[#allocation2 + $0x2d8] sm:$0xff]
    %v205 = vld [vmem:[#allocation2 + $0x2e0] sm:$0xff]
    %v206 = vld [vmem:[#allocation2 + $0x2e8] sm:$0xff]
    %v207 = vld [vmem:[#allocation2 + $0x2f0] sm:$0xff]
    %v208 = vld [vmem:[#allocation2 + $0x2f8] sm:$0xff]
    %v209 = vld [vmem:[#allocation2 + $0x300] sm:$0xff]
    %v210 = vld [vmem:[#allocation2 + $0x308] sm:$0xff]
    %v211 = vld [vmem:[#allocation2 + $0x310] sm:$0xff]
    %v212 = vld [vmem:[#allocation2 + $0x318] sm:$0xff]
    %v213 = vld [vmem:[#allocation2 + $0x320] sm:$0xff]
    %v214 = vld [vmem:[#allocation2 + $0x328] sm:$0xff]
    %v215 = vld [vmem:[#allocation2 + $0x330] sm:$0xff]
    %v216 = vld [vmem:[#allocation2 + $0x338] sm:$0xff]
    %v217 = vld [vmem:[#allocation2 + $0x340] sm:$0xff]
    %v218 = vld [vmem:[#allocation2 + $0x348] sm:$0xff]
    %v219 = vld [vmem:[#allocation2 + $0x350] sm:$0xff]
    %v220 = vld [vmem:[#allocation2 + $0x358] sm:$0xff]
    %v221 = vld [vmem:[#allocation2 + $0x360] sm:$0xff]
    %v222 = vld [vmem:[#allocation2 + $0x368] sm:$0xff]
    %v223 = vld [vmem:[#allocation2 + $0x370] sm:$0xff]
    %v224 = vld [vmem:[#allocation2 + $0x378] sm:$0xff]
    %v225 = vld [vmem:[#allocation2 + $0x380] sm:$0xff]
    %v226 = vld [vmem:[#allocation2 + $0x388] sm:$0xff]
    %v227 = vld [vmem:[#allocation2 + $0x390] sm:$0xff]
    %v228 = vld [vmem:[#allocation2 + $0x398] sm:$0xff]
    %v229 = vld [vmem:[#allocation2 + $0x3a0] sm:$0xff]
    %v230 = vld [vmem:[#allocation2 + $0x3a8] sm:$0xff]
    %v231 = vld [vmem:[#allocation2 + $0x3b0] sm:$0xff]
    %v232 = vld [vmem:[#allocation2 + $0x3b8] sm:$0xff]
    %v233 = vld [vmem:[#allocation2 + $0x3c0] sm:$0xff]
    %v234 = vld [vmem:[#allocation2 + $0x3c8] sm:$0xff]
    %v235 = vld [vmem:[#allocation2 + $0x3d0] sm:$0xff]
    %v236 = vld [vmem:[#allocation2 + $0x3d8] sm:$0xff]
    %v237 = vld [vmem:[#allocation2 + $0x3e0] sm:$0xff]
    %v238 = vld [vmem:[#allocation2 + $0x3e8] sm:$0xff]
    %v239 = vld [vmem:[#allocation2 + $0x3f0] sm:$0xff]
    %v240 = vld [vmem:[#allocation2 + $0x3f8] sm:$0xff]
    %v241 = vld [vmem:[#allocation2 + $0x400] sm:$0xff]
    %v242 = vld [vmem:[#allocation2 + $0x408] sm:$0xff]
    %v243 = vld [vmem:[#allocation2 + $0x410] sm:$0xff]
    %v244 = vld [vmem:[#allocation2 + $0x418] sm:$0xff]
    %v245 = vld [vmem:[#allocation2 + $0x420] sm:$0xff]
    %v246 = vld [vmem:[#allocation2 + $0x428] sm:$0xff]
    %v247 = vld [vmem:[#allocation2 + $0x430] sm:$0xff]
    %v248 = vld [vmem:[#allocation2 + $0x438] sm:$0xff]
    %v249 = vld [vmem:[#allocation2 + $0x440] sm:$0xff]
    %v250 = vld [vmem:[#allocation2 + $0x448] sm:$0xff]
    %v251 = vld [vmem:[#allocation2 + $0x450] sm:$0xff]
    %v252 = vld [vmem:[#allocation2 + $0x458] sm:$0xff]
    %v253 = vld [vmem:[#allocation2 + $0x460] sm:$0xff]
    %v254 = vld [vmem:[#allocation2 + $0x468] sm:$0xff]
    %v255 = vld [vmem:[#allocation2 + $0x470] sm:$0xff]
    %v256 = vld [vmem:[#allocation2 + $0x478] sm:$0xff]
    %v257 = vld [vmem:[#allocation2 + $0x480] sm:$0xff]
    %v258 = vld [vmem:[#allocation2 + $0x488] sm:$0xff]
    %v259 = vld [vmem:[#allocation2 + $0x490] sm:$0xff]
    %v260 = vld [vmem:[#allocation2 + $0x498] sm:$0xff]
    %v261 = vld [vmem:[#allocation2 + $0x4a0] sm:$0xff]
    %v262 = vld [vmem:[#allocation2 + $0x4a8] sm:$0xff]
    %v263 = vld [vmem:[#allocation2 + $0x4b0] sm:$0xff]
    %v264 = vld [vmem:[#allocation2 + $0x4b8] sm:$0xff]
    %v265 = vld [vmem:[#allocation2 + $0x4c0] sm:$0xff]
    %v266 = vld [vmem:[#allocation2 + $0x4c8] sm:$0xff]
    %v267 = vld [vmem:[#allocation2 + $0x4d0] sm:$0xff]
    %v268 = vld [vmem:[#allocation2 + $0x4d8] sm:$0xff]
    %v269 = vld [vmem:[#allocation2 + $0x4e0] sm:$0xff]
    %v270 = vld [vmem:[#allocation2 + $0x4e8] sm:$0xff]
    %v271 = vld [vmem:[#allocation2 + $0x4f0] sm:$0xff]
    %v272 = vld [vmem:[#allocation2 + $0x4f8] sm:$0xff]
    %v273 = vld [vmem:[#allocation2 + $0x500] sm:$0xff]
    %v274 = vld [vmem:[#allocation2 + $0x508] sm:$0xff]
    %v275 = vld [vmem:[#allocation2 + $0x510] sm:$0xff]
    %v276 = vld [vmem:[#allocation2 + $0x518] sm:$0xff]
    %v277 = vld [vmem:[#allocation2 + $0x520] sm:$0xff]
    %v278 = vld [vmem:[#allocation2 + $0x528] sm:$0xff]
    %v279 = vld [vmem:[#allocation2 + $0x530] sm:$0xff]
    %v280 = vld [vmem:[#allocation2 + $0x538] sm:$0xff]
    %v281 = vld [vmem:[#allocation2 + $0x540] sm:$0xff]
    %v282 = vld [vmem:[#allocation2 + $0x548] sm:$0xff]
    %v283 = vld [vmem:[#allocation2 + $0x550] sm:$0xff]
    %v284 = vld [vmem:[#allocation2 + $0x558] sm:$0xff]
    %v285 = vld [vmem:[#allocation2 + $0x560] sm:$0xff]
    %v286 = vld [vmem:[#allocation2 + $0x568] sm:$0xff]
    %v287 = vld [vmem:[#allocation2 + $0x570] sm:$0xff]
    %v288 = vld [vmem:[#allocation2 + $0x578] sm:$0xff]
    %v289 = vld [vmem:[#allocation2 + $0x580] sm:$0xff]
    %v290 = vld [vmem:[#allocation2 + $0x588] sm:$0xff]
    %v291 = vld [vmem:[#allocation2 + $0x590] sm:$0xff]
    %v292 = vld [vmem:[#allocation2 + $0x598] sm:$0xff]
    %v293 = vld [vmem:[#allocation2 + $0x5a0] sm:$0xff]
    %v294 = vld [vmem:[#allocation2 + $0x5a8] sm:$0xff]
    %v295 = vld [vmem:[#allocation2 + $0x5b0] sm:$0xff]
    %v296 = vld [vmem:[#allocation2 + $0x5b8] sm:$0xff]
    %v297 = vld [vmem:[#allocation2 + $0x5c0] sm:$0xff]
    %v298 = vld [vmem:[#allocation2 + $0x5c8] sm:$0xff]
    %v299 = vld [vmem:[#allocation2 + $0x5d0] sm:$0xff]
    %v300 = vld [vmem:[#allocation2 + $0x5d8] sm:$0xff]
    %v301 = vld [vmem:[#allocation2 + $0x5e0] sm:$0xff]
    %v302 = vld [vmem:[#allocation2 + $0x5e8] sm:$0xff]
    %v303 = vld [vmem:[#allocation2 + $0x5f0] sm:$0xff]
    %v304 = vld [vmem:[#allocation2 + $0x5f8] sm:$0xff]
    %v305 = vld [vmem:[#allocation2 + $0x600] sm:$0xff]
    %v306 = vld [vmem:[#allocation2 + $0x608] sm:$0xff]
    %v307 = vld [vmem:[#allocation2 + $0x610] sm:$0xff]
    %v308 = vld [vmem:[#allocation2 + $0x618] sm:$0xff]
    %v309 = vld [vmem:[#allocation2 + $0x620] sm:$0xff]
    %v310 = vld [vmem:[#allocation2 + $0x628] sm:$0xff]
    %v311 = vld [vmem:[#allocation2 + $0x630] sm:$0xff]
    %v312 = vld [vmem:[#allocation2 + $0x638] sm:$0xff]
    %v313 = vld [vmem:[#allocation2 + $0x640] sm:$0xff]
    %v314 = vld [vmem:[#allocation2 + $0x648] sm:$0xff]
    %v315 = vld [vmem:[#allocation2 + $0x650] sm:$0xff]
    %v316 = vld [vmem:[#allocation2 + $0x658] sm:$0xff]
    %v317 = vld [vmem:[#allocation2 + $0x660] sm:$0xff]
    %v318 = vld [vmem:[#allocation2 + $0x668] sm:$0xff]
    %v319 = vld [vmem:[#allocation2 + $0x670] sm:$0xff]
    %v320 = vld [vmem:[#allocation2 + $0x678] sm:$0xff]
    %v321 = vld [vmem:[#allocation2 + $0x680] sm:$0xff]
    %v322 = vld [vmem:[#allocation2 + $0x688] sm:$0xff]
    %v323 = vld [vmem:[#allocation2 + $0x690] sm:$0xff]
    %v324 = vld [vmem:[#allocation2 + $0x698] sm:$0xff]
    %v325 = vld [vmem:[#allocation2 + $0x6a0] sm:$0xff]
    %v326 = vld [vmem:[#allocation2 + $0x6a8] sm:$0xff]
    %v327 = vld [vmem:[#allocation2 + $0x6b0] sm:$0xff]
    %v328 = vld [vmem:[#allocation2 + $0x6b8] sm:$0xff]
    %v329 = vld [vmem:[#allocation2 + $0x6c0] sm:$0xff]
    %v330 = vld [vmem:[#allocation2 + $0x6c8] sm:$0xff]
    %v331 = vld [vmem:[#allocation2 + $0x6d0] sm:$0xff]
    %v332 = vld [vmem:[#allocation2 + $0x6d8] sm:$0xff]
    %v333 = vld [vmem:[#allocation2 + $0x6e0] sm:$0xff]
    %v334 = vld [vmem:[#allocation2 + $0x6e8] sm:$0xff]
    %v335 = vld [vmem:[#allocation2 + $0x6f0] sm:$0xff]
    %v336 = vld [vmem:[#allocation2 + $0x6f8] sm:$0xff]
    %v337 = vld [vmem:[#allocation2 + $0x700] sm:$0xff]
    %v338 = vld [vmem:[#allocation2 + $0x708] sm:$0xff]
    %v339 = vld [vmem:[#allocation2 + $0x710] sm:$0xff]
    %v340 = vld [vmem:[#allocation2 + $0x718] sm:$0xff]
    %v341 = vld [vmem:[#allocation2 + $0x720] sm:$0xff]
    %v342 = vld [vmem:[#allocation2 + $0x728] sm:$0xff]
    %v343 = vld [vmem:[#allocation2 + $0x730] sm:$0xff]
    %v344 = vld [vmem:[#allocation2 + $0x738] sm:$0xff]
    %v345 = vld [vmem:[#allocation2 + $0x740] sm:$0xff]
    %v346 = vld [vmem:[#allocation2 + $0x748] sm:$0xff]
    %v347 = vld [vmem:[#allocation2 + $0x750] sm:$0xff]
    %v348 = vld [vmem:[#allocation2 + $0x758] sm:$0xff]
    %v349 = vld [vmem:[#allocation2 + $0x760] sm:$0xff]
    %v350 = vld [vmem:[#allocation2 + $0x768] sm:$0xff]
    %v351 = vld [vmem:[#allocation2 + $0x770] sm:$0xff]
    %v352 = vld [vmem:[#allocation2 + $0x778] sm:$0xff]
    %v353 = vld [vmem:[#allocation2 + $0x780] sm:$0xff]
    %v354 = vld [vmem:[#allocation2 + $0x788] sm:$0xff]
    %v355 = vld [vmem:[#allocation2 + $0x790] sm:$0xff]
    %v356 = vld [vmem:[#allocation2 + $0x798] sm:$0xff]
    %v357 = vld [vmem:[#allocation2 + $0x7a0] sm:$0xff]
    %v358 = vld [vmem:[#allocation2 + $0x7a8] sm:$0xff]
    %v359 = vld [vmem:[#allocation2 + $0x7b0] sm:$0xff]
    %v360 = vld [vmem:[#allocation2 + $0x7b8] sm:$0xff]
    %v361 = vld [vmem:[#allocation2 + $0x7c0] sm:$0xff]
    %v362 = vld [vmem:[#allocation2 + $0x7c8] sm:$0xff]
    %v363 = vld [vmem:[#allocation2 + $0x7d0] sm:$0xff]
    %v364 = vld [vmem:[#allocation2 + $0x7d8] sm:$0xff]
    %v365 = vld [vmem:[#allocation2 + $0x7e0] sm:$0xff]
    %v366 = vld [vmem:[#allocation2 + $0x7e8] sm:$0xff]
    %v367 = vld [vmem:[#allocation2 + $0x7f0] sm:$0xff]
    %v368 = vld [vmem:[#allocation2 + $0x7f8] sm:$0xff]
    %v369 = vld [vmem:[#allocation2 + $0x800] sm:$0xff]
    %v370 = vld [vmem:[#allocation2 + $0x808] sm:$0xff]
    %v371 = vld [vmem:[#allocation2 + $0x810] sm:$0xff]
    %v372 = vld [vmem:[#allocation2 + $0x818] sm:$0xff]
    %v373 = vld [vmem:[#allocation2 + $0x820] sm:$0xff]
    %v374 = vld [vmem:[#allocation2 + $0x828] sm:$0xff]
    %v375 = vld [vmem:[#allocation2 + $0x830] sm:$0xff]
    %v376 = vld [vmem:[#allocation2 + $0x838] sm:$0xff]
    %v377 = vld [vmem:[#allocation2 + $0x840] sm:$0xff]
    %v378 = vld [vmem:[#allocation2 + $0x848] sm:$0xff]
    %v379 = vld [vmem:[#allocation2 + $0x850] sm:$0xff]
    %v380 = vld [vmem:[#allocation2 + $0x858] sm:$0xff]
    %v381 = vld [vmem:[#allocation2 + $0x860] sm:$0xff]
    %v382 = vld [vmem:[#allocation2 + $0x868] sm:$0xff]
    %v383 = vld [vmem:[#allocation2 + $0x870] sm:$0xff]
    %v384 = vld [vmem:[#allocation2 + $0x878] sm:$0xff]
    %v385 = vld [vmem:[#allocation2 + $0x880] sm:$0xff]
    %v386 = vld [vmem:[#allocation2 + $0x888] sm:$0xff]
    %v387 = vld [vmem:[#allocation2 + $0x890] sm:$0xff]
    %v388 = vld [vmem:[#allocation2 + $0x898] sm:$0xff]
    %v389 = vld [vmem:[#allocation2 + $0x8a0] sm:$0xff]
    %v390 = vld [vmem:[#allocation2 + $0x8a8] sm:$0xff]
    %v391 = vld [vmem:[#allocation2 + $0x8b0] sm:$0xff]
    %v392 = vld [vmem:[#allocation2 + $0x8b8] sm:$0xff]
    %v393 = vld [vmem:[#allocation2 + $0x8c0] sm:$0xff]
    %v394 = vld [vmem:[#allocation2 + $0x8c8] sm:$0xff]
    %v395 = vld [vmem:[#allocation2 + $0x8d0] sm:$0xff]
    %v396 = vld [vmem:[#allocation2 + $0x8d8] sm:$0xff]
    %v397 = vld [vmem:[#allocation2 + $0x8e0] sm:$0xff]
    %v398 = vld [vmem:[#allocation2 + $0x8e8] sm:$0xff]
    %v399 = vld [vmem:[#allocation2 + $0x8f0] sm:$0xff]
    %v400 = vld [vmem:[#allocation2 + $0x8f8] sm:$0xff]
    %v401 = vld [vmem:[#allocation2 + $0x900] sm:$0xff]
    %v402 = vld [vmem:[#allocation2 + $0x908] sm:$0xff]
    %v403 = vld [vmem:[#allocation2 + $0x910] sm:$0xff]
    %v404 = vld [vmem:[#allocation2 + $0x918] sm:$0xff]
    %v405 = vld [vmem:[#allocation2 + $0x920] sm:$0xff]
    %v406 = vld [vmem:[#allocation2 + $0x928] sm:$0xff]
    %v407 = vld [vmem:[#allocation2 + $0x930] sm:$0xff]
    %v408 = vld [vmem:[#allocation2 + $0x938] sm:$0xff]
    %v409 = vld [vmem:[#allocation2 + $0x940] sm:$0xff]
    %v410 = vld [vmem:[#allocation2 + $0x948] sm:$0xff]
    %v411 = vld [vmem:[#allocation2 + $0x950] sm:$0xff]
    %v412 = vld [vmem:[#allocation2 + $0x958] sm:$0xff]
    %v413 = vld [vmem:[#allocation2 + $0x960] sm:$0xff]
    %v414 = vld [vmem:[#allocation2 + $0x968] sm:$0xff]
    %v415 = vld [vmem:[#allocation2 + $0x970] sm:$0xff]
    %v416 = vld [vmem:[#allocation2 + $0x978] sm:$0xff]
    %v417 = vld [vmem:[#allocation2 + $0x980] sm:$0xff]
    %v418 = vld [vmem:[#allocation2 + $0x988] sm:$0xff]
    %v419 = vld [vmem:[#allocation2 + $0x990] sm:$0xff]
    %v420 = vld [vmem:[#allocation2 + $0x998] sm:$0xff]
    %v421 = vld [vmem:[#allocation2 + $0x9a0] sm:$0xff]
    %v422 = vld [vmem:[#allocation2 + $0x9a8] sm:$0xff]
    %v423 = vld [vmem:[#allocation2 + $0x9b0] sm:$0xff]
    %v424 = vld [vmem:[#allocation2 + $0x9b8] sm:$0xff]
    %v425 = vld [vmem:[#allocation2 + $0x9c0] sm:$0xff]
    %v426 = vld [vmem:[#allocation2 + $0x9c8] sm:$0xff]
    %v427 = vld [vmem:[#allocation2 + $0x9d0] sm:$0xff]
    %v428 = vld [vmem:[#allocation2 + $0x9d8] sm:$0xff]
    %v429 = vld [vmem:[#allocation2 + $0x9e0] sm:$0xff]
    %v430 = vld [vmem:[#allocation2 + $0x9e8] sm:$0xff]
    %v431 = vld [vmem:[#allocation2 + $0x9f0] sm:$0xff]
    %v432 = vld [vmem:[#allocation2 + $0x9f8] sm:$0xff]
    %v433 = vld [vmem:[#allocation2 + $0xa00] sm:$0xff]
    %v434 = vld [vmem:[#allocation2 + $0xa08] sm:$0xff]
    %v435 = vld [vmem:[#allocation2 + $0xa10] sm:$0xff]
    %v436 = vld [vmem:[#allocation2 + $0xa18] sm:$0xff]
    %v437 = vld [vmem:[#allocation2 + $0xa20] sm:$0xff]
    %v438 = vld [vmem:[#allocation2 + $0xa28] sm:$0xff]
    %v439 = vld [vmem:[#allocation2 + $0xa30] sm:$0xff]
    %v440 = vld [vmem:[#allocation2 + $0xa38] sm:$0xff]
    %v441 = vld [vmem:[#allocation2 + $0xa40] sm:$0xff]
    %v442 = vld [vmem:[#allocation2 + $0xa48] sm:$0xff]
    %v443 = vld [vmem:[#allocation2 + $0xa50] sm:$0xff]
    %v444 = vld [vmem:[#allocation2 + $0xa58] sm:$0xff]
    %v445 = vld [vmem:[#allocation2 + $0xa60] sm:$0xff]
    %v446 = vld [vmem:[#allocation2 + $0xa68] sm:$0xff]
    %v447 = vld [vmem:[#allocation2 + $0xa70] sm:$0xff]
    %v448 = vld [vmem:[#allocation2 + $0xa78] sm:$0xff]
    %v449 = vld [vmem:[#allocation2 + $0xa80] sm:$0xff]
    %v450 = vld [vmem:[#allocation2 + $0xa88] sm:$0xff]
    %v451 = vld [vmem:[#allocation2 + $0xa90] sm:$0xff]
    %v452 = vld [vmem:[#allocation2 + $0xa98] sm:$0xff]
    %v453 = vld [vmem:[#allocation2 + $0xaa0] sm:$0xff]
    %v454 = vld [vmem:[#allocation2 + $0xaa8] sm:$0xff]
    %v455 = vld [vmem:[#allocation2 + $0xab0] sm:$0xff]
    %v456 = vld [vmem:[#allocation2 + $0xab8] sm:$0xff]
    %v457 = vld [vmem:[#allocation2 + $0xac0] sm:$0xff]
    %v458 = vld [vmem:[#allocation2 + $0xac8] sm:$0xff]
    %v459 = vld [vmem:[#allocation2 + $0xad0] sm:$0xff]
    %v460 = vld [vmem:[#allocation2 + $0xad8] sm:$0xff]
    %v461 = vld [vmem:[#allocation2 + $0xae0] sm:$0xff]
    %v462 = vld [vmem:[#allocation2 + $0xae8] sm:$0xff]
    %v463 = vld [vmem:[#allocation2 + $0xaf0] sm:$0xff]
    %v464 = vld [vmem:[#allocation2 + $0xaf8] sm:$0xff]
    %v465 = vld [vmem:[#allocation2 + $0xb00] sm:$0xff]
    %v466 = vld [vmem:[#allocation2 + $0xb08] sm:$0xff]
    %v467 = vld [vmem:[#allocation2 + $0xb10] sm:$0xff]
    %v468 = vld [vmem:[#allocation2 + $0xb18] sm:$0xff]
    %v469 = vld [vmem:[#allocation2 + $0xb20] sm:$0xff]
    %v470 = vld [vmem:[#allocation2 + $0xb28] sm:$0xff]
    %v471 = vld [vmem:[#allocation2 + $0xb30] sm:$0xff]
    %v472 = vld [vmem:[#allocation2 + $0xb38] sm:$0xff]
    %v473 = vld [vmem:[#allocation2 + $0xb40] sm:$0xff]
    %v474 = vld [vmem:[#allocation2 + $0xb48] sm:$0xff]
    %v475 = vld [vmem:[#allocation2 + $0xb50] sm:$0xff]
    %v476 = vld [vmem:[#allocation2 + $0xb58] sm:$0xff]
    %v477 = vld [vmem:[#allocation2 + $0xb60] sm:$0xff]
    %v478 = vld [vmem:[#allocation2 + $0xb68] sm:$0xff]
    %v479 = vld [vmem:[#allocation2 + $0xb70] sm:$0xff]
    %v480 = vld [vmem:[#allocation2 + $0xb78] sm:$0xff]
    %v481 = vld [vmem:[#allocation2 + $0xb80] sm:$0xff]
    %v482 = vld [vmem:[#allocation2 + $0xb88] sm:$0xff]
    %v483 = vld [vmem:[#allocation2 + $0xb90] sm:$0xff]
    %v484 = vld [vmem:[#allocation2 + $0xb98] sm:$0xff]
    %v485 = vld [vmem:[#allocation2 + $0xba0] sm:$0xff]
    %v486 = vld [vmem:[#allocation2 + $0xba8] sm:$0xff]
    %v487 = vld [vmem:[#allocation2 + $0xbb0] sm:$0xff]
    %v488 = vld [vmem:[#allocation2 + $0xbb8] sm:$0xff]
    %v489 = vld [vmem:[#allocation2 + $0xbc0] sm:$0xff]
    %v490 = vld [vmem:[#allocation2 + $0xbc8] sm:$0xff]
    %v491 = vld [vmem:[#allocation2 + $0xbd0] sm:$0xff]
    %v492 = vld [vmem:[#allocation2 + $0xbd8] sm:$0xff]
    %v493 = vld [vmem:[#allocation2 + $0xbe0] sm:$0xff]
    %v494 = vld [vmem:[#allocation2 + $0xbe8] sm:$0xff]
    %v495 = vld [vmem:[#allocation2 + $0xbf0] sm:$0xff]
    %v496 = vld [vmem:[#allocation2 + $0xbf8] sm:$0xff]
    %v497 = vld [vmem:[#allocation2 + $0xc00] sm:$0xff]
    %v498 = vld [vmem:[#allocation2 + $0xc08] sm:$0xff]
    %v499 = vld [vmem:[#allocation2 + $0xc10] sm:$0xff]
    %v500 = vld [vmem:[#allocation2 + $0xc18] sm:$0xff]
    %v501 = vld [vmem:[#allocation2 + $0xc20] sm:$0xff]
    %v502 = vld [vmem:[#allocation2 + $0xc28] sm:$0xff]
    %v503 = vld [vmem:[#allocation2 + $0xc30] sm:$0xff]
    %v504 = vld [vmem:[#allocation2 + $0xc38] sm:$0xff]
    %v505 = vld [vmem:[#allocation2 + $0xc40] sm:$0xff]
    %v506 = vld [vmem:[#allocation2 + $0xc48] sm:$0xff]
    %v507 = vld [vmem:[#allocation2 + $0xc50] sm:$0xff]
    %v508 = vld [vmem:[#allocation2 + $0xc58] sm:$0xff]
    %v509 = vld [vmem:[#allocation2 + $0xc60] sm:$0xff]
    %v510 = vld [vmem:[#allocation2 + $0xc68] sm:$0xff]
    %v511 = vld [vmem:[#allocation2 + $0xc70] sm:$0xff]
    %v512 = vld [vmem:[#allocation2 + $0xc78] sm:$0xff]
    %v513 = vld [vmem:[#allocation2 + $0xc80] sm:$0xff]
    %v514 = vld [vmem:[#allocation2 + $0xc88] sm:$0xff]
    %v515 = vld [vmem:[#allocation2 + $0xc90] sm:$0xff]
    %v516 = vld [vmem:[#allocation2 + $0xc98] sm:$0xff]
    %v517 = vld [vmem:[#allocation2 + $0xca0] sm:$0xff]
    %v518 = vld [vmem:[#allocation2 + $0xca8] sm:$0xff]
    %v519 = vld [vmem:[#allocation2 + $0xcb0] sm:$0xff]
    %v520 = vld [vmem:[#allocation2 + $0xcb8] sm:$0xff]
    %v521 = vld [vmem:[#allocation2 + $0xcc0] sm:$0xff]
    %v522 = vld [vmem:[#allocation2 + $0xcc8] sm:$0xff]
    %v523 = vld [vmem:[#allocation2 + $0xcd0] sm:$0xff]
    %v524 = vld [vmem:[#allocation2 + $0xcd8] sm:$0xff]
    %v525 = vld [vmem:[#allocation2 + $0xce0] sm:$0xff]
    %v526 = vld [vmem:[#allocation2 + $0xce8] sm:$0xff]
    %v527 = vld [vmem:[#allocation2 + $0xcf0] sm:$0xff]
    %v528 = vld [vmem:[#allocation2 + $0xcf8] sm:$0xff]
    %v529 = vld [vmem:[#allocation2 + $0xd00] sm:$0xff]
    %v530 = vld [vmem:[#allocation2 + $0xd08] sm:$0xff]
    %v531 = vld [vmem:[#allocation2 + $0xd10] sm:$0xff]
    %v532 = vld [vmem:[#allocation2 + $0xd18] sm:$0xff]
    %v533 = vld [vmem:[#allocation2 + $0xd20] sm:$0xff]
    %v534 = vld [vmem:[#allocation2 + $0xd28] sm:$0xff]
    %v535 = vld [vmem:[#allocation2 + $0xd30] sm:$0xff]
    %v536 = vld [vmem:[#allocation2 + $0xd38] sm:$0xff]
    %v537 = vld [vmem:[#allocation2 + $0xd40] sm:$0xff]
    %v538 = vld [vmem:[#allocation2 + $0xd48] sm:$0xff]
    %v539 = vld [vmem:[#allocation2 + $0xd50] sm:$0xff]
    %v540 = vld [vmem:[#allocation2 + $0xd58] sm:$0xff]
    %v541 = vld [vmem:[#allocation2 + $0xd60] sm:$0xff]
    %v542 = vld [vmem:[#allocation2 + $0xd68] sm:$0xff]
    %v543 = vld [vmem:[#allocation2 + $0xd70] sm:$0xff]
    %v544 = vld [vmem:[#allocation2 + $0xd78] sm:$0xff]
    %v545 = vld [vmem:[#allocation2 + $0xd80] sm:$0xff]
    %v546 = vld [vmem:[#allocation2 + $0xd88] sm:$0xff]
    %v547 = vld [vmem:[#allocation2 + $0xd90] sm:$0xff]
    %v548 = vld [vmem:[#allocation2 + $0xd98] sm:$0xff]
    %v549 = vld [vmem:[#allocation2 + $0xda0] sm:$0xff]
    %v550 = vld [vmem:[#allocation2 + $0xda8] sm:$0xff]
    %v551 = vld [vmem:[#allocation2 + $0xdb0] sm:$0xff]
    %v552 = vld [vmem:[#allocation2 + $0xdb8] sm:$0xff]
    %v553 = vld [vmem:[#allocation2 + $0xdc0] sm:$0xff]
    %v554 = vld [vmem:[#allocation2 + $0xdc8] sm:$0xff]
    %v555 = vld [vmem:[#allocation2 + $0xdd0] sm:$0xff]
    %v556 = vld [vmem:[#allocation2 + $0xdd8] sm:$0xff]
    %v557 = vld [vmem:[#allocation2 + $0xde0] sm:$0xff]
    %v558 = vld [vmem:[#allocation2 + $0xde8] sm:$0xff]
    %v559 = vld [vmem:[#allocation2 + $0xdf0] sm:$0xff]
    %v560 = vld [vmem:[#allocation2 + $0xdf8] sm:$0xff]
    %v561 = vld [vmem:[#allocation2 + $0xe00] sm:$0xff]
    %v562 = vld [vmem:[#allocation2 + $0xe08] sm:$0xff]
    %v563 = vld [vmem:[#allocation2 + $0xe10] sm:$0xff]
    %v564 = vld [vmem:[#allocation2 + $0xe18] sm:$0xff]
    %v565 = vld [vmem:[#allocation2 + $0xe20] sm:$0xff]
    %v566 = vld [vmem:[#allocation2 + $0xe28] sm:$0xff]
    %v567 = vld [vmem:[#allocation2 + $0xe30] sm:$0xff]
    %v568 = vld [vmem:[#allocation2 + $0xe38] sm:$0xff]
    %v569 = vld [vmem:[#allocation2 + $0xe40] sm:$0xff]
    %v570 = vld [vmem:[#allocation2 + $0xe48] sm:$0xff]
    %v571 = vld [vmem:[#allocation2 + $0xe50] sm:$0xff]
    %v572 = vld [vmem:[#allocation2 + $0xe58] sm:$0xff]
    %v573 = vld [vmem:[#allocation2 + $0xe60] sm:$0xff]
    %v574 = vld [vmem:[#allocation2 + $0xe68] sm:$0xff]
    %v575 = vld [vmem:[#allocation2 + $0xe70] sm:$0xff]
    %v576 = vld [vmem:[#allocation2 + $0xe78] sm:$0xff]
    %v577 = vld [vmem:[#allocation2 + $0xe80] sm:$0xff]
    %v578 = vld [vmem:[#allocation2 + $0xe88] sm:$0xff]
    %v579 = vld [vmem:[#allocation2 + $0xe90] sm:$0xff]
    %v580 = vld [vmem:[#allocation2 + $0xe98] sm:$0xff]
    %v581 = vld [vmem:[#allocation2 + $0xea0] sm:$0xff]
    %v582 = vld [vmem:[#allocation2 + $0xea8] sm:$0xff]
    %v583 = vld [vmem:[#allocation2 + $0xeb0] sm:$0xff]
    %v584 = vld [vmem:[#allocation2 + $0xeb8] sm:$0xff]
    %v585 = vld [vmem:[#allocation2 + $0xec0] sm:$0xff]
    %v586 = vld [vmem:[#allocation2 + $0xec8] sm:$0xff]
    %v587 = vld [vmem:[#allocation2 + $0xed0] sm:$0xff]
    %v588 = vld [vmem:[#allocation2 + $0xed8] sm:$0xff]
    %v589 = vld [vmem:[#allocation2 + $0xee0] sm:$0xff]
    %v590 = vld [vmem:[#allocation2 + $0xee8] sm:$0xff]
    %v591 = vld [vmem:[#allocation2 + $0xef0] sm:$0xff]
    %v592 = vld [vmem:[#allocation2 + $0xef8] sm:$0xff]
    %v593 = vld [vmem:[#allocation2 + $0xf00] sm:$0xff]
    %v594 = vld [vmem:[#allocation2 + $0xf08] sm:$0xff]
    %v595 = vld [vmem:[#allocation2 + $0xf10] sm:$0xff]
    %v596 = vld [vmem:[#allocation2 + $0xf18] sm:$0xff]
    %v597 = vld [vmem:[#allocation2 + $0xf20] sm:$0xff]
    %v598 = vld [vmem:[#allocation2 + $0xf28] sm:$0xff]
    %v599 = vld [vmem:[#allocation2 + $0xf30] sm:$0xff]
    %v600 = vld [vmem:[#allocation2 + $0xf38] sm:$0xff]
    %v601 = vld [vmem:[#allocation2 + $0xf40] sm:$0xff]
    %v602 = vld [vmem:[#allocation2 + $0xf48] sm:$0xff]
    %v603 = vld [vmem:[#allocation2 + $0xf50] sm:$0xff]
    %v604 = vld [vmem:[#allocation2 + $0xf58] sm:$0xff]
    %v605 = vld [vmem:[#allocation2 + $0xf60] sm:$0xff]
    %v606 = vld [vmem:[#allocation2 + $0xf68] sm:$0xff]
    %v607 = vld [vmem:[#allocation2 + $0xf70] sm:$0xff]
    %v608 = vld [vmem:[#allocation2 + $0xf78] sm:$0xff]
    %v609 = vld [vmem:[#allocation2 + $0xf80] sm:$0xff]
    %v610 = vld [vmem:[#allocation2 + $0xf88] sm:$0xff]
    %v611 = vld [vmem:[#allocation2 + $0xf90] sm:$0xff]
    %v612 = vld [vmem:[#allocation2 + $0xf98] sm:$0xff]
    %v613 = vld [vmem:[#allocation2 + $0xfa0] sm:$0xff]
    %v614 = vld [vmem:[#allocation2 + $0xfa8] sm:$0xff]
    %v615 = vld [vmem:[#allocation2 + $0xfb0] sm:$0xff]
    %v616 = vld [vmem:[#allocation2 + $0xfb8] sm:$0xff]
    %v617 = vld [vmem:[#allocation2 + $0xfc0] sm:$0xff]
    %v618 = vld [vmem:[#allocation2 + $0xfc8] sm:$0xff]
    %v619 = vld [vmem:[#allocation2 + $0xfd0] sm:$0xff]
    %v620 = vld [vmem:[#allocation2 + $0xfd8] sm:$0xff]
    %v621 = vld [vmem:[#allocation2 + $0xfe0] sm:$0xff]
    %v622 = vld [vmem:[#allocation2 + $0xfe8] sm:$0xff]
    %v623 = vld [vmem:[#allocation2 + $0xff0] sm:$0xff]
    %v624 = vld [vmem:[#allocation2 + $0xff8] sm:$0xff]
    %v625 = vld [vmem:[#allocation2 + $0x1000] sm:$0xff]
    %v626 = vld [vmem:[#allocation2 + $0x1008] sm:$0xff]
    %v627 = vld [vmem:[#allocation2 + $0x1010] sm:$0xff]
    %v628 = vld [vmem:[#allocation2 + $0x1018] sm:$0xff]
    %v629 = vld [vmem:[#allocation2 + $0x1020] sm:$0xff]
    %v630 = vld [vmem:[#allocation2 + $0x1028] sm:$0xff]
    %v631 = vld [vmem:[#allocation2 + $0x1030] sm:$0xff]
    %v632 = vld [vmem:[#allocation2 + $0x1038] sm:$0xff]
    %v633 = vld [vmem:[#allocation2 + $0x1040] sm:$0xff]
    %v634 = vld [vmem:[#allocation2 + $0x1048] sm:$0xff]
    %v635 = vld [vmem:[#allocation2 + $0x1050] sm:$0xff]
    %v636 = vld [vmem:[#allocation2 + $0x1058] sm:$0xff]
    %v637 = vld [vmem:[#allocation2 + $0x1060] sm:$0xff]
    %v638 = vld [vmem:[#allocation2 + $0x1068] sm:$0xff]
    %v639 = vld [vmem:[#allocation2 + $0x1070] sm:$0xff]
    %v640 = vld [vmem:[#allocation2 + $0x1078] sm:$0xff]
    %v641 = vld [vmem:[#allocation2 + $0x1080] sm:$0xff]
    %v642 = vld [vmem:[#allocation2 + $0x1088] sm:$0xff]
    %v643 = vld [vmem:[#allocation2 + $0x1090] sm:$0xff]
    %v644 = vld [vmem:[#allocation2 + $0x1098] sm:$0xff]
    %v645 = vld [vmem:[#allocation2 + $0x10a0] sm:$0xff]
    %v646 = vld [vmem:[#allocation2 + $0x10a8] sm:$0xff]
    %v647 = vld [vmem:[#allocation2 + $0x10b0] sm:$0xff]
    %v648 = vld [vmem:[#allocation2 + $0x10b8] sm:$0xff]
    %v649 = vld [vmem:[#allocation2 + $0x10c0] sm:$0xff]
    %v650 = vld [vmem:[#allocation2 + $0x10c8] sm:$0xff]
    %v651 = vld [vmem:[#allocation2 + $0x10d0] sm:$0xff]
    %v652 = vld [vmem:[#allocation2 + $0x10d8] sm:$0xff]
    %v653 = vld [vmem:[#allocation2 + $0x10e0] sm:$0xff]
    %v654 = vld [vmem:[#allocation2 + $0x10e8] sm:$0xff]
    %v655 = vld [vmem:[#allocation2 + $0x10f0] sm:$0xff]
    %v656 = vld [vmem:[#allocation2 + $0x10f8] sm:$0xff]
    %v657 = vld [vmem:[#allocation2 + $0x1100] sm:$0xff]
    %v658 = vld [vmem:[#allocation2 + $0x1108] sm:$0xff]
    %v659 = vld [vmem:[#allocation2 + $0x1110] sm:$0xff]
    %v660 = vld [vmem:[#allocation2 + $0x1118] sm:$0xff]
    %v661 = vld [vmem:[#allocation2 + $0x1120] sm:$0xff]
    %v662 = vld [vmem:[#allocation2 + $0x1128] sm:$0xff]
    %v663 = vld [vmem:[#allocation2 + $0x1130] sm:$0xff]
    %v664 = vld [vmem:[#allocation2 + $0x1138] sm:$0xff]
    %v665 = vld [vmem:[#allocation2 + $0x1140] sm:$0xff]
    %v666 = vld [vmem:[#allocation2 + $0x1148] sm:$0xff]
    %v667 = vld [vmem:[#allocation2 + $0x1150] sm:$0xff]
    %v668 = vld [vmem:[#allocation2 + $0x1158] sm:$0xff]
    %v669 = vld [vmem:[#allocation2 + $0x1160] sm:$0xff]
    %v670 = vld [vmem:[#allocation2 + $0x1168] sm:$0xff]
    %v671 = vld [vmem:[#allocation2 + $0x1170] sm:$0xff]
    %v672 = vld [vmem:[#allocation2 + $0x1178] sm:$0xff]
    %v673 = vld [vmem:[#allocation2 + $0x1180] sm:$0xff]
    %v674 = vld [vmem:[#allocation2 + $0x1188] sm:$0xff]
    %v675 = vld [vmem:[#allocation2 + $0x1190] sm:$0xff]
    %v676 = vld [vmem:[#allocation2 + $0x1198] sm:$0xff]
    %v677 = vld [vmem:[#allocation2 + $0x11a0] sm:$0xff]
    %v678 = vld [vmem:[#allocation2 + $0x11a8] sm:$0xff]
    %v679 = vld [vmem:[#allocation2 + $0x11b0] sm:$0xff]
    %v680 = vld [vmem:[#allocation2 + $0x11b8] sm:$0xff]
    %v681 = vld [vmem:[#allocation2 + $0x11c0] sm:$0xff]
    %v682 = vld [vmem:[#allocation2 + $0x11c8] sm:$0xff]
    %v683 = vld [vmem:[#allocation2 + $0x11d0] sm:$0xff]
    %v684 = vld [vmem:[#allocation2 + $0x11d8] sm:$0xff]
    %v685 = vld [vmem:[#allocation2 + $0x11e0] sm:$0xff]
    %v686 = vld [vmem:[#allocation2 + $0x11e8] sm:$0xff]
    %v687 = vld [vmem:[#allocation2 + $0x11f0] sm:$0xff]
    %v688 = vld [vmem:[#allocation2 + $0x11f8] sm:$0xff]
    %v689 = vld [vmem:[#allocation2 + $0x1200] sm:$0xff]
    %v690 = vld [vmem:[#allocation2 + $0x1208] sm:$0xff]
    %v691 = vld [vmem:[#allocation2 + $0x1210] sm:$0xff]
    %v692 = vld [vmem:[#allocation2 + $0x1218] sm:$0xff]
    %v693 = vld [vmem:[#allocation2 + $0x1220] sm:$0xff]
    %v694 = vld [vmem:[#allocation2 + $0x1228] sm:$0xff]
    %v695 = vld [vmem:[#allocation2 + $0x1230] sm:$0xff]
    %v696 = vld [vmem:[#allocation2 + $0x1238] sm:$0xff]
    %v697 = vld [vmem:[#allocation2 + $0x1240] sm:$0xff]
    %v698 = vld [vmem:[#allocation2 + $0x1248] sm:$0xff]
    %v699 = vld [vmem:[#allocation2 + $0x1250] sm:$0xff]
    %v700 = vld [vmem:[#allocation2 + $0x1258] sm:$0xff]
    %v701 = vld [vmem:[#allocation2 + $0x1260] sm:$0xff]
    %v702 = vld [vmem:[#allocation2 + $0x1268] sm:$0xff]
    %v703 = vld [vmem:[#allocation2 + $0x1270] sm:$0xff]
    %v704 = vld [vmem:[#allocation2 + $0x1278] sm:$0xff]
    %v705 = vld [vmem:[#allocation2 + $0x1280] sm:$0xff]
    %v706 = vld [vmem:[#allocation2 + $0x1288] sm:$0xff]
    %v707 = vld [vmem:[#allocation2 + $0x1290] sm:$0xff]
    %v708 = vld [vmem:[#allocation2 + $0x1298] sm:$0xff]
    %v709 = vld [vmem:[#allocation2 + $0x12a0] sm:$0xff]
    %v710 = vld [vmem:[#allocation2 + $0x12a8] sm:$0xff]
    %v711 = vld [vmem:[#allocation2 + $0x12b0] sm:$0xff]
    %v712 = vld [vmem:[#allocation2 + $0x12b8] sm:$0xff]
    %v713 = vld [vmem:[#allocation2 + $0x12c0] sm:$0xff]
    %v714 = vld [vmem:[#allocation2 + $0x12c8] sm:$0xff]
    %v715 = vld [vmem:[#allocation2 + $0x12d0] sm:$0xff]
    %v716 = vld [vmem:[#allocation2 + $0x12d8] sm:$0xff]
    %v717 = vld [vmem:[#allocation2 + $0x12e0] sm:$0xff]
    %v718 = vld [vmem:[#allocation2 + $0x12e8] sm:$0xff]
    %v719 = vld [vmem:[#allocation2 + $0x12f0] sm:$0xff]
    %v720 = vld [vmem:[#allocation2 + $0x12f8] sm:$0xff]
    %v721 = vld [vmem:[#allocation4] sm:$0xf]
    %v723 = vlaneseq
    %v724 = vshrl.u32 %v723, 7
    %v725 = vsub.s32 0, %v724
    %v726 = vrot.slane %v721, %v725
    %v727 = vlaneseq
    %v728 = vshrl.u32 %v727, 7
    %v729 = vsub.s32 1, %v728
    %v730 = vrot.slane %v721, %v729
    %v731 = vlaneseq
    %v732 = vshrl.u32 %v731, 7
    %v733 = vsub.s32 2, %v732
    %v734 = vrot.slane %v721, %v733
    %v735 = vlaneseq
    %v736 = vshrl.u32 %v735, 7
    %v737 = vsub.s32 3, %v736
    %v738 = vrot.slane %v721, %v737
    %v753 = vunpack.c.l.b16 %v103
    %v754 = vunpack.c.h.b16 %v103
    %v755 = vunpack.c.l.b16 %v104
    %v756 = vunpack.c.h.b16 %v104
    %v757 = vunpack.c.l.b16 %v105
    %v758 = vunpack.c.h.b16 %v105
    %v759 = vunpack.c.l.b16 %v106
    %v760 = vunpack.c.h.b16 %v106
    %v761 = vunpack.c.l.b16 %v107
    %v762 = vunpack.c.h.b16 %v107
    %v763 = vunpack.c.l.b16 %v108
    %v764 = vunpack.c.h.b16 %v108
    %v765 = vunpack.c.l.b16 %v109
    %v766 = vunpack.c.h.b16 %v109
    %v767 = vunpack.c.l.b16 %v110
    %v768 = vunpack.c.h.b16 %v110
    %v769 = vunpack.c.l.b16 %v111
    %v770 = vunpack.c.h.b16 %v111
    %v771 = vunpack.c.l.b16 %v112
    %v772 = vpack.c.b16 %v753, %v753
    %v773 = vpack.c.b16 %v754, %v754
    %v774 = vpack.c.b16 %v755, %v755
    %v775 = vpack.c.b16 %v756, %v756
    %v776 = vpack.c.b16 %v757, %v757
    %v777 = vpack.c.b16 %v758, %v758
    %v778 = vpack.c.b16 %v759, %v759
    %v779 = vpack.c.b16 %v760, %v760
    %v780 = vpack.c.b16 %v761, %v761
    %v781 = vpack.c.b16 %v762, %v762
    %v782 = vpack.c.b16 %v763, %v763
    %v783 = vpack.c.b16 %v764, %v764
    %v784 = vpack.c.b16 %v765, %v765
    %v785 = vpack.c.b16 %v766, %v766
    %v786 = vpack.c.b16 %v767, %v767
    %v787 = vpack.c.b16 %v768, %v768
    %v788 = vpack.c.b16 %v769, %v769
    %v789 = vpack.c.b16 %v770, %v770
    %v790 = vpack.c.b16 %v771, %v771
    %v1418 = vunpack.c.l.b16 %v113
    %v1419 = vunpack.c.h.b16 %v113
    %v1420 = vunpack.c.l.b16 %v114
    %v1421 = vunpack.c.h.b16 %v114
    %v1422 = vunpack.c.l.b16 %v115
    %v1423 = vunpack.c.h.b16 %v115
    %v1424 = vunpack.c.l.b16 %v116
    %v1425 = vunpack.c.h.b16 %v116
    %v1426 = vunpack.c.l.b16 %v117
    %v1427 = vunpack.c.h.b16 %v117
    %v1428 = vunpack.c.l.b16 %v118
    %v1429 = vunpack.c.h.b16 %v118
    %v1430 = vunpack.c.l.b16 %v119
    %v1431 = vunpack.c.h.b16 %v119
    %v1432 = vunpack.c.l.b16 %v120
    %v1433 = vunpack.c.h.b16 %v120
    %v1434 = vunpack.c.l.b16 %v121
    %v1435 = vunpack.c.h.b16 %v121
    %v1436 = vunpack.c.l.b16 %v122
    %v1437 = vunpack.c.h.b16 %v122
    %v1438 = vunpack.c.l.b16 %v123
    %v1439 = vunpack.c.h.b16 %v123
    %v1440 = vunpack.c.l.b16 %v124
    %v1441 = vunpack.c.h.b16 %v124
    %v1442 = vunpack.c.l.b16 %v125
    %v1443 = vunpack.c.h.b16 %v125
    %v1444 = vunpack.c.l.b16 %v126
    %v1445 = vunpack.c.h.b16 %v126
    %v1446 = vunpack.c.l.b16 %v127
    %v1447 = vunpack.c.h.b16 %v127
    %v1448 = vunpack.c.l.b16 %v128
    %v1449 = vunpack.c.h.b16 %v128
    %v1450 = vunpack.c.l.b16 %v129
    %v1451 = vunpack.c.h.b16 %v129
    %v1452 = vunpack.c.l.b16 %v130
    %v1453 = vunpack.c.h.b16 %v130
    %v1454 = vunpack.c.l.b16 %v131
    %v1455 = vunpack.c.h.b16 %v131
    %v1456 = vunpack.c.l.b16 %v132
    %v1457 = vunpack.c.h.b16 %v132
    %v1458 = vunpack.c.l.b16 %v133
    %v1459 = vunpack.c.h.b16 %v133
    %v1460 = vunpack.c.l.b16 %v134
    %v1461 = vunpack.c.h.b16 %v134
    %v1462 = vunpack.c.l.b16 %v135
    %v1463 = vunpack.c.h.b16 %v135
    %v1464 = vunpack.c.l.b16 %v136
    %v1465 = vunpack.c.h.b16 %v136
    %v1466 = vunpack.c.l.b16 %v137
    %v1467 = vunpack.c.h.b16 %v137
    %v1468 = vunpack.c.l.b16 %v138
    %v1469 = vunpack.c.h.b16 %v138
    %v1470 = vunpack.c.l.b16 %v139
    %v1471 = vunpack.c.h.b16 %v139
    %v1472 = vunpack.c.l.b16 %v140
    %v1473 = vunpack.c.h.b16 %v140
    %v1474 = vunpack.c.l.b16 %v141
    %v1475 = vunpack.c.h.b16 %v141
    %v1476 = vunpack.c.l.b16 %v142
    %v1477 = vunpack.c.h.b16 %v142
    %v1478 = vunpack.c.l.b16 %v143
    %v1479 = vunpack.c.h.b16 %v143
    %v1480 = vunpack.c.l.b16 %v144
    %v1481 = vunpack.c.h.b16 %v144
    %v1482 = vunpack.c.l.b16 %v145
    %v1483 = vunpack.c.h.b16 %v145
    %v1484 = vunpack.c.l.b16 %v146
    %v1485 = vunpack.c.h.b16 %v146
    %v1486 = vunpack.c.l.b16 %v147
    %v1487 = vunpack.c.h.b16 %v147
    %v1488 = vunpack.c.l.b16 %v148
    %v1489 = vunpack.c.h.b16 %v148
    %v1490 = vunpack.c.l.b16 %v149
    %v1491 = vunpack.c.h.b16 %v149
    %v1492 = vunpack.c.l.b16 %v150
    %v1493 = vunpack.c.h.b16 %v150
    %v1494 = vunpack.c.l.b16 %v151
    %v1495 = vunpack.c.h.b16 %v151
    %v1496 = vunpack.c.l.b16 %v152
    %v1497 = vunpack.c.h.b16 %v152
    %v1498 = vunpack.c.l.b16 %v153
    %v1499 = vunpack.c.h.b16 %v153
    %v1500 = vunpack.c.l.b16 %v154
    %v1501 = vunpack.c.h.b16 %v154
    %v1502 = vunpack.c.l.b16 %v155
    %v1503 = vunpack.c.h.b16 %v155
    %v1504 = vunpack.c.l.b16 %v156
    %v1505 = vunpack.c.h.b16 %v156
    %v1506 = vunpack.c.l.b16 %v157
    %v1507 = vunpack.c.h.b16 %v157
    %v1508 = vunpack.c.l.b16 %v158
    %v1509 = vunpack.c.h.b16 %v158
    %v1510 = vunpack.c.l.b16 %v159
    %v1511 = vunpack.c.h.b16 %v159
    %v1512 = vunpack.c.l.b16 %v160
    %v1513 = vunpack.c.h.b16 %v160
    %v1514 = vunpack.c.l.b16 %v161
    %v1515 = vunpack.c.h.b16 %v161
    %v1516 = vunpack.c.l.b16 %v162
    %v1517 = vunpack.c.h.b16 %v162
    %v1518 = vunpack.c.l.b16 %v163
    %v1519 = vunpack.c.h.b16 %v163
    %v1520 = vunpack.c.l.b16 %v164
    %v1521 = vunpack.c.h.b16 %v164
    %v1522 = vunpack.c.l.b16 %v165
    %v1523 = vunpack.c.h.b16 %v165
    %v1524 = vunpack.c.l.b16 %v166
    %v1525 = vunpack.c.h.b16 %v166
    %v1526 = vunpack.c.l.b16 %v167
    %v1527 = vunpack.c.h.b16 %v167
    %v1528 = vunpack.c.l.b16 %v168
    %v1529 = vunpack.c.h.b16 %v168
    %v1530 = vunpack.c.l.b16 %v169
    %v1531 = vunpack.c.h.b16 %v169
    %v1532 = vunpack.c.l.b16 %v170
    %v1533 = vunpack.c.h.b16 %v170
    %v1534 = vunpack.c.l.b16 %v171
    %v1535 = vunpack.c.h.b16 %v171
    %v1536 = vunpack.c.l.b16 %v172
    %v1537 = vunpack.c.h.b16 %v172
    %v1538 = vunpack.c.l.b16 %v173
    %v1539 = vunpack.c.h.b16 %v173
    %v1540 = vunpack.c.l.b16 %v174
    %v1541 = vunpack.c.h.b16 %v174
    %v1542 = vunpack.c.l.b16 %v175
    %v1543 = vunpack.c.h.b16 %v175
    %v1544 = vunpack.c.l.b16 %v176
    %v1545 = vunpack.c.h.b16 %v176
    %v1546 = vunpack.c.l.b16 %v177
    %v1547 = vunpack.c.h.b16 %v177
    %v1548 = vunpack.c.l.b16 %v178
    %v1549 = vunpack.c.h.b16 %v178
    %v1550 = vunpack.c.l.b16 %v179
    %v1551 = vunpack.c.h.b16 %v179
    %v1552 = vunpack.c.l.b16 %v180
    %v1553 = vunpack.c.h.b16 %v180
    %v1554 = vunpack.c.l.b16 %v181
    %v1555 = vunpack.c.h.b16 %v181
    %v1556 = vunpack.c.l.b16 %v182
    %v1557 = vunpack.c.h.b16 %v182
    %v1558 = vunpack.c.l.b16 %v183
    %v1559 = vunpack.c.h.b16 %v183
    %v1560 = vunpack.c.l.b16 %v184
    %v1561 = vunpack.c.h.b16 %v184
    %v1562 = vunpack.c.l.b16 %v185
    %v1563 = vunpack.c.h.b16 %v185
    %v1564 = vunpack.c.l.b16 %v186
    %v1565 = vunpack.c.h.b16 %v186
    %v1566 = vunpack.c.l.b16 %v187
    %v1567 = vunpack.c.h.b16 %v187
    %v1568 = vunpack.c.l.b16 %v188
    %v1569 = vunpack.c.h.b16 %v188
    %v1570 = vunpack.c.l.b16 %v189
    %v1571 = vunpack.c.h.b16 %v189
    %v1572 = vunpack.c.l.b16 %v190
    %v1573 = vunpack.c.h.b16 %v190
    %v1574 = vunpack.c.l.b16 %v191
    %v1575 = vunpack.c.h.b16 %v191
    %v1576 = vunpack.c.l.b16 %v192
    %v1577 = vunpack.c.h.b16 %v192
    %v1578 = vunpack.c.l.b16 %v193
    %v1579 = vunpack.c.h.b16 %v193
    %v1580 = vunpack.c.l.b16 %v194
    %v1581 = vunpack.c.h.b16 %v194
    %v1582 = vunpack.c.l.b16 %v195
    %v1583 = vunpack.c.h.b16 %v195
    %v1584 = vunpack.c.l.b16 %v196
    %v1585 = vunpack.c.h.b16 %v196
    %v1586 = vunpack.c.l.b16 %v197
    %v1587 = vunpack.c.h.b16 %v197
    %v1588 = vunpack.c.l.b16 %v198
    %v1589 = vunpack.c.h.b16 %v198
    %v1590 = vunpack.c.l.b16 %v199
    %v1591 = vunpack.c.h.b16 %v199
    %v1592 = vunpack.c.l.b16 %v200
    %v1593 = vunpack.c.h.b16 %v200
    %v1594 = vunpack.c.l.b16 %v201
    %v1595 = vunpack.c.h.b16 %v201
    %v1596 = vunpack.c.l.b16 %v202
    %v1597 = vunpack.c.h.b16 %v202
    %v1598 = vunpack.c.l.b16 %v203
    %v1599 = vunpack.c.h.b16 %v203
    %v1600 = vunpack.c.l.b16 %v204
    %v1601 = vunpack.c.h.b16 %v204
    %v1602 = vunpack.c.l.b16 %v205
    %v1603 = vunpack.c.h.b16 %v205
    %v1604 = vunpack.c.l.b16 %v206
    %v1605 = vunpack.c.h.b16 %v206
    %v1606 = vunpack.c.l.b16 %v207
    %v1607 = vunpack.c.h.b16 %v207
    %v1608 = vunpack.c.l.b16 %v208
    %v1609 = vunpack.c.h.b16 %v208
    %v1610 = vunpack.c.l.b16 %v209
    %v1611 = vunpack.c.h.b16 %v209
    %v1612 = vunpack.c.l.b16 %v210
    %v1613 = vunpack.c.h.b16 %v210
    %v1614 = vunpack.c.l.b16 %v211
    %v1615 = vunpack.c.h.b16 %v211
    %v1616 = vunpack.c.l.b16 %v212
    %v1617 = vunpack.c.h.b16 %v212
    %v1618 = vunpack.c.l.b16 %v213
    %v1619 = vunpack.c.h.b16 %v213
    %v1620 = vunpack.c.l.b16 %v214
    %v1621 = vunpack.c.h.b16 %v214
    %v1622 = vunpack.c.l.b16 %v215
    %v1623 = vunpack.c.h.b16 %v215
    %v1624 = vunpack.c.l.b16 %v216
    %v1625 = vunpack.c.h.b16 %v216
    %v1626 = vunpack.c.l.b16 %v217
    %v1627 = vunpack.c.h.b16 %v217
    %v1628 = vunpack.c.l.b16 %v218
    %v1629 = vunpack.c.h.b16 %v218
    %v1630 = vunpack.c.l.b16 %v219
    %v1631 = vunpack.c.h.b16 %v219
    %v1632 = vunpack.c.l.b16 %v220
    %v1633 = vunpack.c.h.b16 %v220
    %v1634 = vunpack.c.l.b16 %v221
    %v1635 = vunpack.c.h.b16 %v221
    %v1636 = vunpack.c.l.b16 %v222
    %v1637 = vunpack.c.h.b16 %v222
    %v1638 = vunpack.c.l.b16 %v223
    %v1639 = vunpack.c.h.b16 %v223
    %v1640 = vunpack.c.l.b16 %v224
    %v1641 = vunpack.c.h.b16 %v224
    %v1642 = vunpack.c.l.b16 %v225
    %v1643 = vunpack.c.h.b16 %v225
    %v1644 = vunpack.c.l.b16 %v226
    %v1645 = vunpack.c.h.b16 %v226
    %v1646 = vunpack.c.l.b16 %v227
    %v1647 = vunpack.c.h.b16 %v227
    %v1648 = vunpack.c.l.b16 %v228
    %v1649 = vunpack.c.h.b16 %v228
    %v1650 = vunpack.c.l.b16 %v229
    %v1651 = vunpack.c.h.b16 %v229
    %v1652 = vunpack.c.l.b16 %v230
    %v1653 = vunpack.c.h.b16 %v230
    %v1654 = vunpack.c.l.b16 %v231
    %v1655 = vunpack.c.h.b16 %v231
    %v1656 = vunpack.c.l.b16 %v232
    %v1657 = vunpack.c.h.b16 %v232
    %v1658 = vunpack.c.l.b16 %v233
    %v1659 = vunpack.c.h.b16 %v233
    %v1660 = vunpack.c.l.b16 %v234
    %v1661 = vunpack.c.h.b16 %v234
    %v1662 = vunpack.c.l.b16 %v235
    %v1663 = vunpack.c.h.b16 %v235
    %v1664 = vunpack.c.l.b16 %v236
    %v1665 = vunpack.c.h.b16 %v236
    %v1666 = vunpack.c.l.b16 %v237
    %v1667 = vunpack.c.h.b16 %v237
    %v1668 = vunpack.c.l.b16 %v238
    %v1669 = vunpack.c.h.b16 %v238
    %v1670 = vunpack.c.l.b16 %v239
    %v1671 = vunpack.c.h.b16 %v239
    %v1672 = vunpack.c.l.b16 %v240
    %v1673 = vunpack.c.h.b16 %v240
    %v1674 = vunpack.c.l.b16 %v241
    %v1675 = vunpack.c.h.b16 %v241
    %v1676 = vunpack.c.l.b16 %v242
    %v1677 = vunpack.c.h.b16 %v242
    %v1678 = vunpack.c.l.b16 %v243
    %v1679 = vunpack.c.h.b16 %v243
    %v1680 = vunpack.c.l.b16 %v244
    %v1681 = vunpack.c.h.b16 %v244
    %v1682 = vunpack.c.l.b16 %v245
    %v1683 = vunpack.c.h.b16 %v245
    %v1684 = vunpack.c.l.b16 %v246
    %v1685 = vunpack.c.h.b16 %v246
    %v1686 = vunpack.c.l.b16 %v247
    %v1687 = vunpack.c.h.b16 %v247
    %v1688 = vunpack.c.l.b16 %v248
    %v1689 = vunpack.c.h.b16 %v248
    %v1690 = vunpack.c.l.b16 %v249
    %v1691 = vunpack.c.h.b16 %v249
    %v1692 = vunpack.c.l.b16 %v250
    %v1693 = vunpack.c.h.b16 %v250
    %v1694 = vunpack.c.l.b16 %v251
    %v1695 = vunpack.c.h.b16 %v251
    %v1696 = vunpack.c.l.b16 %v252
    %v1697 = vunpack.c.h.b16 %v252
    %v1698 = vunpack.c.l.b16 %v253
    %v1699 = vunpack.c.h.b16 %v253
    %v1700 = vunpack.c.l.b16 %v254
    %v1701 = vunpack.c.h.b16 %v254
    %v1702 = vunpack.c.l.b16 %v255
    %v1703 = vunpack.c.h.b16 %v255
    %v1704 = vunpack.c.l.b16 %v256
    %v1705 = vunpack.c.h.b16 %v256
    %v1706 = vunpack.c.l.b16 %v257
    %v1707 = vunpack.c.h.b16 %v257
    %v1708 = vunpack.c.l.b16 %v258
    %v1709 = vunpack.c.h.b16 %v258
    %v1710 = vunpack.c.l.b16 %v259
    %v1711 = vunpack.c.h.b16 %v259
    %v1712 = vunpack.c.l.b16 %v260
    %v1713 = vunpack.c.h.b16 %v260
    %v1714 = vunpack.c.l.b16 %v261
    %v1715 = vunpack.c.h.b16 %v261
    %v1716 = vunpack.c.l.b16 %v262
    %v1717 = vunpack.c.h.b16 %v262
    %v1718 = vunpack.c.l.b16 %v263
    %v1719 = vunpack.c.h.b16 %v263
    %v1720 = vunpack.c.l.b16 %v264
    %v1721 = vunpack.c.h.b16 %v264
    %v1722 = vunpack.c.l.b16 %v265
    %v1723 = vunpack.c.h.b16 %v265
    %v1724 = vunpack.c.l.b16 %v266
    %v1725 = vunpack.c.h.b16 %v266
    %v1726 = vunpack.c.l.b16 %v267
    %v1727 = vunpack.c.h.b16 %v267
    %v1728 = vunpack.c.l.b16 %v268
    %v1729 = vunpack.c.h.b16 %v268
    %v1730 = vunpack.c.l.b16 %v269
    %v1731 = vunpack.c.h.b16 %v269
    %v1732 = vunpack.c.l.b16 %v270
    %v1733 = vunpack.c.h.b16 %v270
    %v1734 = vunpack.c.l.b16 %v271
    %v1735 = vunpack.c.h.b16 %v271
    %v1736 = vunpack.c.l.b16 %v272
    %v1737 = vunpack.c.h.b16 %v272
    %v1738 = vunpack.c.l.b16 %v273
    %v1739 = vunpack.c.h.b16 %v273
    %v1740 = vunpack.c.l.b16 %v274
    %v1741 = vunpack.c.h.b16 %v274
    %v1742 = vunpack.c.l.b16 %v275
    %v1743 = vunpack.c.h.b16 %v275
    %v1744 = vunpack.c.l.b16 %v276
    %v1745 = vunpack.c.h.b16 %v276
    %v1746 = vunpack.c.l.b16 %v277
    %v1747 = vunpack.c.h.b16 %v277
    %v1748 = vunpack.c.l.b16 %v278
    %v1749 = vunpack.c.h.b16 %v278
    %v1750 = vunpack.c.l.b16 %v279
    %v1751 = vunpack.c.h.b16 %v279
    %v1752 = vunpack.c.l.b16 %v280
    %v1753 = vunpack.c.h.b16 %v280
    %v1754 = vunpack.c.l.b16 %v281
    %v1755 = vunpack.c.h.b16 %v281
    %v1756 = vunpack.c.l.b16 %v282
    %v1757 = vunpack.c.h.b16 %v282
    %v1758 = vunpack.c.l.b16 %v283
    %v1759 = vunpack.c.h.b16 %v283
    %v1760 = vunpack.c.l.b16 %v284
    %v1761 = vunpack.c.h.b16 %v284
    %v1762 = vunpack.c.l.b16 %v285
    %v1763 = vunpack.c.h.b16 %v285
    %v1764 = vunpack.c.l.b16 %v286
    %v1765 = vunpack.c.h.b16 %v286
    %v1766 = vunpack.c.l.b16 %v287
    %v1767 = vunpack.c.h.b16 %v287
    %v1768 = vunpack.c.l.b16 %v288
    %v1769 = vunpack.c.h.b16 %v288
    %v1770 = vunpack.c.l.b16 %v289
    %v1771 = vunpack.c.h.b16 %v289
    %v1772 = vunpack.c.l.b16 %v290
    %v1773 = vunpack.c.h.b16 %v290
    %v1774 = vunpack.c.l.b16 %v291
    %v1775 = vunpack.c.h.b16 %v291
    %v1776 = vunpack.c.l.b16 %v292
    %v1777 = vunpack.c.h.b16 %v292
    %v1778 = vunpack.c.l.b16 %v293
    %v1779 = vunpack.c.h.b16 %v293
    %v1780 = vunpack.c.l.b16 %v294
    %v1781 = vunpack.c.h.b16 %v294
    %v1782 = vunpack.c.l.b16 %v295
    %v1783 = vunpack.c.h.b16 %v295
    %v1784 = vunpack.c.l.b16 %v296
    %v1785 = vunpack.c.h.b16 %v296
    %v1786 = vunpack.c.l.b16 %v297
    %v1787 = vunpack.c.h.b16 %v297
    %v1788 = vunpack.c.l.b16 %v298
    %v1789 = vunpack.c.h.b16 %v298
    %v1790 = vunpack.c.l.b16 %v299
    %v1791 = vunpack.c.h.b16 %v299
    %v1792 = vunpack.c.l.b16 %v300
    %v1793 = vunpack.c.h.b16 %v300
    %v1794 = vunpack.c.l.b16 %v301
    %v1795 = vunpack.c.h.b16 %v301
    %v1796 = vunpack.c.l.b16 %v302
    %v1797 = vunpack.c.h.b16 %v302
    %v1798 = vunpack.c.l.b16 %v303
    %v1799 = vunpack.c.h.b16 %v303
    %v1800 = vunpack.c.l.b16 %v304
    %v1801 = vunpack.c.h.b16 %v304
    %v1802 = vunpack.c.l.b16 %v305
    %v1803 = vunpack.c.h.b16 %v305
    %v1804 = vunpack.c.l.b16 %v306
    %v1805 = vunpack.c.h.b16 %v306
    %v1806 = vunpack.c.l.b16 %v307
    %v1807 = vunpack.c.h.b16 %v307
    %v1808 = vunpack.c.l.b16 %v308
    %v1809 = vunpack.c.h.b16 %v308
    %v1810 = vunpack.c.l.b16 %v309
    %v1811 = vunpack.c.h.b16 %v309
    %v1812 = vunpack.c.l.b16 %v310
    %v1813 = vunpack.c.h.b16 %v310
    %v1814 = vunpack.c.l.b16 %v311
    %v1815 = vunpack.c.h.b16 %v311
    %v1816 = vunpack.c.l.b16 %v312
    %v1817 = vunpack.c.h.b16 %v312
    %v1818 = vunpack.c.l.b16 %v313
    %v1819 = vunpack.c.h.b16 %v313
    %v1820 = vunpack.c.l.b16 %v314
    %v1821 = vunpack.c.h.b16 %v314
    %v1822 = vunpack.c.l.b16 %v315
    %v1823 = vunpack.c.h.b16 %v315
    %v1824 = vunpack.c.l.b16 %v316
    %v1825 = vunpack.c.h.b16 %v316
    %v1826 = vunpack.c.l.b16 %v317
    %v1827 = vunpack.c.h.b16 %v317
    %v1828 = vunpack.c.l.b16 %v318
    %v1829 = vunpack.c.h.b16 %v318
    %v1830 = vunpack.c.l.b16 %v319
    %v1831 = vunpack.c.h.b16 %v319
    %v1832 = vunpack.c.l.b16 %v320
    %v1833 = vunpack.c.h.b16 %v320
    %v1834 = vunpack.c.l.b16 %v321
    %v1835 = vunpack.c.h.b16 %v321
    %v1836 = vunpack.c.l.b16 %v322
    %v1837 = vunpack.c.h.b16 %v322
    %v1838 = vunpack.c.l.b16 %v323
    %v1839 = vunpack.c.h.b16 %v323
    %v1840 = vunpack.c.l.b16 %v324
    %v1841 = vunpack.c.h.b16 %v324
    %v1842 = vunpack.c.l.b16 %v325
    %v1843 = vunpack.c.h.b16 %v325
    %v1844 = vunpack.c.l.b16 %v326
    %v1845 = vunpack.c.h.b16 %v326
    %v1846 = vunpack.c.l.b16 %v327
    %v1847 = vunpack.c.h.b16 %v327
    %v1848 = vunpack.c.l.b16 %v328
    %v1849 = vunpack.c.h.b16 %v328
    %v1850 = vunpack.c.l.b16 %v329
    %v1851 = vunpack.c.h.b16 %v329
    %v1852 = vunpack.c.l.b16 %v330
    %v1853 = vunpack.c.h.b16 %v330
    %v1854 = vunpack.c.l.b16 %v331
    %v1855 = vunpack.c.h.b16 %v331
    %v1856 = vunpack.c.l.b16 %v332
    %v1857 = vunpack.c.h.b16 %v332
    %v1858 = vunpack.c.l.b16 %v333
    %v1859 = vunpack.c.h.b16 %v333
    %v1860 = vunpack.c.l.b16 %v334
    %v1861 = vunpack.c.h.b16 %v334
    %v1862 = vunpack.c.l.b16 %v335
    %v1863 = vunpack.c.h.b16 %v335
    %v1864 = vunpack.c.l.b16 %v336
    %v1865 = vunpack.c.h.b16 %v336
    %v1866 = vunpack.c.l.b16 %v337
    %v1867 = vunpack.c.h.b16 %v337
    %v1868 = vunpack.c.l.b16 %v338
    %v1869 = vunpack.c.h.b16 %v338
    %v1870 = vunpack.c.l.b16 %v339
    %v1871 = vunpack.c.h.b16 %v339
    %v1872 = vunpack.c.l.b16 %v340
    %v1873 = vunpack.c.h.b16 %v340
    %v1874 = vunpack.c.l.b16 %v341
    %v1875 = vunpack.c.h.b16 %v341
    %v1876 = vunpack.c.l.b16 %v342
    %v1877 = vunpack.c.h.b16 %v342
    %v1878 = vunpack.c.l.b16 %v343
    %v1879 = vunpack.c.h.b16 %v343
    %v1880 = vunpack.c.l.b16 %v344
    %v1881 = vunpack.c.h.b16 %v344
    %v1882 = vunpack.c.l.b16 %v345
    %v1883 = vunpack.c.h.b16 %v345
    %v1884 = vunpack.c.l.b16 %v346
    %v1885 = vunpack.c.h.b16 %v346
    %v1886 = vunpack.c.l.b16 %v347
    %v1887 = vunpack.c.h.b16 %v347
    %v1888 = vunpack.c.l.b16 %v348
    %v1889 = vunpack.c.h.b16 %v348
    %v1890 = vunpack.c.l.b16 %v349
    %v1891 = vunpack.c.h.b16 %v349
    %v1892 = vunpack.c.l.b16 %v350
    %v1893 = vunpack.c.h.b16 %v350
    %v1894 = vunpack.c.l.b16 %v351
    %v1895 = vunpack.c.h.b16 %v351
    %v1896 = vunpack.c.l.b16 %v352
    %v1897 = vunpack.c.h.b16 %v352
    %v1898 = vunpack.c.l.b16 %v353
    %v1899 = vunpack.c.h.b16 %v353
    %v1900 = vunpack.c.l.b16 %v354
    %v1901 = vunpack.c.h.b16 %v354
    %v1902 = vunpack.c.l.b16 %v355
    %v1903 = vunpack.c.h.b16 %v355
    %v1904 = vunpack.c.l.b16 %v356
    %v1905 = vunpack.c.h.b16 %v356
    %v1906 = vunpack.c.l.b16 %v357
    %v1907 = vunpack.c.h.b16 %v357
    %v1908 = vunpack.c.l.b16 %v358
    %v1909 = vunpack.c.h.b16 %v358
    %v1910 = vunpack.c.l.b16 %v359
    %v1911 = vunpack.c.h.b16 %v359
    %v1912 = vunpack.c.l.b16 %v360
    %v1913 = vunpack.c.h.b16 %v360
    %v1914 = vunpack.c.l.b16 %v361
    %v1915 = vunpack.c.h.b16 %v361
    %v1916 = vunpack.c.l.b16 %v362
    %v1917 = vunpack.c.h.b16 %v362
    %v1918 = vunpack.c.l.b16 %v363
    %v1919 = vunpack.c.h.b16 %v363
    %v1920 = vunpack.c.l.b16 %v364
    %v1921 = vunpack.c.h.b16 %v364
    %v1922 = vunpack.c.l.b16 %v365
    %v1923 = vunpack.c.h.b16 %v365
    %v1924 = vunpack.c.l.b16 %v366
    %v1925 = vunpack.c.h.b16 %v366
    %v1926 = vunpack.c.l.b16 %v367
    %v1927 = vunpack.c.h.b16 %v367
    %v1928 = vunpack.c.l.b16 %v368
    %v1929 = vunpack.c.h.b16 %v368
    %v1930 = vunpack.c.l.b16 %v369
    %v1931 = vunpack.c.h.b16 %v369
    %v1932 = vunpack.c.l.b16 %v370
    %v1933 = vunpack.c.h.b16 %v370
    %v1934 = vunpack.c.l.b16 %v371
    %v1935 = vunpack.c.h.b16 %v371
    %v1936 = vunpack.c.l.b16 %v372
    %v1937 = vunpack.c.h.b16 %v372
    %v1938 = vunpack.c.l.b16 %v373
    %v1939 = vunpack.c.h.b16 %v373
    %v1940 = vunpack.c.l.b16 %v374
    %v1941 = vunpack.c.h.b16 %v374
    %v1942 = vunpack.c.l.b16 %v375
    %v1943 = vunpack.c.h.b16 %v375
    %v1944 = vunpack.c.l.b16 %v376
    %v1945 = vunpack.c.h.b16 %v376
    %v1946 = vunpack.c.l.b16 %v377
    %v1947 = vunpack.c.h.b16 %v377
    %v1948 = vunpack.c.l.b16 %v378
    %v1949 = vunpack.c.h.b16 %v378
    %v1950 = vunpack.c.l.b16 %v379
    %v1951 = vunpack.c.h.b16 %v379
    %v1952 = vunpack.c.l.b16 %v380
    %v1953 = vunpack.c.h.b16 %v380
    %v1954 = vunpack.c.l.b16 %v381
    %v1955 = vunpack.c.h.b16 %v381
    %v1956 = vunpack.c.l.b16 %v382
    %v1957 = vunpack.c.h.b16 %v382
    %v1958 = vunpack.c.l.b16 %v383
    %v1959 = vunpack.c.h.b16 %v383
    %v1960 = vunpack.c.l.b16 %v384
    %v1961 = vunpack.c.h.b16 %v384
    %v1962 = vunpack.c.l.b16 %v385
    %v1963 = vunpack.c.h.b16 %v385
    %v1964 = vunpack.c.l.b16 %v386
    %v1965 = vunpack.c.h.b16 %v386
    %v1966 = vunpack.c.l.b16 %v387
    %v1967 = vunpack.c.h.b16 %v387
    %v1968 = vunpack.c.l.b16 %v388
    %v1969 = vunpack.c.h.b16 %v388
    %v1970 = vunpack.c.l.b16 %v389
    %v1971 = vunpack.c.h.b16 %v389
    %v1972 = vunpack.c.l.b16 %v390
    %v1973 = vunpack.c.h.b16 %v390
    %v1974 = vunpack.c.l.b16 %v391
    %v1975 = vunpack.c.h.b16 %v391
    %v1976 = vunpack.c.l.b16 %v392
    %v1977 = vunpack.c.h.b16 %v392
    %v1978 = vunpack.c.l.b16 %v393
    %v1979 = vunpack.c.h.b16 %v393
    %v1980 = vunpack.c.l.b16 %v394
    %v1981 = vunpack.c.h.b16 %v394
    %v1982 = vunpack.c.l.b16 %v395
    %v1983 = vunpack.c.h.b16 %v395
    %v1984 = vunpack.c.l.b16 %v396
    %v1985 = vunpack.c.h.b16 %v396
    %v1986 = vunpack.c.l.b16 %v397
    %v1987 = vunpack.c.h.b16 %v397
    %v1988 = vunpack.c.l.b16 %v398
    %v1989 = vunpack.c.h.b16 %v398
    %v1990 = vunpack.c.l.b16 %v399
    %v1991 = vunpack.c.h.b16 %v399
    %v1992 = vunpack.c.l.b16 %v400
    %v1993 = vunpack.c.h.b16 %v400
    %v1994 = vunpack.c.l.b16 %v401
    %v1995 = vunpack.c.h.b16 %v401
    %v1996 = vunpack.c.l.b16 %v402
    %v1997 = vunpack.c.h.b16 %v402
    %v1998 = vunpack.c.l.b16 %v403
    %v1999 = vunpack.c.h.b16 %v403
    %v2000 = vunpack.c.l.b16 %v404
    %v2001 = vunpack.c.h.b16 %v404
    %v2002 = vunpack.c.l.b16 %v405
    %v2003 = vunpack.c.h.b16 %v405
    %v2004 = vunpack.c.l.b16 %v406
    %v2005 = vunpack.c.h.b16 %v406
    %v2006 = vunpack.c.l.b16 %v407
    %v2007 = vunpack.c.h.b16 %v407
    %v2008 = vunpack.c.l.b16 %v408
    %v2009 = vunpack.c.h.b16 %v408
    %v2010 = vunpack.c.l.b16 %v409
    %v2011 = vunpack.c.h.b16 %v409
    %v2012 = vunpack.c.l.b16 %v410
    %v2013 = vunpack.c.h.b16 %v410
    %v2014 = vunpack.c.l.b16 %v411
    %v2015 = vunpack.c.h.b16 %v411
    %v2016 = vunpack.c.l.b16 %v412
    %v2017 = vunpack.c.h.b16 %v412
    %v2018 = vunpack.c.l.b16 %v413
    %v2019 = vunpack.c.h.b16 %v413
    %v2020 = vunpack.c.l.b16 %v414
    %v2021 = vunpack.c.h.b16 %v414
    %v2022 = vunpack.c.l.b16 %v415
    %v2023 = vunpack.c.h.b16 %v415
    %v2024 = vunpack.c.l.b16 %v416
    %v2025 = vunpack.c.h.b16 %v416
    %v2026 = vunpack.c.l.b16 %v417
    %v2027 = vunpack.c.h.b16 %v417
    %v2028 = vunpack.c.l.b16 %v418
    %v2029 = vunpack.c.h.b16 %v418
    %v2030 = vunpack.c.l.b16 %v419
    %v2031 = vunpack.c.h.b16 %v419
    %v2032 = vunpack.c.l.b16 %v420
    %v2033 = vunpack.c.h.b16 %v420
    %v2034 = vunpack.c.l.b16 %v421
    %v2035 = vunpack.c.h.b16 %v421
    %v2036 = vunpack.c.l.b16 %v422
    %v2037 = vunpack.c.h.b16 %v422
    %v2038 = vunpack.c.l.b16 %v423
    %v2039 = vunpack.c.h.b16 %v423
    %v2040 = vunpack.c.l.b16 %v424
    %v2041 = vunpack.c.h.b16 %v424
    %v2042 = vunpack.c.l.b16 %v425
    %v2043 = vunpack.c.h.b16 %v425
    %v2044 = vunpack.c.l.b16 %v426
    %v2045 = vunpack.c.h.b16 %v426
    %v2046 = vunpack.c.l.b16 %v427
    %v2047 = vunpack.c.h.b16 %v427
    %v2048 = vunpack.c.l.b16 %v428
    %v2049 = vunpack.c.h.b16 %v428
    %v2050 = vunpack.c.l.b16 %v429
    %v2051 = vunpack.c.h.b16 %v429
    %v2052 = vunpack.c.l.b16 %v430
    %v2053 = vunpack.c.h.b16 %v430
    %v2054 = vunpack.c.l.b16 %v431
    %v2055 = vunpack.c.h.b16 %v431
    %v2056 = vunpack.c.l.b16 %v432
    %v2057 = vunpack.c.h.b16 %v432
    %v2058 = vunpack.c.l.b16 %v433
    %v2059 = vunpack.c.h.b16 %v433
    %v2060 = vunpack.c.l.b16 %v434
    %v2061 = vunpack.c.h.b16 %v434
    %v2062 = vunpack.c.l.b16 %v435
    %v2063 = vunpack.c.h.b16 %v435
    %v2064 = vunpack.c.l.b16 %v436
    %v2065 = vunpack.c.h.b16 %v436
    %v2066 = vunpack.c.l.b16 %v437
    %v2067 = vunpack.c.h.b16 %v437
    %v2068 = vunpack.c.l.b16 %v438
    %v2069 = vunpack.c.h.b16 %v438
    %v2070 = vunpack.c.l.b16 %v439
    %v2071 = vunpack.c.h.b16 %v439
    %v2072 = vunpack.c.l.b16 %v440
    %v2073 = vunpack.c.h.b16 %v440
    %v2074 = vunpack.c.l.b16 %v441
    %v2075 = vunpack.c.h.b16 %v441
    %v2076 = vunpack.c.l.b16 %v442
    %v2077 = vunpack.c.h.b16 %v442
    %v2078 = vunpack.c.l.b16 %v443
    %v2079 = vunpack.c.h.b16 %v443
    %v2080 = vunpack.c.l.b16 %v444
    %v2081 = vunpack.c.h.b16 %v444
    %v2082 = vunpack.c.l.b16 %v445
    %v2083 = vunpack.c.h.b16 %v445
    %v2084 = vunpack.c.l.b16 %v446
    %v2085 = vunpack.c.h.b16 %v446
    %v2086 = vunpack.c.l.b16 %v447
    %v2087 = vunpack.c.h.b16 %v447
    %v2088 = vunpack.c.l.b16 %v448
    %v2089 = vunpack.c.h.b16 %v448
    %v2090 = vunpack.c.l.b16 %v449
    %v2091 = vunpack.c.h.b16 %v449
    %v2092 = vunpack.c.l.b16 %v450
    %v2093 = vunpack.c.h.b16 %v450
    %v2094 = vunpack.c.l.b16 %v451
    %v2095 = vunpack.c.h.b16 %v451
    %v2096 = vunpack.c.l.b16 %v452
    %v2097 = vunpack.c.h.b16 %v452
    %v2098 = vunpack.c.l.b16 %v453
    %v2099 = vunpack.c.h.b16 %v453
    %v2100 = vunpack.c.l.b16 %v454
    %v2101 = vunpack.c.h.b16 %v454
    %v2102 = vunpack.c.l.b16 %v455
    %v2103 = vunpack.c.h.b16 %v455
    %v2104 = vunpack.c.l.b16 %v456
    %v2105 = vunpack.c.h.b16 %v456
    %v2106 = vunpack.c.l.b16 %v457
    %v2107 = vunpack.c.h.b16 %v457
    %v2108 = vunpack.c.l.b16 %v458
    %v2109 = vunpack.c.h.b16 %v458
    %v2110 = vunpack.c.l.b16 %v459
    %v2111 = vunpack.c.h.b16 %v459
    %v2112 = vunpack.c.l.b16 %v460
    %v2113 = vunpack.c.h.b16 %v460
    %v2114 = vunpack.c.l.b16 %v461
    %v2115 = vunpack.c.h.b16 %v461
    %v2116 = vunpack.c.l.b16 %v462
    %v2117 = vunpack.c.h.b16 %v462
    %v2118 = vunpack.c.l.b16 %v463
    %v2119 = vunpack.c.h.b16 %v463
    %v2120 = vunpack.c.l.b16 %v464
    %v2121 = vunpack.c.h.b16 %v464
    %v2122 = vunpack.c.l.b16 %v465
    %v2123 = vunpack.c.h.b16 %v465
    %v2124 = vunpack.c.l.b16 %v466
    %v2125 = vunpack.c.h.b16 %v466
    %v2126 = vunpack.c.l.b16 %v467
    %v2127 = vunpack.c.h.b16 %v467
    %v2128 = vunpack.c.l.b16 %v468
    %v2129 = vunpack.c.h.b16 %v468
    %v2130 = vunpack.c.l.b16 %v469
    %v2131 = vunpack.c.h.b16 %v469
    %v2132 = vunpack.c.l.b16 %v470
    %v2133 = vunpack.c.h.b16 %v470
    %v2134 = vunpack.c.l.b16 %v471
    %v2135 = vunpack.c.h.b16 %v471
    %v2136 = vunpack.c.l.b16 %v472
    %v2137 = vunpack.c.h.b16 %v472
    %v2138 = vunpack.c.l.b16 %v473
    %v2139 = vunpack.c.h.b16 %v473
    %v2140 = vunpack.c.l.b16 %v474
    %v2141 = vunpack.c.h.b16 %v474
    %v2142 = vunpack.c.l.b16 %v475
    %v2143 = vunpack.c.h.b16 %v475
    %v2144 = vunpack.c.l.b16 %v476
    %v2145 = vunpack.c.h.b16 %v476
    %v2146 = vunpack.c.l.b16 %v477
    %v2147 = vunpack.c.h.b16 %v477
    %v2148 = vunpack.c.l.b16 %v478
    %v2149 = vunpack.c.h.b16 %v478
    %v2150 = vunpack.c.l.b16 %v479
    %v2151 = vunpack.c.h.b16 %v479
    %v2152 = vunpack.c.l.b16 %v480
    %v2153 = vunpack.c.h.b16 %v480
    %v2154 = vunpack.c.l.b16 %v481
    %v2155 = vunpack.c.h.b16 %v481
    %v2156 = vunpack.c.l.b16 %v482
    %v2157 = vunpack.c.h.b16 %v482
    %v2158 = vunpack.c.l.b16 %v483
    %v2159 = vunpack.c.h.b16 %v483
    %v2160 = vunpack.c.l.b16 %v484
    %v2161 = vunpack.c.h.b16 %v484
    %v2162 = vunpack.c.l.b16 %v485
    %v2163 = vunpack.c.h.b16 %v485
    %v2164 = vunpack.c.l.b16 %v486
    %v2165 = vunpack.c.h.b16 %v486
    %v2166 = vunpack.c.l.b16 %v487
    %v2167 = vunpack.c.h.b16 %v487
    %v2168 = vunpack.c.l.b16 %v488
    %v2169 = vunpack.c.h.b16 %v488
    %v2170 = vunpack.c.l.b16 %v489
    %v2171 = vunpack.c.h.b16 %v489
    %v2172 = vunpack.c.l.b16 %v490
    %v2173 = vunpack.c.h.b16 %v490
    %v2174 = vunpack.c.l.b16 %v491
    %v2175 = vunpack.c.h.b16 %v491
    %v2176 = vunpack.c.l.b16 %v492
    %v2177 = vunpack.c.h.b16 %v492
    %v2178 = vunpack.c.l.b16 %v493
    %v2179 = vunpack.c.h.b16 %v493
    %v2180 = vunpack.c.l.b16 %v494
    %v2181 = vunpack.c.h.b16 %v494
    %v2182 = vunpack.c.l.b16 %v495
    %v2183 = vunpack.c.h.b16 %v495
    %v2184 = vunpack.c.l.b16 %v496
    %v2185 = vunpack.c.h.b16 %v496
    %v2186 = vunpack.c.l.b16 %v497
    %v2187 = vunpack.c.h.b16 %v497
    %v2188 = vunpack.c.l.b16 %v498
    %v2189 = vunpack.c.h.b16 %v498
    %v2190 = vunpack.c.l.b16 %v499
    %v2191 = vunpack.c.h.b16 %v499
    %v2192 = vunpack.c.l.b16 %v500
    %v2193 = vunpack.c.h.b16 %v500
    %v2194 = vunpack.c.l.b16 %v501
    %v2195 = vunpack.c.h.b16 %v501
    %v2196 = vunpack.c.l.b16 %v502
    %v2197 = vunpack.c.h.b16 %v502
    %v2198 = vunpack.c.l.b16 %v503
    %v2199 = vunpack.c.h.b16 %v503
    %v2200 = vunpack.c.l.b16 %v504
    %v2201 = vunpack.c.h.b16 %v504
    %v2202 = vunpack.c.l.b16 %v505
    %v2203 = vunpack.c.h.b16 %v505
    %v2204 = vunpack.c.l.b16 %v506
    %v2205 = vunpack.c.h.b16 %v506
    %v2206 = vunpack.c.l.b16 %v507
    %v2207 = vunpack.c.h.b16 %v507
    %v2208 = vunpack.c.l.b16 %v508
    %v2209 = vunpack.c.h.b16 %v508
    %v2210 = vunpack.c.l.b16 %v509
    %v2211 = vunpack.c.h.b16 %v509
    %v2212 = vunpack.c.l.b16 %v510
    %v2213 = vunpack.c.h.b16 %v510
    %v2214 = vunpack.c.l.b16 %v511
    %v2215 = vunpack.c.h.b16 %v511
    %v2216 = vunpack.c.l.b16 %v512
    %v2217 = vunpack.c.h.b16 %v512
    %v2218 = vunpack.c.l.b16 %v513
    %v2219 = vunpack.c.h.b16 %v513
    %v2220 = vunpack.c.l.b16 %v514
    %v2221 = vunpack.c.h.b16 %v514
    %v2222 = vunpack.c.l.b16 %v515
    %v2223 = vunpack.c.h.b16 %v515
    %v2224 = vunpack.c.l.b16 %v516
    %v2225 = vunpack.c.h.b16 %v516
    %v2226 = vunpack.c.l.b16 %v517
    %v2227 = vunpack.c.h.b16 %v517
    %v2228 = vunpack.c.l.b16 %v518
    %v2229 = vunpack.c.h.b16 %v518
    %v2230 = vunpack.c.l.b16 %v519
    %v2231 = vunpack.c.h.b16 %v519
    %v2232 = vunpack.c.l.b16 %v520
    %v2233 = vunpack.c.h.b16 %v520
    %v2234 = vunpack.c.l.b16 %v521
    %v2235 = vunpack.c.h.b16 %v521
    %v2236 = vunpack.c.l.b16 %v522
    %v2237 = vunpack.c.h.b16 %v522
    %v2238 = vunpack.c.l.b16 %v523
    %v2239 = vunpack.c.h.b16 %v523
    %v2240 = vunpack.c.l.b16 %v524
    %v2241 = vunpack.c.h.b16 %v524
    %v2242 = vunpack.c.l.b16 %v525
    %v2243 = vunpack.c.h.b16 %v525
    %v2244 = vunpack.c.l.b16 %v526
    %v2245 = vunpack.c.h.b16 %v526
    %v2246 = vunpack.c.l.b16 %v527
    %v2247 = vunpack.c.h.b16 %v527
    %v2248 = vunpack.c.l.b16 %v528
    %v2249 = vunpack.c.h.b16 %v528
    %v2250 = vunpack.c.l.b16 %v529
    %v2251 = vunpack.c.h.b16 %v529
    %v2252 = vunpack.c.l.b16 %v530
    %v2253 = vunpack.c.h.b16 %v530
    %v2254 = vunpack.c.l.b16 %v531
    %v2255 = vunpack.c.h.b16 %v531
    %v2256 = vunpack.c.l.b16 %v532
    %v2257 = vunpack.c.h.b16 %v532
    %v2258 = vunpack.c.l.b16 %v533
    %v2259 = vunpack.c.h.b16 %v533
    %v2260 = vunpack.c.l.b16 %v534
    %v2261 = vunpack.c.h.b16 %v534
    %v2262 = vunpack.c.l.b16 %v535
    %v2263 = vunpack.c.h.b16 %v535
    %v2264 = vunpack.c.l.b16 %v536
    %v2265 = vunpack.c.h.b16 %v536
    %v2266 = vunpack.c.l.b16 %v537
    %v2267 = vunpack.c.h.b16 %v537
    %v2268 = vunpack.c.l.b16 %v538
    %v2269 = vunpack.c.h.b16 %v538
    %v2270 = vunpack.c.l.b16 %v539
    %v2271 = vunpack.c.h.b16 %v539
    %v2272 = vunpack.c.l.b16 %v540
    %v2273 = vunpack.c.h.b16 %v540
    %v2274 = vunpack.c.l.b16 %v541
    %v2275 = vunpack.c.h.b16 %v541
    %v2276 = vunpack.c.l.b16 %v542
    %v2277 = vunpack.c.h.b16 %v542
    %v2278 = vunpack.c.l.b16 %v543
    %v2279 = vunpack.c.h.b16 %v543
    %v2280 = vunpack.c.l.b16 %v544
    %v2281 = vunpack.c.h.b16 %v544
    %v2282 = vunpack.c.l.b16 %v545
    %v2283 = vunpack.c.h.b16 %v545
    %v2284 = vunpack.c.l.b16 %v546
    %v2285 = vunpack.c.h.b16 %v546
    %v2286 = vunpack.c.l.b16 %v547
    %v2287 = vunpack.c.h.b16 %v547
    %v2288 = vunpack.c.l.b16 %v548
    %v2289 = vunpack.c.h.b16 %v548
    %v2290 = vunpack.c.l.b16 %v549
    %v2291 = vunpack.c.h.b16 %v549
    %v2292 = vunpack.c.l.b16 %v550
    %v2293 = vunpack.c.h.b16 %v550
    %v2294 = vunpack.c.l.b16 %v551
    %v2295 = vunpack.c.h.b16 %v551
    %v2296 = vunpack.c.l.b16 %v552
    %v2297 = vunpack.c.h.b16 %v552
    %v2298 = vunpack.c.l.b16 %v553
    %v2299 = vunpack.c.h.b16 %v553
    %v2300 = vunpack.c.l.b16 %v554
    %v2301 = vunpack.c.h.b16 %v554
    %v2302 = vunpack.c.l.b16 %v555
    %v2303 = vunpack.c.h.b16 %v555
    %v2304 = vunpack.c.l.b16 %v556
    %v2305 = vunpack.c.h.b16 %v556
    %v2306 = vunpack.c.l.b16 %v557
    %v2307 = vunpack.c.h.b16 %v557
    %v2308 = vunpack.c.l.b16 %v558
    %v2309 = vunpack.c.h.b16 %v558
    %v2310 = vunpack.c.l.b16 %v559
    %v2311 = vunpack.c.h.b16 %v559
    %v2312 = vunpack.c.l.b16 %v560
    %v2313 = vunpack.c.h.b16 %v560
    %v2314 = vunpack.c.l.b16 %v561
    %v2315 = vunpack.c.h.b16 %v561
    %v2316 = vunpack.c.l.b16 %v562
    %v2317 = vunpack.c.h.b16 %v562
    %v2318 = vunpack.c.l.b16 %v563
    %v2319 = vunpack.c.h.b16 %v563
    %v2320 = vunpack.c.l.b16 %v564
    %v2321 = vunpack.c.h.b16 %v564
    %v2322 = vunpack.c.l.b16 %v565
    %v2323 = vunpack.c.h.b16 %v565
    %v2324 = vunpack.c.l.b16 %v566
    %v2325 = vunpack.c.h.b16 %v566
    %v2326 = vunpack.c.l.b16 %v567
    %v2327 = vunpack.c.h.b16 %v567
    %v2328 = vunpack.c.l.b16 %v568
    %v2329 = vunpack.c.h.b16 %v568
    %v2330 = vunpack.c.l.b16 %v569
    %v2331 = vunpack.c.h.b16 %v569
    %v2332 = vunpack.c.l.b16 %v570
    %v2333 = vunpack.c.h.b16 %v570
    %v2334 = vunpack.c.l.b16 %v571
    %v2335 = vunpack.c.h.b16 %v571
    %v2336 = vunpack.c.l.b16 %v572
    %v2337 = vunpack.c.h.b16 %v572
    %v2338 = vunpack.c.l.b16 %v573
    %v2339 = vunpack.c.h.b16 %v573
    %v2340 = vunpack.c.l.b16 %v574
    %v2341 = vunpack.c.h.b16 %v574
    %v2342 = vunpack.c.l.b16 %v575
    %v2343 = vunpack.c.h.b16 %v575
    %v2344 = vunpack.c.l.b16 %v576
    %v2345 = vunpack.c.h.b16 %v576
    %v2346 = vunpack.c.l.b16 %v577
    %v2347 = vunpack.c.h.b16 %v577
    %v2348 = vunpack.c.l.b16 %v578
    %v2349 = vunpack.c.h.b16 %v578
    %v2350 = vunpack.c.l.b16 %v579
    %v2351 = vunpack.c.h.b16 %v579
    %v2352 = vunpack.c.l.b16 %v580
    %v2353 = vunpack.c.h.b16 %v580
    %v2354 = vunpack.c.l.b16 %v581
    %v2355 = vunpack.c.h.b16 %v581
    %v2356 = vunpack.c.l.b16 %v582
    %v2357 = vunpack.c.h.b16 %v582
    %v2358 = vunpack.c.l.b16 %v583
    %v2359 = vunpack.c.h.b16 %v583
    %v2360 = vunpack.c.l.b16 %v584
    %v2361 = vunpack.c.h.b16 %v584
    %v2362 = vunpack.c.l.b16 %v585
    %v2363 = vunpack.c.h.b16 %v585
    %v2364 = vunpack.c.l.b16 %v586
    %v2365 = vunpack.c.h.b16 %v586
    %v2366 = vunpack.c.l.b16 %v587
    %v2367 = vunpack.c.h.b16 %v587
    %v2368 = vunpack.c.l.b16 %v588
    %v2369 = vunpack.c.h.b16 %v588
    %v2370 = vunpack.c.l.b16 %v589
    %v2371 = vunpack.c.h.b16 %v589
    %v2372 = vunpack.c.l.b16 %v590
    %v2373 = vunpack.c.h.b16 %v590
    %v2374 = vunpack.c.l.b16 %v591
    %v2375 = vunpack.c.h.b16 %v591
    %v2376 = vunpack.c.l.b16 %v592
    %v2377 = vunpack.c.h.b16 %v592
    %v2378 = vunpack.c.l.b16 %v593
    %v2379 = vunpack.c.h.b16 %v593
    %v2380 = vunpack.c.l.b16 %v594
    %v2381 = vunpack.c.h.b16 %v594
    %v2382 = vunpack.c.l.b16 %v595
    %v2383 = vunpack.c.h.b16 %v595
    %v2384 = vunpack.c.l.b16 %v596
    %v2385 = vunpack.c.h.b16 %v596
    %v2386 = vunpack.c.l.b16 %v597
    %v2387 = vunpack.c.h.b16 %v597
    %v2388 = vunpack.c.l.b16 %v598
    %v2389 = vunpack.c.h.b16 %v598
    %v2390 = vunpack.c.l.b16 %v599
    %v2391 = vunpack.c.h.b16 %v599
    %v2392 = vunpack.c.l.b16 %v600
    %v2393 = vunpack.c.h.b16 %v600
    %v2394 = vunpack.c.l.b16 %v601
    %v2395 = vunpack.c.h.b16 %v601
    %v2396 = vunpack.c.l.b16 %v602
    %v2397 = vunpack.c.h.b16 %v602
    %v2398 = vunpack.c.l.b16 %v603
    %v2399 = vunpack.c.h.b16 %v603
    %v2400 = vunpack.c.l.b16 %v604
    %v2401 = vunpack.c.h.b16 %v604
    %v2402 = vunpack.c.l.b16 %v605
    %v2403 = vunpack.c.h.b16 %v605
    %v2404 = vunpack.c.l.b16 %v606
    %v2405 = vunpack.c.h.b16 %v606
    %v2406 = vunpack.c.l.b16 %v607
    %v2407 = vunpack.c.h.b16 %v607
    %v2408 = vunpack.c.l.b16 %v608
    %v2409 = vunpack.c.h.b16 %v608
    %v2410 = vunpack.c.l.b16 %v609
    %v2411 = vunpack.c.h.b16 %v609
    %v2412 = vunpack.c.l.b16 %v610
    %v2413 = vunpack.c.h.b16 %v610
    %v2414 = vunpack.c.l.b16 %v611
    %v2415 = vunpack.c.h.b16 %v611
    %v2416 = vunpack.c.l.b16 %v612
    %v2417 = vunpack.c.h.b16 %v612
    %v2418 = vunpack.c.l.b16 %v613
    %v2419 = vunpack.c.h.b16 %v613
    %v2420 = vunpack.c.l.b16 %v614
    %v2421 = vunpack.c.h.b16 %v614
    %v2422 = vunpack.c.l.b16 %v615
    %v2423 = vunpack.c.h.b16 %v615
    %v2424 = vunpack.c.l.b16 %v616
    %v2425 = vunpack.c.h.b16 %v616
    %v2426 = vunpack.c.l.b16 %v617
    %v2427 = vunpack.c.h.b16 %v617
    %v2428 = vunpack.c.l.b16 %v618
    %v2429 = vunpack.c.h.b16 %v618
    %v2430 = vunpack.c.l.b16 %v619
    %v2431 = vunpack.c.h.b16 %v619
    %v2432 = vunpack.c.l.b16 %v620
    %v2433 = vunpack.c.h.b16 %v620
    %v2434 = vunpack.c.l.b16 %v621
    %v2435 = vunpack.c.h.b16 %v621
    %v2436 = vunpack.c.l.b16 %v622
    %v2437 = vunpack.c.h.b16 %v622
    %v2438 = vunpack.c.l.b16 %v623
    %v2439 = vunpack.c.h.b16 %v623
    %v2440 = vunpack.c.l.b16 %v624
    %v2441 = vunpack.c.h.b16 %v624
    %v2442 = vunpack.c.l.b16 %v625
    %v2443 = vunpack.c.h.b16 %v625
    %v2444 = vunpack.c.l.b16 %v626
    %v2445 = vunpack.c.h.b16 %v626
    %v2446 = vunpack.c.l.b16 %v627
    %v2447 = vunpack.c.h.b16 %v627
    %v2448 = vunpack.c.l.b16 %v628
    %v2449 = vunpack.c.h.b16 %v628
    %v2450 = vunpack.c.l.b16 %v629
    %v2451 = vunpack.c.h.b16 %v629
    %v2452 = vunpack.c.l.b16 %v630
    %v2453 = vunpack.c.h.b16 %v630
    %v2454 = vunpack.c.l.b16 %v631
    %v2455 = vunpack.c.h.b16 %v631
    %v2456 = vunpack.c.l.b16 %v632
    %v2457 = vunpack.c.h.b16 %v632
    %v2458 = vunpack.c.l.b16 %v633
    %v2459 = vunpack.c.h.b16 %v633
    %v2460 = vunpack.c.l.b16 %v634
    %v2461 = vunpack.c.h.b16 %v634
    %v2462 = vunpack.c.l.b16 %v635
    %v2463 = vunpack.c.h.b16 %v635
    %v2464 = vunpack.c.l.b16 %v636
    %v2465 = vunpack.c.h.b16 %v636
    %v2466 = vunpack.c.l.b16 %v637
    %v2467 = vunpack.c.h.b16 %v637
    %v2468 = vunpack.c.l.b16 %v638
    %v2469 = vunpack.c.h.b16 %v638
    %v2470 = vunpack.c.l.b16 %v639
    %v2471 = vunpack.c.h.b16 %v639
    %v2472 = vunpack.c.l.b16 %v640
    %v2473 = vunpack.c.h.b16 %v640
    %v2474 = vunpack.c.l.b16 %v641
    %v2475 = vunpack.c.h.b16 %v641
    %v2476 = vunpack.c.l.b16 %v642
    %v2477 = vunpack.c.h.b16 %v642
    %v2478 = vunpack.c.l.b16 %v643
    %v2479 = vunpack.c.h.b16 %v643
    %v2480 = vunpack.c.l.b16 %v644
    %v2481 = vunpack.c.h.b16 %v644
    %v2482 = vunpack.c.l.b16 %v645
    %v2483 = vunpack.c.h.b16 %v645
    %v2484 = vunpack.c.l.b16 %v646
    %v2485 = vunpack.c.h.b16 %v646
    %v2486 = vunpack.c.l.b16 %v647
    %v2487 = vunpack.c.h.b16 %v647
    %v2488 = vunpack.c.l.b16 %v648
    %v2489 = vunpack.c.h.b16 %v648
    %v2490 = vunpack.c.l.b16 %v649
    %v2491 = vunpack.c.h.b16 %v649
    %v2492 = vunpack.c.l.b16 %v650
    %v2493 = vunpack.c.h.b16 %v650
    %v2494 = vunpack.c.l.b16 %v651
    %v2495 = vunpack.c.h.b16 %v651
    %v2496 = vunpack.c.l.b16 %v652
    %v2497 = vunpack.c.h.b16 %v652
    %v2498 = vunpack.c.l.b16 %v653
    %v2499 = vunpack.c.h.b16 %v653
    %v2500 = vunpack.c.l.b16 %v654
    %v2501 = vunpack.c.h.b16 %v654
    %v2502 = vunpack.c.l.b16 %v655
    %v2503 = vunpack.c.h.b16 %v655
    %v2504 = vunpack.c.l.b16 %v656
    %v2505 = vunpack.c.h.b16 %v656
    %v2506 = vunpack.c.l.b16 %v657
    %v2507 = vunpack.c.h.b16 %v657
    %v2508 = vunpack.c.l.b16 %v658
    %v2509 = vunpack.c.h.b16 %v658
    %v2510 = vunpack.c.l.b16 %v659
    %v2511 = vunpack.c.h.b16 %v659
    %v2512 = vunpack.c.l.b16 %v660
    %v2513 = vunpack.c.h.b16 %v660
    %v2514 = vunpack.c.l.b16 %v661
    %v2515 = vunpack.c.h.b16 %v661
    %v2516 = vunpack.c.l.b16 %v662
    %v2517 = vunpack.c.h.b16 %v662
    %v2518 = vunpack.c.l.b16 %v663
    %v2519 = vunpack.c.h.b16 %v663
    %v2520 = vunpack.c.l.b16 %v664
    %v2521 = vunpack.c.h.b16 %v664
    %v2522 = vunpack.c.l.b16 %v665
    %v2523 = vunpack.c.h.b16 %v665
    %v2524 = vunpack.c.l.b16 %v666
    %v2525 = vunpack.c.h.b16 %v666
    %v2526 = vunpack.c.l.b16 %v667
    %v2527 = vunpack.c.h.b16 %v667
    %v2528 = vunpack.c.l.b16 %v668
    %v2529 = vunpack.c.h.b16 %v668
    %v2530 = vunpack.c.l.b16 %v669
    %v2531 = vunpack.c.h.b16 %v669
    %v2532 = vunpack.c.l.b16 %v670
    %v2533 = vunpack.c.h.b16 %v670
    %v2534 = vunpack.c.l.b16 %v671
    %v2535 = vunpack.c.h.b16 %v671
    %v2536 = vunpack.c.l.b16 %v672
    %v2537 = vunpack.c.h.b16 %v672
    %v2538 = vunpack.c.l.b16 %v673
    %v2539 = vunpack.c.h.b16 %v673
    %v2540 = vunpack.c.l.b16 %v674
    %v2541 = vunpack.c.h.b16 %v674
    %v2542 = vunpack.c.l.b16 %v675
    %v2543 = vunpack.c.h.b16 %v675
    %v2544 = vunpack.c.l.b16 %v676
    %v2545 = vunpack.c.h.b16 %v676
    %v2546 = vunpack.c.l.b16 %v677
    %v2547 = vunpack.c.h.b16 %v677
    %v2548 = vunpack.c.l.b16 %v678
    %v2549 = vunpack.c.h.b16 %v678
    %v2550 = vunpack.c.l.b16 %v679
    %v2551 = vunpack.c.h.b16 %v679
    %v2552 = vunpack.c.l.b16 %v680
    %v2553 = vunpack.c.h.b16 %v680
    %v2554 = vunpack.c.l.b16 %v681
    %v2555 = vunpack.c.h.b16 %v681
    %v2556 = vunpack.c.l.b16 %v682
    %v2557 = vunpack.c.h.b16 %v682
    %v2558 = vunpack.c.l.b16 %v683
    %v2559 = vunpack.c.h.b16 %v683
    %v2560 = vunpack.c.l.b16 %v684
    %v2561 = vunpack.c.h.b16 %v684
    %v2562 = vunpack.c.l.b16 %v685
    %v2563 = vunpack.c.h.b16 %v685
    %v2564 = vunpack.c.l.b16 %v686
    %v2565 = vunpack.c.h.b16 %v686
    %v2566 = vunpack.c.l.b16 %v687
    %v2567 = vunpack.c.h.b16 %v687
    %v2568 = vunpack.c.l.b16 %v688
    %v2569 = vunpack.c.h.b16 %v688
    %v2570 = vunpack.c.l.b16 %v689
    %v2571 = vunpack.c.h.b16 %v689
    %v2572 = vunpack.c.l.b16 %v690
    %v2573 = vunpack.c.h.b16 %v690
    %v2574 = vunpack.c.l.b16 %v691
    %v2575 = vunpack.c.h.b16 %v691
    %v2576 = vunpack.c.l.b16 %v692
    %v2577 = vunpack.c.h.b16 %v692
    %v2578 = vunpack.c.l.b16 %v693
    %v2579 = vunpack.c.h.b16 %v693
    %v2580 = vunpack.c.l.b16 %v694
    %v2581 = vunpack.c.h.b16 %v694
    %v2582 = vunpack.c.l.b16 %v695
    %v2583 = vunpack.c.h.b16 %v695
    %v2584 = vunpack.c.l.b16 %v696
    %v2585 = vunpack.c.h.b16 %v696
    %v2586 = vunpack.c.l.b16 %v697
    %v2587 = vunpack.c.h.b16 %v697
    %v2588 = vunpack.c.l.b16 %v698
    %v2589 = vunpack.c.h.b16 %v698
    %v2590 = vunpack.c.l.b16 %v699
    %v2591 = vunpack.c.h.b16 %v699
    %v2592 = vunpack.c.l.b16 %v700
    %v2593 = vunpack.c.h.b16 %v700
    %v2594 = vunpack.c.l.b16 %v701
    %v2595 = vunpack.c.h.b16 %v701
    %v2596 = vunpack.c.l.b16 %v702
    %v2597 = vunpack.c.h.b16 %v702
    %v2598 = vunpack.c.l.b16 %v703
    %v2599 = vunpack.c.h.b16 %v703
    %v2600 = vunpack.c.l.b16 %v704
    %v2601 = vunpack.c.h.b16 %v704
    %v2602 = vunpack.c.l.b16 %v705
    %v2603 = vunpack.c.h.b16 %v705
    %v2604 = vunpack.c.l.b16 %v706
    %v2605 = vunpack.c.h.b16 %v706
    %v2606 = vunpack.c.l.b16 %v707
    %v2607 = vunpack.c.h.b16 %v707
    %v2608 = vunpack.c.l.b16 %v708
    %v2609 = vunpack.c.h.b16 %v708
    %v2610 = vunpack.c.l.b16 %v709
    %v2611 = vunpack.c.h.b16 %v709
    %v2612 = vunpack.c.l.b16 %v710
    %v2613 = vunpack.c.h.b16 %v710
    %v2614 = vunpack.c.l.b16 %v711
    %v2615 = vunpack.c.h.b16 %v711
    %v2616 = vunpack.c.l.b16 %v712
    %v2617 = vunpack.c.h.b16 %v712
    %v2618 = vunpack.c.l.b16 %v713
    %v2619 = vunpack.c.h.b16 %v713
    %v2620 = vunpack.c.l.b16 %v714
    %v2621 = vunpack.c.h.b16 %v714
    %v2622 = vunpack.c.l.b16 %v715
    %v2623 = vunpack.c.h.b16 %v715
    %v2624 = vunpack.c.l.b16 %v716
    %v2625 = vunpack.c.h.b16 %v716
    %v2626 = vunpack.c.l.b16 %v717
    %v2627 = vunpack.c.h.b16 %v717
    %v2628 = vunpack.c.l.b16 %v718
    %v2629 = vunpack.c.h.b16 %v718
    %v2630 = vunpack.c.l.b16 %v719
    %v2631 = vunpack.c.h.b16 %v719
    %v2632 = vunpack.c.l.b16 %v720
    %v2633 = vunpack.c.h.b16 %v720
    %v2634 = vpack.c.b16 %v1422, %v1418
    %v2635 = vpack.c.b16 %v1423, %v1419
    %v2636 = vpack.c.b16 %v1424, %v1420
    %v2637 = vpack.c.b16 %v1425, %v1421
    %v2638 = vpack.c.b16 %v1430, %v1426
    %v2639 = vpack.c.b16 %v1431, %v1427
    %v2640 = vpack.c.b16 %v1432, %v1428
    %v2641 = vpack.c.b16 %v1433, %v1429
    %v2642 = vpack.c.b16 %v1438, %v1434
    %v2643 = vpack.c.b16 %v1439, %v1435
    %v2644 = vpack.c.b16 %v1440, %v1436
    %v2645 = vpack.c.b16 %v1441, %v1437
    %v2646 = vpack.c.b16 %v1446, %v1442
    %v2647 = vpack.c.b16 %v1447, %v1443
    %v2648 = vpack.c.b16 %v1448, %v1444
    %v2649 = vpack.c.b16 %v1449, %v1445
    %v2650 = vpack.c.b16 %v1454, %v1450
    %v2651 = vpack.c.b16 %v1455, %v1451
    %v2652 = vpack.c.b16 %v1456, %v1452
    %v2653 = vpack.c.b16 %v1457, %v1453
    %v2654 = vpack.c.b16 %v1462, %v1458
    %v2655 = vpack.c.b16 %v1463, %v1459
    %v2656 = vpack.c.b16 %v1464, %v1460
    %v2657 = vpack.c.b16 %v1465, %v1461
    %v2658 = vpack.c.b16 %v1470, %v1466
    %v2659 = vpack.c.b16 %v1471, %v1467
    %v2660 = vpack.c.b16 %v1472, %v1468
    %v2661 = vpack.c.b16 %v1473, %v1469
    %v2662 = vpack.c.b16 %v1478, %v1474
    %v2663 = vpack.c.b16 %v1479, %v1475
    %v2664 = vpack.c.b16 %v1480, %v1476
    %v2665 = vpack.c.b16 %v1481, %v1477
    %v2666 = vpack.c.b16 %v1486, %v1482
    %v2667 = vpack.c.b16 %v1487, %v1483
    %v2668 = vpack.c.b16 %v1488, %v1484
    %v2669 = vpack.c.b16 %v1489, %v1485
    %v2670 = vpack.c.b16 %v1494, %v1490
    %v2671 = vpack.c.b16 %v1495, %v1491
    %v2672 = vpack.c.b16 %v1496, %v1492
    %v2673 = vpack.c.b16 %v1497, %v1493
    %v2674 = vpack.c.b16 %v1502, %v1498
    %v2675 = vpack.c.b16 %v1503, %v1499
    %v2676 = vpack.c.b16 %v1504, %v1500
    %v2677 = vpack.c.b16 %v1505, %v1501
    %v2678 = vpack.c.b16 %v1510, %v1506
    %v2679 = vpack.c.b16 %v1511, %v1507
    %v2680 = vpack.c.b16 %v1512, %v1508
    %v2681 = vpack.c.b16 %v1513, %v1509
    %v2682 = vpack.c.b16 %v1518, %v1514
    %v2683 = vpack.c.b16 %v1519, %v1515
    %v2684 = vpack.c.b16 %v1520, %v1516
    %v2685 = vpack.c.b16 %v1521, %v1517
    %v2686 = vpack.c.b16 %v1526, %v1522
    %v2687 = vpack.c.b16 %v1527, %v1523
    %v2688 = vpack.c.b16 %v1528, %v1524
    %v2689 = vpack.c.b16 %v1529, %v1525
    %v2690 = vpack.c.b16 %v1534, %v1530
    %v2691 = vpack.c.b16 %v1535, %v1531
    %v2692 = vpack.c.b16 %v1536, %v1532
    %v2693 = vpack.c.b16 %v1537, %v1533
    %v2694 = vpack.c.b16 %v1542, %v1538
    %v2695 = vpack.c.b16 %v1543, %v1539
    %v2696 = vpack.c.b16 %v1544, %v1540
    %v2697 = vpack.c.b16 %v1545, %v1541
    %v2698 = vpack.c.b16 %v1550, %v1546
    %v2699 = vpack.c.b16 %v1551, %v1547
    %v2700 = vpack.c.b16 %v1552, %v1548
    %v2701 = vpack.c.b16 %v1553, %v1549
    %v2702 = vpack.c.b16 %v1558, %v1554
    %v2703 = vpack.c.b16 %v1559, %v1555
    %v2704 = vpack.c.b16 %v1560, %v1556
    %v2705 = vpack.c.b16 %v1561, %v1557
    %v2706 = vpack.c.b16 %v1566, %v1562
    %v2707 = vpack.c.b16 %v1567, %v1563
    %v2708 = vpack.c.b16 %v1568, %v1564
    %v2709 = vpack.c.b16 %v1569, %v1565
    %v2710 = vpack.c.b16 %v1574, %v1570
    %v2711 = vpack.c.b16 %v1575, %v1571
    %v2712 = vpack.c.b16 %v1576, %v1572
    %v2713 = vpack.c.b16 %v1577, %v1573
    %v2714 = vpack.c.b16 %v1582, %v1578
    %v2715 = vpack.c.b16 %v1583, %v1579
    %v2716 = vpack.c.b16 %v1584, %v1580
    %v2717 = vpack.c.b16 %v1585, %v1581
    %v2718 = vpack.c.b16 %v1590, %v1586
    %v2719 = vpack.c.b16 %v1591, %v1587
    %v2720 = vpack.c.b16 %v1592, %v1588
    %v2721 = vpack.c.b16 %v1593, %v1589
    %v2722 = vpack.c.b16 %v1598, %v1594
    %v2723 = vpack.c.b16 %v1599, %v1595
    %v2724 = vpack.c.b16 %v1600, %v1596
    %v2725 = vpack.c.b16 %v1601, %v1597
    %v2726 = vpack.c.b16 %v1606, %v1602
    %v2727 = vpack.c.b16 %v1607, %v1603
    %v2728 = vpack.c.b16 %v1608, %v1604
    %v2729 = vpack.c.b16 %v1609, %v1605
    %v2730 = vpack.c.b16 %v1614, %v1610
    %v2731 = vpack.c.b16 %v1615, %v1611
    %v2732 = vpack.c.b16 %v1616, %v1612
    %v2733 = vpack.c.b16 %v1617, %v1613
    %v2734 = vpack.c.b16 %v1622, %v1618
    %v2735 = vpack.c.b16 %v1623, %v1619
    %v2736 = vpack.c.b16 %v1624, %v1620
    %v2737 = vpack.c.b16 %v1625, %v1621
    %v2738 = vpack.c.b16 %v1630, %v1626
    %v2739 = vpack.c.b16 %v1631, %v1627
    %v2740 = vpack.c.b16 %v1632, %v1628
    %v2741 = vpack.c.b16 %v1633, %v1629
    %v2742 = vpack.c.b16 %v1638, %v1634
    %v2743 = vpack.c.b16 %v1639, %v1635
    %v2744 = vpack.c.b16 %v1640, %v1636
    %v2745 = vpack.c.b16 %v1641, %v1637
    %v2746 = vpack.c.b16 %v1646, %v1642
    %v2747 = vpack.c.b16 %v1647, %v1643
    %v2748 = vpack.c.b16 %v1648, %v1644
    %v2749 = vpack.c.b16 %v1649, %v1645
    %v2750 = vpack.c.b16 %v1654, %v1650
    %v2751 = vpack.c.b16 %v1655, %v1651
    %v2752 = vpack.c.b16 %v1656, %v1652
    %v2753 = vpack.c.b16 %v1657, %v1653
    %v2754 = vpack.c.b16 %v1662, %v1658
    %v2755 = vpack.c.b16 %v1663, %v1659
    %v2756 = vpack.c.b16 %v1664, %v1660
    %v2757 = vpack.c.b16 %v1665, %v1661
    %v2758 = vpack.c.b16 %v1670, %v1666
    %v2759 = vpack.c.b16 %v1671, %v1667
    %v2760 = vpack.c.b16 %v1672, %v1668
    %v2761 = vpack.c.b16 %v1673, %v1669
    %v2762 = vpack.c.b16 %v1678, %v1674
    %v2763 = vpack.c.b16 %v1679, %v1675
    %v2764 = vpack.c.b16 %v1680, %v1676
    %v2765 = vpack.c.b16 %v1681, %v1677
    %v2766 = vpack.c.b16 %v1686, %v1682
    %v2767 = vpack.c.b16 %v1687, %v1683
    %v2768 = vpack.c.b16 %v1688, %v1684
    %v2769 = vpack.c.b16 %v1689, %v1685
    %v2770 = vpack.c.b16 %v1694, %v1690
    %v2771 = vpack.c.b16 %v1695, %v1691
    %v2772 = vpack.c.b16 %v1696, %v1692
    %v2773 = vpack.c.b16 %v1697, %v1693
    %v2774 = vpack.c.b16 %v1702, %v1698
    %v2775 = vpack.c.b16 %v1703, %v1699
    %v2776 = vpack.c.b16 %v1704, %v1700
    %v2777 = vpack.c.b16 %v1705, %v1701
    %v2778 = vpack.c.b16 %v1710, %v1706
    %v2779 = vpack.c.b16 %v1711, %v1707
    %v2780 = vpack.c.b16 %v1712, %v1708
    %v2781 = vpack.c.b16 %v1713, %v1709
    %v2782 = vpack.c.b16 %v1718, %v1714
    %v2783 = vpack.c.b16 %v1719, %v1715
    %v2784 = vpack.c.b16 %v1720, %v1716
    %v2785 = vpack.c.b16 %v1721, %v1717
    %v2786 = vpack.c.b16 %v1726, %v1722
    %v2787 = vpack.c.b16 %v1727, %v1723
    %v2788 = vpack.c.b16 %v1728, %v1724
    %v2789 = vpack.c.b16 %v1729, %v1725
    %v2790 = vpack.c.b16 %v1734, %v1730
    %v2791 = vpack.c.b16 %v1735, %v1731
    %v2792 = vpack.c.b16 %v1736, %v1732
    %v2793 = vpack.c.b16 %v1737, %v1733
    %v2794 = vpack.c.b16 %v1742, %v1738
    %v2795 = vpack.c.b16 %v1743, %v1739
    %v2796 = vpack.c.b16 %v1744, %v1740
    %v2797 = vpack.c.b16 %v1745, %v1741
    %v2798 = vpack.c.b16 %v1750, %v1746
    %v2799 = vpack.c.b16 %v1751, %v1747
    %v2800 = vpack.c.b16 %v1752, %v1748
    %v2801 = vpack.c.b16 %v1753, %v1749
    %v2802 = vpack.c.b16 %v1758, %v1754
    %v2803 = vpack.c.b16 %v1759, %v1755
    %v2804 = vpack.c.b16 %v1760, %v1756
    %v2805 = vpack.c.b16 %v1761, %v1757
    %v2806 = vpack.c.b16 %v1766, %v1762
    %v2807 = vpack.c.b16 %v1767, %v1763
    %v2808 = vpack.c.b16 %v1768, %v1764
    %v2809 = vpack.c.b16 %v1769, %v1765
    %v2810 = vpack.c.b16 %v1774, %v1770
    %v2811 = vpack.c.b16 %v1775, %v1771
    %v2812 = vpack.c.b16 %v1776, %v1772
    %v2813 = vpack.c.b16 %v1777, %v1773
    %v2814 = vpack.c.b16 %v1782, %v1778
    %v2815 = vpack.c.b16 %v1783, %v1779
    %v2816 = vpack.c.b16 %v1784, %v1780
    %v2817 = vpack.c.b16 %v1785, %v1781
    %v2818 = vpack.c.b16 %v1790, %v1786
    %v2819 = vpack.c.b16 %v1791, %v1787
    %v2820 = vpack.c.b16 %v1792, %v1788
    %v2821 = vpack.c.b16 %v1793, %v1789
    %v2822 = vpack.c.b16 %v1798, %v1794
    %v2823 = vpack.c.b16 %v1799, %v1795
    %v2824 = vpack.c.b16 %v1800, %v1796
    %v2825 = vpack.c.b16 %v1801, %v1797
    %v2826 = vpack.c.b16 %v1806, %v1802
    %v2827 = vpack.c.b16 %v1807, %v1803
    %v2828 = vpack.c.b16 %v1808, %v1804
    %v2829 = vpack.c.b16 %v1809, %v1805
    %v2830 = vpack.c.b16 %v1814, %v1810
    %v2831 = vpack.c.b16 %v1815, %v1811
    %v2832 = vpack.c.b16 %v1816, %v1812
    %v2833 = vpack.c.b16 %v1817, %v1813
    %v2834 = vpack.c.b16 %v1822, %v1818
    %v2835 = vpack.c.b16 %v1823, %v1819
    %v2836 = vpack.c.b16 %v1824, %v1820
    %v2837 = vpack.c.b16 %v1825, %v1821
    %v2838 = vpack.c.b16 %v1830, %v1826
    %v2839 = vpack.c.b16 %v1831, %v1827
    %v2840 = vpack.c.b16 %v1832, %v1828
    %v2841 = vpack.c.b16 %v1833, %v1829
    %v2842 = vpack.c.b16 %v1838, %v1834
    %v2843 = vpack.c.b16 %v1839, %v1835
    %v2844 = vpack.c.b16 %v1840, %v1836
    %v2845 = vpack.c.b16 %v1841, %v1837
    %v2846 = vpack.c.b16 %v1846, %v1842
    %v2847 = vpack.c.b16 %v1847, %v1843
    %v2848 = vpack.c.b16 %v1848, %v1844
    %v2849 = vpack.c.b16 %v1849, %v1845
    %v2850 = vpack.c.b16 %v1854, %v1850
    %v2851 = vpack.c.b16 %v1855, %v1851
    %v2852 = vpack.c.b16 %v1856, %v1852
    %v2853 = vpack.c.b16 %v1857, %v1853
    %v2854 = vpack.c.b16 %v1862, %v1858
    %v2855 = vpack.c.b16 %v1863, %v1859
    %v2856 = vpack.c.b16 %v1864, %v1860
    %v2857 = vpack.c.b16 %v1865, %v1861
    %v2858 = vpack.c.b16 %v1870, %v1866
    %v2859 = vpack.c.b16 %v1871, %v1867
    %v2860 = vpack.c.b16 %v1872, %v1868
    %v2861 = vpack.c.b16 %v1873, %v1869
    %v2862 = vpack.c.b16 %v1878, %v1874
    %v2863 = vpack.c.b16 %v1879, %v1875
    %v2864 = vpack.c.b16 %v1880, %v1876
    %v2865 = vpack.c.b16 %v1881, %v1877
    %v2866 = vpack.c.b16 %v1886, %v1882
    %v2867 = vpack.c.b16 %v1887, %v1883
    %v2868 = vpack.c.b16 %v1888, %v1884
    %v2869 = vpack.c.b16 %v1889, %v1885
    %v2870 = vpack.c.b16 %v1894, %v1890
    %v2871 = vpack.c.b16 %v1895, %v1891
    %v2872 = vpack.c.b16 %v1896, %v1892
    %v2873 = vpack.c.b16 %v1897, %v1893
    %v2874 = vpack.c.b16 %v1902, %v1898
    %v2875 = vpack.c.b16 %v1903, %v1899
    %v2876 = vpack.c.b16 %v1904, %v1900
    %v2877 = vpack.c.b16 %v1905, %v1901
    %v2878 = vpack.c.b16 %v1910, %v1906
    %v2879 = vpack.c.b16 %v1911, %v1907
    %v2880 = vpack.c.b16 %v1912, %v1908
    %v2881 = vpack.c.b16 %v1913, %v1909
    %v2882 = vpack.c.b16 %v1918, %v1914
    %v2883 = vpack.c.b16 %v1919, %v1915
    %v2884 = vpack.c.b16 %v1920, %v1916
    %v2885 = vpack.c.b16 %v1921, %v1917
    %v2886 = vpack.c.b16 %v1926, %v1922
    %v2887 = vpack.c.b16 %v1927, %v1923
    %v2888 = vpack.c.b16 %v1928, %v1924
    %v2889 = vpack.c.b16 %v1929, %v1925
    %v2890 = vpack.c.b16 %v1934, %v1930
    %v2891 = vpack.c.b16 %v1935, %v1931
    %v2892 = vpack.c.b16 %v1936, %v1932
    %v2893 = vpack.c.b16 %v1937, %v1933
    %v2894 = vpack.c.b16 %v1942, %v1938
    %v2895 = vpack.c.b16 %v1943, %v1939
    %v2896 = vpack.c.b16 %v1944, %v1940
    %v2897 = vpack.c.b16 %v1945, %v1941
    %v2898 = vpack.c.b16 %v1950, %v1946
    %v2899 = vpack.c.b16 %v1951, %v1947
    %v2900 = vpack.c.b16 %v1952, %v1948
    %v2901 = vpack.c.b16 %v1953, %v1949
    %v2902 = vpack.c.b16 %v1958, %v1954
    %v2903 = vpack.c.b16 %v1959, %v1955
    %v2904 = vpack.c.b16 %v1960, %v1956
    %v2905 = vpack.c.b16 %v1961, %v1957
    %v2906 = vpack.c.b16 %v1966, %v1962
    %v2907 = vpack.c.b16 %v1967, %v1963
    %v2908 = vpack.c.b16 %v1968, %v1964
    %v2909 = vpack.c.b16 %v1969, %v1965
    %v2910 = vpack.c.b16 %v1974, %v1970
    %v2911 = vpack.c.b16 %v1975, %v1971
    %v2912 = vpack.c.b16 %v1976, %v1972
    %v2913 = vpack.c.b16 %v1977, %v1973
    %v2914 = vpack.c.b16 %v1982, %v1978
    %v2915 = vpack.c.b16 %v1983, %v1979
    %v2916 = vpack.c.b16 %v1984, %v1980
    %v2917 = vpack.c.b16 %v1985, %v1981
    %v2918 = vpack.c.b16 %v1990, %v1986
    %v2919 = vpack.c.b16 %v1991, %v1987
    %v2920 = vpack.c.b16 %v1992, %v1988
    %v2921 = vpack.c.b16 %v1993, %v1989
    %v2922 = vpack.c.b16 %v1998, %v1994
    %v2923 = vpack.c.b16 %v1999, %v1995
    %v2924 = vpack.c.b16 %v2000, %v1996
    %v2925 = vpack.c.b16 %v2001, %v1997
    %v2926 = vpack.c.b16 %v2006, %v2002
    %v2927 = vpack.c.b16 %v2007, %v2003
    %v2928 = vpack.c.b16 %v2008, %v2004
    %v2929 = vpack.c.b16 %v2009, %v2005
    %v2930 = vpack.c.b16 %v2014, %v2010
    %v2931 = vpack.c.b16 %v2015, %v2011
    %v2932 = vpack.c.b16 %v2016, %v2012
    %v2933 = vpack.c.b16 %v2017, %v2013
    %v2934 = vpack.c.b16 %v2022, %v2018
    %v2935 = vpack.c.b16 %v2023, %v2019
    %v2936 = vpack.c.b16 %v2024, %v2020
    %v2937 = vpack.c.b16 %v2025, %v2021
    %v2938 = vpack.c.b16 %v2030, %v2026
    %v2939 = vpack.c.b16 %v2031, %v2027
    %v2940 = vpack.c.b16 %v2032, %v2028
    %v2941 = vpack.c.b16 %v2033, %v2029
    %v2942 = vpack.c.b16 %v2038, %v2034
    %v2943 = vpack.c.b16 %v2039, %v2035
    %v2944 = vpack.c.b16 %v2040, %v2036
    %v2945 = vpack.c.b16 %v2041, %v2037
    %v2946 = vpack.c.b16 %v2046, %v2042
    %v2947 = vpack.c.b16 %v2047, %v2043
    %v2948 = vpack.c.b16 %v2048, %v2044
    %v2949 = vpack.c.b16 %v2049, %v2045
    %v2950 = vpack.c.b16 %v2054, %v2050
    %v2951 = vpack.c.b16 %v2055, %v2051
    %v2952 = vpack.c.b16 %v2056, %v2052
    %v2953 = vpack.c.b16 %v2057, %v2053
    %v2954 = vpack.c.b16 %v2062, %v2058
    %v2955 = vpack.c.b16 %v2063, %v2059
    %v2956 = vpack.c.b16 %v2064, %v2060
    %v2957 = vpack.c.b16 %v2065, %v2061
    %v2958 = vpack.c.b16 %v2070, %v2066
    %v2959 = vpack.c.b16 %v2071, %v2067
    %v2960 = vpack.c.b16 %v2072, %v2068
    %v2961 = vpack.c.b16 %v2073, %v2069
    %v2962 = vpack.c.b16 %v2078, %v2074
    %v2963 = vpack.c.b16 %v2079, %v2075
    %v2964 = vpack.c.b16 %v2080, %v2076
    %v2965 = vpack.c.b16 %v2081, %v2077
    %v2966 = vpack.c.b16 %v2086, %v2082
    %v2967 = vpack.c.b16 %v2087, %v2083
    %v2968 = vpack.c.b16 %v2088, %v2084
    %v2969 = vpack.c.b16 %v2089, %v2085
    %v2970 = vpack.c.b16 %v2094, %v2090
    %v2971 = vpack.c.b16 %v2095, %v2091
    %v2972 = vpack.c.b16 %v2096, %v2092
    %v2973 = vpack.c.b16 %v2097, %v2093
    %v2974 = vpack.c.b16 %v2102, %v2098
    %v2975 = vpack.c.b16 %v2103, %v2099
    %v2976 = vpack.c.b16 %v2104, %v2100
    %v2977 = vpack.c.b16 %v2105, %v2101
    %v2978 = vpack.c.b16 %v2110, %v2106
    %v2979 = vpack.c.b16 %v2111, %v2107
    %v2980 = vpack.c.b16 %v2112, %v2108
    %v2981 = vpack.c.b16 %v2113, %v2109
    %v2982 = vpack.c.b16 %v2118, %v2114
    %v2983 = vpack.c.b16 %v2119, %v2115
    %v2984 = vpack.c.b16 %v2120, %v2116
    %v2985 = vpack.c.b16 %v2121, %v2117
    %v2986 = vpack.c.b16 %v2126, %v2122
    %v2987 = vpack.c.b16 %v2127, %v2123
    %v2988 = vpack.c.b16 %v2128, %v2124
    %v2989 = vpack.c.b16 %v2129, %v2125
    %v2990 = vpack.c.b16 %v2134, %v2130
    %v2991 = vpack.c.b16 %v2135, %v2131
    %v2992 = vpack.c.b16 %v2136, %v2132
    %v2993 = vpack.c.b16 %v2137, %v2133
    %v2994 = vpack.c.b16 %v2142, %v2138
    %v2995 = vpack.c.b16 %v2143, %v2139
    %v2996 = vpack.c.b16 %v2144, %v2140
    %v2997 = vpack.c.b16 %v2145, %v2141
    %v2998 = vpack.c.b16 %v2150, %v2146
    %v2999 = vpack.c.b16 %v2151, %v2147
    %v3000 = vpack.c.b16 %v2152, %v2148
    %v3001 = vpack.c.b16 %v2153, %v2149
    %v3002 = vpack.c.b16 %v2158, %v2154
    %v3003 = vpack.c.b16 %v2159, %v2155
    %v3004 = vpack.c.b16 %v2160, %v2156
    %v3005 = vpack.c.b16 %v2161, %v2157
    %v3006 = vpack.c.b16 %v2166, %v2162
    %v3007 = vpack.c.b16 %v2167, %v2163
    %v3008 = vpack.c.b16 %v2168, %v2164
    %v3009 = vpack.c.b16 %v2169, %v2165
    %v3010 = vpack.c.b16 %v2174, %v2170
    %v3011 = vpack.c.b16 %v2175, %v2171
    %v3012 = vpack.c.b16 %v2176, %v2172
    %v3013 = vpack.c.b16 %v2177, %v2173
    %v3014 = vpack.c.b16 %v2182, %v2178
    %v3015 = vpack.c.b16 %v2183, %v2179
    %v3016 = vpack.c.b16 %v2184, %v2180
    %v3017 = vpack.c.b16 %v2185, %v2181
    %v3018 = vpack.c.b16 %v2190, %v2186
    %v3019 = vpack.c.b16 %v2191, %v2187
    %v3020 = vpack.c.b16 %v2192, %v2188
    %v3021 = vpack.c.b16 %v2193, %v2189
    %v3022 = vpack.c.b16 %v2198, %v2194
    %v3023 = vpack.c.b16 %v2199, %v2195
    %v3024 = vpack.c.b16 %v2200, %v2196
    %v3025 = vpack.c.b16 %v2201, %v2197
    %v3026 = vpack.c.b16 %v2206, %v2202
    %v3027 = vpack.c.b16 %v2207, %v2203
    %v3028 = vpack.c.b16 %v2208, %v2204
    %v3029 = vpack.c.b16 %v2209, %v2205
    %v3030 = vpack.c.b16 %v2214, %v2210
    %v3031 = vpack.c.b16 %v2215, %v2211
    %v3032 = vpack.c.b16 %v2216, %v2212
    %v3033 = vpack.c.b16 %v2217, %v2213
    %v3034 = vpack.c.b16 %v2222, %v2218
    %v3035 = vpack.c.b16 %v2223, %v2219
    %v3036 = vpack.c.b16 %v2224, %v2220
    %v3037 = vpack.c.b16 %v2225, %v2221
    %v3038 = vpack.c.b16 %v2230, %v2226
    %v3039 = vpack.c.b16 %v2231, %v2227
    %v3040 = vpack.c.b16 %v2232, %v2228
    %v3041 = vpack.c.b16 %v2233, %v2229
    %v3042 = vpack.c.b16 %v2238, %v2234
    %v3043 = vpack.c.b16 %v2239, %v2235
    %v3044 = vpack.c.b16 %v2240, %v2236
    %v3045 = vpack.c.b16 %v2241, %v2237
    %v3046 = vpack.c.b16 %v2246, %v2242
    %v3047 = vpack.c.b16 %v2247, %v2243
    %v3048 = vpack.c.b16 %v2248, %v2244
    %v3049 = vpack.c.b16 %v2249, %v2245
    %v3050 = vpack.c.b16 %v2254, %v2250
    %v3051 = vpack.c.b16 %v2255, %v2251
    %v3052 = vpack.c.b16 %v2256, %v2252
    %v3053 = vpack.c.b16 %v2257, %v2253
    %v3054 = vpack.c.b16 %v2262, %v2258
    %v3055 = vpack.c.b16 %v2263, %v2259
    %v3056 = vpack.c.b16 %v2264, %v2260
    %v3057 = vpack.c.b16 %v2265, %v2261
    %v3058 = vpack.c.b16 %v2270, %v2266
    %v3059 = vpack.c.b16 %v2271, %v2267
    %v3060 = vpack.c.b16 %v2272, %v2268
    %v3061 = vpack.c.b16 %v2273, %v2269
    %v3062 = vpack.c.b16 %v2278, %v2274
    %v3063 = vpack.c.b16 %v2279, %v2275
    %v3064 = vpack.c.b16 %v2280, %v2276
    %v3065 = vpack.c.b16 %v2281, %v2277
    %v3066 = vpack.c.b16 %v2286, %v2282
    %v3067 = vpack.c.b16 %v2287, %v2283
    %v3068 = vpack.c.b16 %v2288, %v2284
    %v3069 = vpack.c.b16 %v2289, %v2285
    %v3070 = vpack.c.b16 %v2294, %v2290
    %v3071 = vpack.c.b16 %v2295, %v2291
    %v3072 = vpack.c.b16 %v2296, %v2292
    %v3073 = vpack.c.b16 %v2297, %v2293
    %v3074 = vpack.c.b16 %v2302, %v2298
    %v3075 = vpack.c.b16 %v2303, %v2299
    %v3076 = vpack.c.b16 %v2304, %v2300
    %v3077 = vpack.c.b16 %v2305, %v2301
    %v3078 = vpack.c.b16 %v2310, %v2306
    %v3079 = vpack.c.b16 %v2311, %v2307
    %v3080 = vpack.c.b16 %v2312, %v2308
    %v3081 = vpack.c.b16 %v2313, %v2309
    %v3082 = vpack.c.b16 %v2318, %v2314
    %v3083 = vpack.c.b16 %v2319, %v2315
    %v3084 = vpack.c.b16 %v2320, %v2316
    %v3085 = vpack.c.b16 %v2321, %v2317
    %v3086 = vpack.c.b16 %v2326, %v2322
    %v3087 = vpack.c.b16 %v2327, %v2323
    %v3088 = vpack.c.b16 %v2328, %v2324
    %v3089 = vpack.c.b16 %v2329, %v2325
    %v3090 = vpack.c.b16 %v2334, %v2330
    %v3091 = vpack.c.b16 %v2335, %v2331
    %v3092 = vpack.c.b16 %v2336, %v2332
    %v3093 = vpack.c.b16 %v2337, %v2333
    %v3094 = vpack.c.b16 %v2342, %v2338
    %v3095 = vpack.c.b16 %v2343, %v2339
    %v3096 = vpack.c.b16 %v2344, %v2340
    %v3097 = vpack.c.b16 %v2345, %v2341
    %v3098 = vpack.c.b16 %v2350, %v2346
    %v3099 = vpack.c.b16 %v2351, %v2347
    %v3100 = vpack.c.b16 %v2352, %v2348
    %v3101 = vpack.c.b16 %v2353, %v2349
    %v3102 = vpack.c.b16 %v2358, %v2354
    %v3103 = vpack.c.b16 %v2359, %v2355
    %v3104 = vpack.c.b16 %v2360, %v2356
    %v3105 = vpack.c.b16 %v2361, %v2357
    %v3106 = vpack.c.b16 %v2366, %v2362
    %v3107 = vpack.c.b16 %v2367, %v2363
    %v3108 = vpack.c.b16 %v2368, %v2364
    %v3109 = vpack.c.b16 %v2369, %v2365
    %v3110 = vpack.c.b16 %v2374, %v2370
    %v3111 = vpack.c.b16 %v2375, %v2371
    %v3112 = vpack.c.b16 %v2376, %v2372
    %v3113 = vpack.c.b16 %v2377, %v2373
    %v3114 = vpack.c.b16 %v2382, %v2378
    %v3115 = vpack.c.b16 %v2383, %v2379
    %v3116 = vpack.c.b16 %v2384, %v2380
    %v3117 = vpack.c.b16 %v2385, %v2381
    %v3118 = vpack.c.b16 %v2390, %v2386
    %v3119 = vpack.c.b16 %v2391, %v2387
    %v3120 = vpack.c.b16 %v2392, %v2388
    %v3121 = vpack.c.b16 %v2393, %v2389
    %v3122 = vpack.c.b16 %v2398, %v2394
    %v3123 = vpack.c.b16 %v2399, %v2395
    %v3124 = vpack.c.b16 %v2400, %v2396
    %v3125 = vpack.c.b16 %v2401, %v2397
    %v3126 = vpack.c.b16 %v2406, %v2402
    %v3127 = vpack.c.b16 %v2407, %v2403
    %v3128 = vpack.c.b16 %v2408, %v2404
    %v3129 = vpack.c.b16 %v2409, %v2405
    %v3130 = vpack.c.b16 %v2414, %v2410
    %v3131 = vpack.c.b16 %v2415, %v2411
    %v3132 = vpack.c.b16 %v2416, %v2412
    %v3133 = vpack.c.b16 %v2417, %v2413
    %v3134 = vpack.c.b16 %v2422, %v2418
    %v3135 = vpack.c.b16 %v2423, %v2419
    %v3136 = vpack.c.b16 %v2424, %v2420
    %v3137 = vpack.c.b16 %v2425, %v2421
    %v3138 = vpack.c.b16 %v2430, %v2426
    %v3139 = vpack.c.b16 %v2431, %v2427
    %v3140 = vpack.c.b16 %v2432, %v2428
    %v3141 = vpack.c.b16 %v2433, %v2429
    %v3142 = vpack.c.b16 %v2438, %v2434
    %v3143 = vpack.c.b16 %v2439, %v2435
    %v3144 = vpack.c.b16 %v2440, %v2436
    %v3145 = vpack.c.b16 %v2441, %v2437
    %v3146 = vpack.c.b16 %v2446, %v2442
    %v3147 = vpack.c.b16 %v2447, %v2443
    %v3148 = vpack.c.b16 %v2448, %v2444
    %v3149 = vpack.c.b16 %v2449, %v2445
    %v3150 = vpack.c.b16 %v2454, %v2450
    %v3151 = vpack.c.b16 %v2455, %v2451
    %v3152 = vpack.c.b16 %v2456, %v2452
    %v3153 = vpack.c.b16 %v2457, %v2453
    %v3154 = vpack.c.b16 %v2462, %v2458
    %v3155 = vpack.c.b16 %v2463, %v2459
    %v3156 = vpack.c.b16 %v2464, %v2460
    %v3157 = vpack.c.b16 %v2465, %v2461
    %v3158 = vpack.c.b16 %v2470, %v2466
    %v3159 = vpack.c.b16 %v2471, %v2467
    %v3160 = vpack.c.b16 %v2472, %v2468
    %v3161 = vpack.c.b16 %v2473, %v2469
    %v3162 = vpack.c.b16 %v2478, %v2474
    %v3163 = vpack.c.b16 %v2479, %v2475
    %v3164 = vpack.c.b16 %v2480, %v2476
    %v3165 = vpack.c.b16 %v2481, %v2477
    %v3166 = vpack.c.b16 %v2486, %v2482
    %v3167 = vpack.c.b16 %v2487, %v2483
    %v3168 = vpack.c.b16 %v2488, %v2484
    %v3169 = vpack.c.b16 %v2489, %v2485
    %v3170 = vpack.c.b16 %v2494, %v2490
    %v3171 = vpack.c.b16 %v2495, %v2491
    %v3172 = vpack.c.b16 %v2496, %v2492
    %v3173 = vpack.c.b16 %v2497, %v2493
    %v3174 = vpack.c.b16 %v2502, %v2498
    %v3175 = vpack.c.b16 %v2503, %v2499
    %v3176 = vpack.c.b16 %v2504, %v2500
    %v3177 = vpack.c.b16 %v2505, %v2501
    %v3178 = vpack.c.b16 %v2510, %v2506
    %v3179 = vpack.c.b16 %v2511, %v2507
    %v3180 = vpack.c.b16 %v2512, %v2508
    %v3181 = vpack.c.b16 %v2513, %v2509
    %v3182 = vpack.c.b16 %v2518, %v2514
    %v3183 = vpack.c.b16 %v2519, %v2515
    %v3184 = vpack.c.b16 %v2520, %v2516
    %v3185 = vpack.c.b16 %v2521, %v2517
    %v3186 = vpack.c.b16 %v2526, %v2522
    %v3187 = vpack.c.b16 %v2527, %v2523
    %v3188 = vpack.c.b16 %v2528, %v2524
    %v3189 = vpack.c.b16 %v2529, %v2525
    %v3190 = vpack.c.b16 %v2534, %v2530
    %v3191 = vpack.c.b16 %v2535, %v2531
    %v3192 = vpack.c.b16 %v2536, %v2532
    %v3193 = vpack.c.b16 %v2537, %v2533
    %v3194 = vpack.c.b16 %v2542, %v2538
    %v3195 = vpack.c.b16 %v2543, %v2539
    %v3196 = vpack.c.b16 %v2544, %v2540
    %v3197 = vpack.c.b16 %v2545, %v2541
    %v3198 = vpack.c.b16 %v2550, %v2546
    %v3199 = vpack.c.b16 %v2551, %v2547
    %v3200 = vpack.c.b16 %v2552, %v2548
    %v3201 = vpack.c.b16 %v2553, %v2549
    %v3202 = vpack.c.b16 %v2558, %v2554
    %v3203 = vpack.c.b16 %v2559, %v2555
    %v3204 = vpack.c.b16 %v2560, %v2556
    %v3205 = vpack.c.b16 %v2561, %v2557
    %v3206 = vpack.c.b16 %v2566, %v2562
    %v3207 = vpack.c.b16 %v2567, %v2563
    %v3208 = vpack.c.b16 %v2568, %v2564
    %v3209 = vpack.c.b16 %v2569, %v2565
    %v3210 = vpack.c.b16 %v2574, %v2570
    %v3211 = vpack.c.b16 %v2575, %v2571
    %v3212 = vpack.c.b16 %v2576, %v2572
    %v3213 = vpack.c.b16 %v2577, %v2573
    %v3214 = vpack.c.b16 %v2582, %v2578
    %v3215 = vpack.c.b16 %v2583, %v2579
    %v3216 = vpack.c.b16 %v2584, %v2580
    %v3217 = vpack.c.b16 %v2585, %v2581
    %v3218 = vpack.c.b16 %v2590, %v2586
    %v3219 = vpack.c.b16 %v2591, %v2587
    %v3220 = vpack.c.b16 %v2592, %v2588
    %v3221 = vpack.c.b16 %v2593, %v2589
    %v3222 = vpack.c.b16 %v2598, %v2594
    %v3223 = vpack.c.b16 %v2599, %v2595
    %v3224 = vpack.c.b16 %v2600, %v2596
    %v3225 = vpack.c.b16 %v2601, %v2597
    %v3226 = vpack.c.b16 %v2606, %v2602
    %v3227 = vpack.c.b16 %v2607, %v2603
    %v3228 = vpack.c.b16 %v2608, %v2604
    %v3229 = vpack.c.b16 %v2609, %v2605
    %v3230 = vpack.c.b16 %v2614, %v2610
    %v3231 = vpack.c.b16 %v2615, %v2611
    %v3232 = vpack.c.b16 %v2616, %v2612
    %v3233 = vpack.c.b16 %v2617, %v2613
    %v3234 = vpack.c.b16 %v2622, %v2618
    %v3235 = vpack.c.b16 %v2623, %v2619
    %v3236 = vpack.c.b16 %v2624, %v2620
    %v3237 = vpack.c.b16 %v2625, %v2621
    %v3238 = vpack.c.b16 %v2630, %v2626
    %v3239 = vpack.c.b16 %v2631, %v2627
    %v3240 = vpack.c.b16 %v2632, %v2628
    %v3241 = vpack.c.b16 %v2633, %v2629
    %3850 = vmatprep.subr.bf16.mxu0 %v2635
    %3851 = vmatpush1.bf16.msra.mxu0 %v2634
    %3852 = vmatprep.subr.bf16.mxu0 %v2639
    %3853 = vmatpush1.bf16.msra.mxu0 %v2638
    %3854 = vmatprep.subr.bf16.mxu0 %v2643
    %3855 = vmatpush1.bf16.msra.mxu0 %v2642
    %3856 = vmatprep.subr.bf16.mxu0 %v2647
    %3857 = vmatpush1.bf16.msra.mxu0 %v2646
    %3858 = vmatprep.subr.bf16.mxu0 %v2651
    %3859 = vmatpush1.bf16.msra.mxu0 %v2650
    %3860 = vmatprep.subr.bf16.mxu0 %v2655
    %3861 = vmatpush1.bf16.msra.mxu0 %v2654
    %3862 = vmatprep.subr.bf16.mxu0 %v2659
    %3863 = vmatpush1.bf16.msra.mxu0 %v2658
    %3864 = vmatprep.subr.bf16.mxu0 %v2663
    %3865 = vmatpush1.bf16.msra.mxu0 %v2662
    %3866 = vmatprep.subr.bf16.mxu0 %v2667
    %3867 = vmatpush1.bf16.msra.mxu0 %v2666
    %3868 = vmatprep.subr.bf16.mxu0 %v2671
    %3869 = vmatpush1.bf16.msra.mxu0 %v2670
    %3870 = vmatprep.subr.bf16.mxu0 %v2675
    %3871 = vmatpush1.bf16.msra.mxu0 %v2674
    %3872 = vmatprep.subr.bf16.mxu0 %v2679
    %3873 = vmatpush1.bf16.msra.mxu0 %v2678
    %3874 = vmatprep.subr.bf16.mxu0 %v2683
    %3875 = vmatpush1.bf16.msra.mxu0 %v2682
    %3876 = vmatprep.subr.bf16.mxu0 %v2687
    %3877 = vmatpush1.bf16.msra.mxu0 %v2686
    %3878 = vmatprep.subr.bf16.mxu0 %v2691
    %3879 = vmatpush1.bf16.msra.mxu0 %v2690
    %3880 = vmatprep.subr.bf16.mxu0 %v2695
    %3881 = vmatpush1.bf16.msra.mxu0 %v2694
    %3882 = vmatprep.mubr.bf16.mxu0 %v773
    %3883 = vmatmul.mubr.bf16.gmra.mrb[0].mxu0 %v772
    %v3884 = vpop.f32.mrb[0].mxu0
    %v3885 = vadd.f32 %v726, %v3884
    %v3886 = vpop.f32.mrb[0].mxu0
    %v3887 = vadd.f32 %v730, %v3886
    %v3888 = vpop.f32.mrb[0].mxu0
    %v3889 = vpop.f32.mrb[0].mxu0
    %3890 = vdwg.mxu0
    %3891 = vmatprep.subr.bf16.mxu0 %v2699
    %3892 = vmatpush1.bf16.msra.mxu0 %v2698
    %3893 = vmatprep.subr.bf16.mxu0 %v2703
    %3894 = vmatpush1.bf16.msra.mxu0 %v2702
    %3895 = vmatprep.subr.bf16.mxu0 %v2707
    %3896 = vmatpush1.bf16.msra.mxu0 %v2706
    %3897 = vmatprep.subr.bf16.mxu0 %v2711
    %3898 = vmatpush1.bf16.msra.mxu0 %v2710
    %3899 = vmatprep.subr.bf16.mxu0 %v2715
    %3900 = vmatpush1.bf16.msra.mxu0 %v2714
    %3901 = vmatprep.subr.bf16.mxu0 %v2719
    %3902 = vmatpush1.bf16.msra.mxu0 %v2718
    %3903 = vmatprep.subr.bf16.mxu0 %v2723
    %3904 = vmatpush1.bf16.msra.mxu0 %v2722
    %3905 = vmatprep.subr.bf16.mxu0 %v2727
    %3906 = vmatpush1.bf16.msra.mxu0 %v2726
    %3907 = vmatprep.subr.bf16.mxu0 %v2731
    %3908 = vmatpush1.bf16.msra.mxu0 %v2730
    %3909 = vmatprep.subr.bf16.mxu0 %v2735
    %3910 = vmatpush1.bf16.msra.mxu0 %v2734
    %3911 = vmatprep.subr.bf16.mxu0 %v2739
    %3912 = vmatpush1.bf16.msra.mxu0 %v2738
    %3913 = vmatprep.subr.bf16.mxu0 %v2743
    %3914 = vmatpush1.bf16.msra.mxu0 %v2742
    %3915 = vmatprep.subr.bf16.mxu0 %v2747
    %3916 = vmatpush1.bf16.msra.mxu0 %v2746
    %3917 = vmatprep.subr.bf16.mxu0 %v2751
    %3918 = vmatpush1.bf16.msra.mxu0 %v2750
    %3919 = vmatprep.subr.bf16.mxu0 %v2755
    %3920 = vmatpush1.bf16.msra.mxu0 %v2754
    %3921 = vmatprep.subr.bf16.mxu0 %v2759
    %3922 = vmatpush1.bf16.msra.mxu0 %v2758
    %3923 = vmatprep.mubr.bf16.mxu0 %v775
    %3924 = vmatmul.mubr.bf16.gmra.mrb[0].mxu0 %v774
    %v3925 = vpop.f32.mrb[0].mxu0
    %v3926 = vadd.f32 %v3885, %v3925
    %v3927 = vpop.f32.mrb[0].mxu0
    %v3928 = vadd.f32 %v3887, %v3927
    %v3929 = vpop.f32.mrb[0].mxu0
    %v3930 = vpop.f32.mrb[0].mxu0
    %3931 = vdwg.mxu0
    %3932 = vmatprep.subr.bf16.mxu0 %v2763
    %3933 = vmatpush1.bf16.msra.mxu0 %v2762
    %3934 = vmatprep.subr.bf16.mxu0 %v2767
    %3935 = vmatpush1.bf16.msra.mxu0 %v2766
    %3936 = vmatprep.subr.bf16.mxu0 %v2771
    %3937 = vmatpush1.bf16.msra.mxu0 %v2770
    %3938 = vmatprep.subr.bf16.mxu0 %v2775
    %3939 = vmatpush1.bf16.msra.mxu0 %v2774
    %3940 = vmatprep.subr.bf16.mxu0 %v2779
    %3941 = vmatpush1.bf16.msra.mxu0 %v2778
    %3942 = vmatprep.subr.bf16.mxu0 %v2783
    %3943 = vmatpush1.bf16.msra.mxu0 %v2782
    %3944 = vmatprep.subr.bf16.mxu0 %v2787
    %3945 = vmatpush1.bf16.msra.mxu0 %v2786
    %3946 = vmatprep.subr.bf16.mxu0 %v2791
    %3947 = vmatpush1.bf16.msra.mxu0 %v2790
    %3948 = vmatprep.subr.bf16.mxu0 %v2795
    %3949 = vmatpush1.bf16.msra.mxu0 %v2794
    %3950 = vmatprep.subr.bf16.mxu0 %v2799
    %3951 = vmatpush1.bf16.msra.mxu0 %v2798
    %3952 = vmatprep.subr.bf16.mxu0 %v2803
    %3953 = vmatpush1.bf16.msra.mxu0 %v2802
    %3954 = vmatprep.subr.bf16.mxu0 %v2807
    %3955 = vmatpush1.bf16.msra.mxu0 %v2806
    %3956 = vmatprep.subr.bf16.mxu0 %v2811
    %3957 = vmatpush1.bf16.msra.mxu0 %v2810
    %3958 = vmatprep.subr.bf16.mxu0 %v2815
    %3959 = vmatpush1.bf16.msra.mxu0 %v2814
    %3960 = vmatprep.subr.bf16.mxu0 %v2819
    %3961 = vmatpush1.bf16.msra.mxu0 %v2818
    %3962 = vmatprep.subr.bf16.mxu0 %v2823
    %3963 = vmatpush1.bf16.msra.mxu0 %v2822
    %3964 = vmatprep.mubr.bf16.mxu0 %v777
    %3965 = vmatmul.mubr.bf16.gmra.mrb[0].mxu0 %v776
    %v3966 = vpop.f32.mrb[0].mxu0
    %v3967 = vadd.f32 %v3926, %v3966
    %v3968 = vpop.f32.mrb[0].mxu0
    %v3969 = vadd.f32 %v3928, %v3968
    %v3970 = vpop.f32.mrb[0].mxu0
    %v3971 = vpop.f32.mrb[0].mxu0
    %3972 = vdwg.mxu0
    %3973 = vmatprep.subr.bf16.mxu0 %v2827
    %3974 = vmatpush1.bf16.msra.mxu0 %v2826
    %3975 = vmatprep.subr.bf16.mxu0 %v2831
    %3976 = vmatpush1.bf16.msra.mxu0 %v2830
    %3977 = vmatprep.subr.bf16.mxu0 %v2835
    %3978 = vmatpush1.bf16.msra.mxu0 %v2834
    %3979 = vmatprep.subr.bf16.mxu0 %v2839
    %3980 = vmatpush1.bf16.msra.mxu0 %v2838
    %3981 = vmatprep.subr.bf16.mxu0 %v2843
    %3982 = vmatpush1.bf16.msra.mxu0 %v2842
    %3983 = vmatprep.subr.bf16.mxu0 %v2847
    %3984 = vmatpush1.bf16.msra.mxu0 %v2846
    %3985 = vmatprep.subr.bf16.mxu0 %v2851
    %3986 = vmatpush1.bf16.msra.mxu0 %v2850
    %3987 = vmatprep.subr.bf16.mxu0 %v2855
    %3988 = vmatpush1.bf16.msra.mxu0 %v2854
    %3989 = vmatprep.subr.bf16.mxu0 %v2859
    %3990 = vmatpush1.bf16.msra.mxu0 %v2858
    %3991 = vmatprep.subr.bf16.mxu0 %v2863
    %3992 = vmatpush1.bf16.msra.mxu0 %v2862
    %3993 = vmatprep.subr.bf16.mxu0 %v2867
    %3994 = vmatpush1.bf16.msra.mxu0 %v2866
    %3995 = vmatprep.subr.bf16.mxu0 %v2871
    %3996 = vmatpush1.bf16.msra.mxu0 %v2870
    %3997 = vmatprep.subr.bf16.mxu0 %v2875
    %3998 = vmatpush1.bf16.msra.mxu0 %v2874
    %3999 = vmatprep.subr.bf16.mxu0 %v2879
    %4000 = vmatpush1.bf16.msra.mxu0 %v2878
    %4001 = vmatprep.subr.bf16.mxu0 %v2883
    %4002 = vmatpush1.bf16.msra.mxu0 %v2882
    %4003 = vmatprep.subr.bf16.mxu0 %v2887
    %4004 = vmatpush1.bf16.msra.mxu0 %v2886
    %4005 = vmatprep.mubr.bf16.mxu0 %v779
    %4006 = vmatmul.mubr.bf16.gmra.mrb[0].mxu0 %v778
    %v4007 = vpop.f32.mrb[0].mxu0
    %v4008 = vadd.f32 %v3967, %v4007
    %v4009 = vpop.f32.mrb[0].mxu0
    %v4010 = vadd.f32 %v3969, %v4009
    %v4011 = vpop.f32.mrb[0].mxu0
    %v4012 = vpop.f32.mrb[0].mxu0
    %4013 = vdwg.mxu0
    %4014 = vmatprep.subr.bf16.mxu0 %v2891
    %4015 = vmatpush1.bf16.msra.mxu0 %v2890
    %4016 = vmatprep.subr.bf16.mxu0 %v2895
    %4017 = vmatpush1.bf16.msra.mxu0 %v2894
    %4018 = vmatprep.subr.bf16.mxu0 %v2899
    %4019 = vmatpush1.bf16.msra.mxu0 %v2898
    %4020 = vmatprep.subr.bf16.mxu0 %v2903
    %4021 = vmatpush1.bf16.msra.mxu0 %v2902
    %4022 = vmatprep.subr.bf16.mxu0 %v2907
    %4023 = vmatpush1.bf16.msra.mxu0 %v2906
    %4024 = vmatprep.subr.bf16.mxu0 %v2911
    %4025 = vmatpush1.bf16.msra.mxu0 %v2910
    %4026 = vmatprep.subr.bf16.mxu0 %v2915
    %4027 = vmatpush1.bf16.msra.mxu0 %v2914
    %4028 = vmatprep.subr.bf16.mxu0 %v2919
    %4029 = vmatpush1.bf16.msra.mxu0 %v2918
    %4030 = vmatprep.subr.bf16.mxu0 %v2923
    %4031 = vmatpush1.bf16.msra.mxu0 %v2922
    %4032 = vmatprep.subr.bf16.mxu0 %v2927
    %4033 = vmatpush1.bf16.msra.mxu0 %v2926
    %4034 = vmatprep.subr.bf16.mxu0 %v2931
    %4035 = vmatpush1.bf16.msra.mxu0 %v2930
    %4036 = vmatprep.subr.bf16.mxu0 %v2935
    %4037 = vmatpush1.bf16.msra.mxu0 %v2934
    %4038 = vmatprep.subr.bf16.mxu0 %v2939
    %4039 = vmatpush1.bf16.msra.mxu0 %v2938
    %4040 = vmatprep.subr.bf16.mxu0 %v2943
    %4041 = vmatpush1.bf16.msra.mxu0 %v2942
    %4042 = vmatprep.subr.bf16.mxu0 %v2947
    %4043 = vmatpush1.bf16.msra.mxu0 %v2946
    %4044 = vmatprep.subr.bf16.mxu0 %v2951
    %4045 = vmatpush1.bf16.msra.mxu0 %v2950
    %4046 = vmatprep.mubr.bf16.mxu0 %v781
    %4047 = vmatmul.mubr.bf16.gmra.mrb[0].mxu0 %v780
    %v4048 = vpop.f32.mrb[0].mxu0
    %v4049 = vadd.f32 %v4008, %v4048
    %v4050 = vpop.f32.mrb[0].mxu0
    %v4051 = vadd.f32 %v4010, %v4050
    %v4052 = vpop.f32.mrb[0].mxu0
    %v4053 = vpop.f32.mrb[0].mxu0
    %4054 = vdwg.mxu0
    %4055 = vmatprep.subr.bf16.mxu0 %v2955
    %4056 = vmatpush1.bf16.msra.mxu0 %v2954
    %4057 = vmatprep.subr.bf16.mxu0 %v2959
    %4058 = vmatpush1.bf16.msra.mxu0 %v2958
    %4059 = vmatprep.subr.bf16.mxu0 %v2963
    %4060 = vmatpush1.bf16.msra.mxu0 %v2962
    %4061 = vmatprep.subr.bf16.mxu0 %v2967
    %4062 = vmatpush1.bf16.msra.mxu0 %v2966
    %4063 = vmatprep.subr.bf16.mxu0 %v2971
    %4064 = vmatpush1.bf16.msra.mxu0 %v2970
    %4065 = vmatprep.subr.bf16.mxu0 %v2975
    %4066 = vmatpush1.bf16.msra.mxu0 %v2974
    %4067 = vmatprep.subr.bf16.mxu0 %v2979
    %4068 = vmatpush1.bf16.msra.mxu0 %v2978
    %4069 = vmatprep.subr.bf16.mxu0 %v2983
    %4070 = vmatpush1.bf16.msra.mxu0 %v2982
    %4071 = vmatprep.subr.bf16.mxu0 %v2987
    %4072 = vmatpush1.bf16.msra.mxu0 %v2986
    %4073 = vmatprep.subr.bf16.mxu0 %v2991
    %4074 = vmatpush1.bf16.msra.mxu0 %v2990
    %4075 = vmatprep.subr.bf16.mxu0 %v2995
    %4076 = vmatpush1.bf16.msra.mxu0 %v2994
    %4077 = vmatprep.subr.bf16.mxu0 %v2999
    %4078 = vmatpush1.bf16.msra.mxu0 %v2998
    %4079 = vmatprep.subr.bf16.mxu0 %v3003
    %4080 = vmatpush1.bf16.msra.mxu0 %v3002
    %4081 = vmatprep.subr.bf16.mxu0 %v3007
    %4082 = vmatpush1.bf16.msra.mxu0 %v3006
    %4083 = vmatprep.subr.bf16.mxu0 %v3011
    %4084 = vmatpush1.bf16.msra.mxu0 %v3010
    %4085 = vmatprep.subr.bf16.mxu0 %v3015
    %4086 = vmatpush1.bf16.msra.mxu0 %v3014
    %4087 = vmatprep.mubr.bf16.mxu0 %v783
    %4088 = vmatmul.mubr.bf16.gmra.mrb[0].mxu0 %v782
    %v4089 = vpop.f32.mrb[0].mxu0
    %v4090 = vadd.f32 %v4049, %v4089
    %v4091 = vpop.f32.mrb[0].mxu0
    %v4092 = vadd.f32 %v4051, %v4091
    %v4093 = vpop.f32.mrb[0].mxu0
    %v4094 = vpop.f32.mrb[0].mxu0
    %4095 = vdwg.mxu0
    %4096 = vmatprep.subr.bf16.mxu0 %v3019
    %4097 = vmatpush1.bf16.msra.mxu0 %v3018
    %4098 = vmatprep.subr.bf16.mxu0 %v3023
    %4099 = vmatpush1.bf16.msra.mxu0 %v3022
    %4100 = vmatprep.subr.bf16.mxu0 %v3027
    %4101 = vmatpush1.bf16.msra.mxu0 %v3026
    %4102 = vmatprep.subr.bf16.mxu0 %v3031
    %4103 = vmatpush1.bf16.msra.mxu0 %v3030
    %4104 = vmatprep.subr.bf16.mxu0 %v3035
    %4105 = vmatpush1.bf16.msra.mxu0 %v3034
    %4106 = vmatprep.subr.bf16.mxu0 %v3039
    %4107 = vmatpush1.bf16.msra.mxu0 %v3038
    %4108 = vmatprep.subr.bf16.mxu0 %v3043
    %4109 = vmatpush1.bf16.msra.mxu0 %v3042
    %4110 = vmatprep.subr.bf16.mxu0 %v3047
    %4111 = vmatpush1.bf16.msra.mxu0 %v3046
    %4112 = vmatprep.subr.bf16.mxu0 %v3051
    %4113 = vmatpush1.bf16.msra.mxu0 %v3050
    %4114 = vmatprep.subr.bf16.mxu0 %v3055
    %4115 = vmatpush1.bf16.msra.mxu0 %v3054
    %4116 = vmatprep.subr.bf16.mxu0 %v3059
    %4117 = vmatpush1.bf16.msra.mxu0 %v3058
    %4118 = vmatprep.subr.bf16.mxu0 %v3063
    %4119 = vmatpush1.bf16.msra.mxu0 %v3062
    %4120 = vmatprep.subr.bf16.mxu0 %v3067
    %4121 = vmatpush1.bf16.msra.mxu0 %v3066
    %4122 = vmatprep.subr.bf16.mxu0 %v3071
    %4123 = vmatpush1.bf16.msra.mxu0 %v3070
    %4124 = vmatprep.subr.bf16.mxu0 %v3075
    %4125 = vmatpush1.bf16.msra.mxu0 %v3074
    %4126 = vmatprep.subr.bf16.mxu0 %v3079
    %4127 = vmatpush1.bf16.msra.mxu0 %v3078
    %4128 = vmatprep.mubr.bf16.mxu0 %v785
    %4129 = vmatmul.mubr.bf16.gmra.mrb[0].mxu0 %v784
    %v4130 = vpop.f32.mrb[0].mxu0
    %v4131 = vadd.f32 %v4090, %v4130
    %v4132 = vpop.f32.mrb[0].mxu0
    %v4133 = vadd.f32 %v4092, %v4132
    %v4134 = vpop.f32.mrb[0].mxu0
    %v4135 = vpop.f32.mrb[0].mxu0
    %4136 = vdwg.mxu0
    %4137 = vmatprep.subr.bf16.mxu0 %v3083
    %4138 = vmatpush1.bf16.msra.mxu0 %v3082
    %4139 = vmatprep.subr.bf16.mxu0 %v3087
    %4140 = vmatpush1.bf16.msra.mxu0 %v3086
    %4141 = vmatprep.subr.bf16.mxu0 %v3091
    %4142 = vmatpush1.bf16.msra.mxu0 %v3090
    %4143 = vmatprep.subr.bf16.mxu0 %v3095
    %4144 = vmatpush1.bf16.msra.mxu0 %v3094
    %4145 = vmatprep.subr.bf16.mxu0 %v3099
    %4146 = vmatpush1.bf16.msra.mxu0 %v3098
    %4147 = vmatprep.subr.bf16.mxu0 %v3103
    %4148 = vmatpush1.bf16.msra.mxu0 %v3102
    %4149 = vmatprep.subr.bf16.mxu0 %v3107
    %4150 = vmatpush1.bf16.msra.mxu0 %v3106
    %4151 = vmatprep.subr.bf16.mxu0 %v3111
    %4152 = vmatpush1.bf16.msra.mxu0 %v3110
    %4153 = vmatprep.subr.bf16.mxu0 %v3115
    %4154 = vmatpush1.bf16.msra.mxu0 %v3114
    %4155 = vmatprep.subr.bf16.mxu0 %v3119
    %4156 = vmatpush1.bf16.msra.mxu0 %v3118
    %4157 = vmatprep.subr.bf16.mxu0 %v3123
    %4158 = vmatpush1.bf16.msra.mxu0 %v3122
    %4159 = vmatprep.subr.bf16.mxu0 %v3127
    %4160 = vmatpush1.bf16.msra.mxu0 %v3126
    %4161 = vmatprep.subr.bf16.mxu0 %v3131
    %4162 = vmatpush1.bf16.msra.mxu0 %v3130
    %4163 = vmatprep.subr.bf16.mxu0 %v3135
    %4164 = vmatpush1.bf16.msra.mxu0 %v3134
    %4165 = vmatprep.subr.bf16.mxu0 %v3139
    %4166 = vmatpush1.bf16.msra.mxu0 %v3138
    %4167 = vmatprep.subr.bf16.mxu0 %v3143
    %4168 = vmatpush1.bf16.msra.mxu0 %v3142
    %4169 = vmatprep.mubr.bf16.mxu0 %v787
    %4170 = vmatmul.mubr.bf16.gmra.mrb[0].mxu0 %v786
    %v4171 = vpop.f32.mrb[0].mxu0
    %v4172 = vadd.f32 %v4131, %v4171
    %v4173 = vpop.f32.mrb[0].mxu0
    %v4174 = vadd.f32 %v4133, %v4173
    %v4175 = vpop.f32.mrb[0].mxu0
    %v4176 = vpop.f32.mrb[0].mxu0
    %4177 = vdwg.mxu0
    %4178 = vmatprep.subr.bf16.mxu0 %v3147
    %4179 = vmatpush1.bf16.msra.mxu0 %v3146
    %4180 = vmatprep.subr.bf16.mxu0 %v3151
    %4181 = vmatpush1.bf16.msra.mxu0 %v3150
    %4182 = vmatprep.subr.bf16.mxu0 %v3155
    %4183 = vmatpush1.bf16.msra.mxu0 %v3154
    %4184 = vmatprep.subr.bf16.mxu0 %v3159
    %4185 = vmatpush1.bf16.msra.mxu0 %v3158
    %4186 = vmatprep.subr.bf16.mxu0 %v3163
    %4187 = vmatpush1.bf16.msra.mxu0 %v3162
    %4188 = vmatprep.subr.bf16.mxu0 %v3167
    %4189 = vmatpush1.bf16.msra.mxu0 %v3166
    %4190 = vmatprep.subr.bf16.mxu0 %v3171
    %4191 = vmatpush1.bf16.msra.mxu0 %v3170
    %4192 = vmatprep.subr.bf16.mxu0 %v3175
    %4193 = vmatpush1.bf16.msra.mxu0 %v3174
    %4194 = vmatprep.subr.bf16.mxu0 %v3179
    %4195 = vmatpush1.bf16.msra.mxu0 %v3178
    %4196 = vmatprep.subr.bf16.mxu0 %v3183
    %4197 = vmatpush1.bf16.msra.mxu0 %v3182
    %4198 = vmatprep.subr.bf16.mxu0 %v3187
    %4199 = vmatpush1.bf16.msra.mxu0 %v3186
    %4200 = vmatprep.subr.bf16.mxu0 %v3191
    %4201 = vmatpush1.bf16.msra.mxu0 %v3190
    %4202 = vmatprep.subr.bf16.mxu0 %v3195
    %4203 = vmatpush1.bf16.msra.mxu0 %v3194
    %4204 = vmatprep.subr.bf16.mxu0 %v3199
    %4205 = vmatpush1.bf16.msra.mxu0 %v3198
    %4206 = vmatprep.subr.bf16.mxu0 %v3203
    %4207 = vmatpush1.bf16.msra.mxu0 %v3202
    %4208 = vmatprep.subr.bf16.mxu0 %v3207
    %4209 = vmatpush1.bf16.msra.mxu0 %v3206
    %4210 = vmatprep.mubr.bf16.mxu0 %v789
    %4211 = vmatmul.mubr.bf16.gmra.mrb[0].mxu0 %v788
    %v4212 = vpop.f32.mrb[0].mxu0
    %v4213 = vadd.f32 %v4172, %v4212
    %v4214 = vpop.f32.mrb[0].mxu0
    %v4215 = vadd.f32 %v4174, %v4214
    %v4216 = vpop.f32.mrb[0].mxu0
    %v4217 = vpop.f32.mrb[0].mxu0
    %4218 = vdwg.mxu0
    %4219 = vmatprep.subr.bf16.mxu0 %v3211
    %4220 = vmatpush1.bf16.msra.mxu0 %v3210
    %4221 = vmatprep.subr.bf16.mxu0 %v3215
    %4222 = vmatpush1.bf16.msra.mxu0 %v3214
    %4223 = vmatprep.subr.bf16.mxu0 %v3219
    %4224 = vmatpush1.bf16.msra.mxu0 %v3218
    %4225 = vmatprep.subr.bf16.mxu0 %v3223
    %4226 = vmatpush1.bf16.msra.mxu0 %v3222
    %4227 = vmatprep.subr.bf16.mxu0 %v3227
    %4228 = vmatpush1.bf16.msra.mxu0 %v3226
    %4229 = vmatprep.subr.bf16.mxu0 %v3231
    %4230 = vmatpush1.bf16.msra.mxu0 %v3230
    %4231 = vmatprep.subr.bf16.mxu0 %v3235
    %4232 = vmatpush1.bf16.msra.mxu0 %v3234
    %4233 = vmatprep.subr.bf16.mxu0 %v3239
    %4234 = vmatpush1.bf16.msra.mxu0 %v3238
    %4235 = vmatprep.subr.bf16.mxu0 0
    %4236 = vmatpush1.bf16.msra.mxu0 0
    %4237 = vmatprep.subr.bf16.mxu0 0
    %4238 = vmatpush1.bf16.msra.mxu0 0
    %4239 = vmatprep.subr.bf16.mxu0 0
    %4240 = vmatpush1.bf16.msra.mxu0 0
    %4241 = vmatprep.subr.bf16.mxu0 0
    %4242 = vmatpush1.bf16.msra.mxu0 0
    %4243 = vmatprep.subr.bf16.mxu0 0
    %4244 = vmatpush1.bf16.msra.mxu0 0
    %4245 = vmatprep.subr.bf16.mxu0 0
    %4246 = vmatpush1.bf16.msra.mxu0 0
    %4247 = vmatprep.subr.bf16.mxu0 0
    %4248 = vmatpush1.bf16.msra.mxu0 0
    %4249 = vmatprep.subr.bf16.mxu0 0
    %4250 = vmatpush1.bf16.msra.mxu0 0
    %4251 = vmatprep.mubr.bf16.mxu0 0
    %4252 = vmatmul.mubr.bf16.gmra.mrb[0].mxu0 %v790
    %v4253 = vpop.f32.mrb[0].mxu0
    %v4254 = vadd.f32 %v4213, %v4253
    %v4255 = vpop.f32.mrb[0].mxu0
    %v4256 = vadd.f32 %v4215, %v4255
    %v4257 = vpop.f32.mrb[0].mxu0
    %v4258 = vpop.f32.mrb[0].mxu0
    %4259 = vdwg.mxu0
    %4260 = vmatprep.subr.bf16.mxu0 %v2637
    %4261 = vmatpush1.bf16.msra.mxu0 %v2636
    %4262 = vmatprep.subr.bf16.mxu0 %v2641
    %4263 = vmatpush1.bf16.msra.mxu0 %v2640
    %4264 = vmatprep.subr.bf16.mxu0 %v2645
    %4265 = vmatpush1.bf16.msra.mxu0 %v2644
    %4266 = vmatprep.subr.bf16.mxu0 %v2649
    %4267 = vmatpush1.bf16.msra.mxu0 %v2648
    %4268 = vmatprep.subr.bf16.mxu0 %v2653
    %4269 = vmatpush1.bf16.msra.mxu0 %v2652
    %4270 = vmatprep.subr.bf16.mxu0 %v2657
    %4271 = vmatpush1.bf16.msra.mxu0 %v2656
    %4272 = vmatprep.subr.bf16.mxu0 %v2661
    %4273 = vmatpush1.bf16.msra.mxu0 %v2660
    %4274 = vmatprep.subr.bf16.mxu0 %v2665
    %4275 = vmatpush1.bf16.msra.mxu0 %v2664
    %4276 = vmatprep.subr.bf16.mxu0 %v2669
    %4277 = vmatpush1.bf16.msra.mxu0 %v2668
    %4278 = vmatprep.subr.bf16.mxu0 %v2673
    %4279 = vmatpush1.bf16.msra.mxu0 %v2672
    %4280 = vmatprep.subr.bf16.mxu0 %v2677
    %4281 = vmatpush1.bf16.msra.mxu0 %v2676
    %4282 = vmatprep.subr.bf16.mxu0 %v2681
    %4283 = vmatpush1.bf16.msra.mxu0 %v2680
    %4284 = vmatprep.subr.bf16.mxu0 %v2685
    %4285 = vmatpush1.bf16.msra.mxu0 %v2684
    %4286 = vmatprep.subr.bf16.mxu0 %v2689
    %4287 = vmatpush1.bf16.msra.mxu0 %v2688
    %4288 = vmatprep.subr.bf16.mxu0 %v2693
    %4289 = vmatpush1.bf16.msra.mxu0 %v2692
    %4290 = vmatprep.subr.bf16.mxu0 %v2697
    %4291 = vmatpush1.bf16.msra.mxu0 %v2696
    %4292 = vmatprep.mubr.bf16.mxu0 %v773
    %4293 = vmatmul.mubr.bf16.gmra.mrb[0].mxu0 %v772
    %v4294 = vpop.f32.mrb[0].mxu0
    %v4295 = vadd.f32 %v734, %v4294
    %v4296 = vpop.f32.mrb[0].mxu0
    %v4297 = vadd.f32 %v738, %v4296
    %v4298 = vpop.f32.mrb[0].mxu0
    %v4299 = vpop.f32.mrb[0].mxu0
    %4300 = vdwg.mxu0
    %4301 = vmatprep.subr.bf16.mxu0 %v2701
    %4302 = vmatpush1.bf16.msra.mxu0 %v2700
    %4303 = vmatprep.subr.bf16.mxu0 %v2705
    %4304 = vmatpush1.bf16.msra.mxu0 %v2704
    %4305 = vmatprep.subr.bf16.mxu0 %v2709
    %4306 = vmatpush1.bf16.msra.mxu0 %v2708
    %4307 = vmatprep.subr.bf16.mxu0 %v2713
    %4308 = vmatpush1.bf16.msra.mxu0 %v2712
    %4309 = vmatprep.subr.bf16.mxu0 %v2717
    %4310 = vmatpush1.bf16.msra.mxu0 %v2716
    %4311 = vmatprep.subr.bf16.mxu0 %v2721
    %4312 = vmatpush1.bf16.msra.mxu0 %v2720
    %4313 = vmatprep.subr.bf16.mxu0 %v2725
    %4314 = vmatpush1.bf16.msra.mxu0 %v2724
    %4315 = vmatprep.subr.bf16.mxu0 %v2729
    %4316 = vmatpush1.bf16.msra.mxu0 %v2728
    %4317 = vmatprep.subr.bf16.mxu0 %v2733
    %4318 = vmatpush1.bf16.msra.mxu0 %v2732
    %4319 = vmatprep.subr.bf16.mxu0 %v2737
    %4320 = vmatpush1.bf16.msra.mxu0 %v2736
    %4321 = vmatprep.subr.bf16.mxu0 %v2741
    %4322 = vmatpush1.bf16.msra.mxu0 %v2740
    %4323 = vmatprep.subr.bf16.mxu0 %v2745
    %4324 = vmatpush1.bf16.msra.mxu0 %v2744
    %4325 = vmatprep.subr.bf16.mxu0 %v2749
    %4326 = vmatpush1.bf16.msra.mxu0 %v2748
    %4327 = vmatprep.subr.bf16.mxu0 %v2753
    %4328 = vmatpush1.bf16.msra.mxu0 %v2752
    %4329 = vmatprep.subr.bf16.mxu0 %v2757
    %4330 = vmatpush1.bf16.msra.mxu0 %v2756
    %4331 = vmatprep.subr.bf16.mxu0 %v2761
    %4332 = vmatpush1.bf16.msra.mxu0 %v2760
    %4333 = vmatprep.mubr.bf16.mxu0 %v775
    %4334 = vmatmul.mubr.bf16.gmra.mrb[0].mxu0 %v774
    %v4335 = vpop.f32.mrb[0].mxu0
    %v4336 = vadd.f32 %v4295, %v4335
    %v4337 = vpop.f32.mrb[0].mxu0
    %v4338 = vadd.f32 %v4297, %v4337
    %v4339 = vpop.f32.mrb[0].mxu0
    %v4340 = vpop.f32.mrb[0].mxu0
    %4341 = vdwg.mxu0
    %4342 = vmatprep.subr.bf16.mxu0 %v2765
    %4343 = vmatpush1.bf16.msra.mxu0 %v2764
    %4344 = vmatprep.subr.bf16.mxu0 %v2769
    %4345 = vmatpush1.bf16.msra.mxu0 %v2768
    %4346 = vmatprep.subr.bf16.mxu0 %v2773
    %4347 = vmatpush1.bf16.msra.mxu0 %v2772
    %4348 = vmatprep.subr.bf16.mxu0 %v2777
    %4349 = vmatpush1.bf16.msra.mxu0 %v2776
    %4350 = vmatprep.subr.bf16.mxu0 %v2781
    %4351 = vmatpush1.bf16.msra.mxu0 %v2780
    %4352 = vmatprep.subr.bf16.mxu0 %v2785
    %4353 = vmatpush1.bf16.msra.mxu0 %v2784
    %4354 = vmatprep.subr.bf16.mxu0 %v2789
    %4355 = vmatpush1.bf16.msra.mxu0 %v2788
    %4356 = vmatprep.subr.bf16.mxu0 %v2793
    %4357 = vmatpush1.bf16.msra.mxu0 %v2792
    %4358 = vmatprep.subr.bf16.mxu0 %v2797
    %4359 = vmatpush1.bf16.msra.mxu0 %v2796
    %4360 = vmatprep.subr.bf16.mxu0 %v2801
    %4361 = vmatpush1.bf16.msra.mxu0 %v2800
    %4362 = vmatprep.subr.bf16.mxu0 %v2805
    %4363 = vmatpush1.bf16.msra.mxu0 %v2804
    %4364 = vmatprep.subr.bf16.mxu0 %v2809
    %4365 = vmatpush1.bf16.msra.mxu0 %v2808
    %4366 = vmatprep.subr.bf16.mxu0 %v2813
    %4367 = vmatpush1.bf16.msra.mxu0 %v2812
    %4368 = vmatprep.subr.bf16.mxu0 %v2817
    %4369 = vmatpush1.bf16.msra.mxu0 %v2816
    %4370 = vmatprep.subr.bf16.mxu0 %v2821
    %4371 = vmatpush1.bf16.msra.mxu0 %v2820
    %4372 = vmatprep.subr.bf16.mxu0 %v2825
    %4373 = vmatpush1.bf16.msra.mxu0 %v2824
    %4374 = vmatprep.mubr.bf16.mxu0 %v777
    %4375 = vmatmul.mubr.bf16.gmra.mrb[0].mxu0 %v776
    %v4376 = vpop.f32.mrb[0].mxu0
    %v4377 = vadd.f32 %v4336, %v4376
    %v4378 = vpop.f32.mrb[0].mxu0
    %v4379 = vadd.f32 %v4338, %v4378
    %v4380 = vpop.f32.mrb[0].mxu0
    %v4381 = vpop.f32.mrb[0].mxu0
    %4382 = vdwg.mxu0
    %4383 = vmatprep.subr.bf16.mxu0 %v2829
    %4384 = vmatpush1.bf16.msra.mxu0 %v2828
    %4385 = vmatprep.subr.bf16.mxu0 %v2833
    %4386 = vmatpush1.bf16.msra.mxu0 %v2832
    %4387 = vmatprep.subr.bf16.mxu0 %v2837
    %4388 = vmatpush1.bf16.msra.mxu0 %v2836
    %4389 = vmatprep.subr.bf16.mxu0 %v2841
    %4390 = vmatpush1.bf16.msra.mxu0 %v2840
    %4391 = vmatprep.subr.bf16.mxu0 %v2845
    %4392 = vmatpush1.bf16.msra.mxu0 %v2844
    %4393 = vmatprep.subr.bf16.mxu0 %v2849
    %4394 = vmatpush1.bf16.msra.mxu0 %v2848
    %4395 = vmatprep.subr.bf16.mxu0 %v2853
    %4396 = vmatpush1.bf16.msra.mxu0 %v2852
    %4397 = vmatprep.subr.bf16.mxu0 %v2857
    %4398 = vmatpush1.bf16.msra.mxu0 %v2856
    %4399 = vmatprep.subr.bf16.mxu0 %v2861
    %4400 = vmatpush1.bf16.msra.mxu0 %v2860
    %4401 = vmatprep.subr.bf16.mxu0 %v2865
    %4402 = vmatpush1.bf16.msra.mxu0 %v2864
    %4403 = vmatprep.subr.bf16.mxu0 %v2869
    %4404 = vmatpush1.bf16.msra.mxu0 %v2868
    %4405 = vmatprep.subr.bf16.mxu0 %v2873
    %4406 = vmatpush1.bf16.msra.mxu0 %v2872
    %4407 = vmatprep.subr.bf16.mxu0 %v2877
    %4408 = vmatpush1.bf16.msra.mxu0 %v2876
    %4409 = vmatprep.subr.bf16.mxu0 %v2881
    %4410 = vmatpush1.bf16.msra.mxu0 %v2880
    %4411 = vmatprep.subr.bf16.mxu0 %v2885
    %4412 = vmatpush1.bf16.msra.mxu0 %v2884
    %4413 = vmatprep.subr.bf16.mxu0 %v2889
    %4414 = vmatpush1.bf16.msra.mxu0 %v2888
    %4415 = vmatprep.mubr.bf16.mxu0 %v779
    %4416 = vmatmul.mubr.bf16.gmra.mrb[0].mxu0 %v778
    %v4417 = vpop.f32.mrb[0].mxu0
    %v4418 = vadd.f32 %v4377, %v4417
    %v4419 = vpop.f32.mrb[0].mxu0
    %v4420 = vadd.f32 %v4379, %v4419
    %v4421 = vpop.f32.mrb[0].mxu0
    %v4422 = vpop.f32.mrb[0].mxu0
    %4423 = vdwg.mxu0
    %4424 = vmatprep.subr.bf16.mxu0 %v2893
    %4425 = vmatpush1.bf16.msra.mxu0 %v2892
    %4426 = vmatprep.subr.bf16.mxu0 %v2897
    %4427 = vmatpush1.bf16.msra.mxu0 %v2896
    %4428 = vmatprep.subr.bf16.mxu0 %v2901
    %4429 = vmatpush1.bf16.msra.mxu0 %v2900
    %4430 = vmatprep.subr.bf16.mxu0 %v2905
    %4431 = vmatpush1.bf16.msra.mxu0 %v2904
    %4432 = vmatprep.subr.bf16.mxu0 %v2909
    %4433 = vmatpush1.bf16.msra.mxu0 %v2908
    %4434 = vmatprep.subr.bf16.mxu0 %v2913
    %4435 = vmatpush1.bf16.msra.mxu0 %v2912
    %4436 = vmatprep.subr.bf16.mxu0 %v2917
    %4437 = vmatpush1.bf16.msra.mxu0 %v2916
    %4438 = vmatprep.subr.bf16.mxu0 %v2921
    %4439 = vmatpush1.bf16.msra.mxu0 %v2920
    %4440 = vmatprep.subr.bf16.mxu0 %v2925
    %4441 = vmatpush1.bf16.msra.mxu0 %v2924
    %4442 = vmatprep.subr.bf16.mxu0 %v2929
    %4443 = vmatpush1.bf16.msra.mxu0 %v2928
    %4444 = vmatprep.subr.bf16.mxu0 %v2933
    %4445 = vmatpush1.bf16.msra.mxu0 %v2932
    %4446 = vmatprep.subr.bf16.mxu0 %v2937
    %4447 = vmatpush1.bf16.msra.mxu0 %v2936
    %4448 = vmatprep.subr.bf16.mxu0 %v2941
    %4449 = vmatpush1.bf16.msra.mxu0 %v2940
    %4450 = vmatprep.subr.bf16.mxu0 %v2945
    %4451 = vmatpush1.bf16.msra.mxu0 %v2944
    %4452 = vmatprep.subr.bf16.mxu0 %v2949
    %4453 = vmatpush1.bf16.msra.mxu0 %v2948
    %4454 = vmatprep.subr.bf16.mxu0 %v2953
    %4455 = vmatpush1.bf16.msra.mxu0 %v2952
    %4456 = vmatprep.mubr.bf16.mxu0 %v781
    %4457 = vmatmul.mubr.bf16.gmra.mrb[0].mxu0 %v780
    %v4458 = vpop.f32.mrb[0].mxu0
    %v4459 = vadd.f32 %v4418, %v4458
    %v4460 = vpop.f32.mrb[0].mxu0
    %v4461 = vadd.f32 %v4420, %v4460
    %v4462 = vpop.f32.mrb[0].mxu0
    %v4463 = vpop.f32.mrb[0].mxu0
    %4464 = vdwg.mxu0
    %4465 = vmatprep.subr.bf16.mxu0 %v2957
    %4466 = vmatpush1.bf16.msra.mxu0 %v2956
    %4467 = vmatprep.subr.bf16.mxu0 %v2961
    %4468 = vmatpush1.bf16.msra.mxu0 %v2960
    %4469 = vmatprep.subr.bf16.mxu0 %v2965
    %4470 = vmatpush1.bf16.msra.mxu0 %v2964
    %4471 = vmatprep.subr.bf16.mxu0 %v2969
    %4472 = vmatpush1.bf16.msra.mxu0 %v2968
    %4473 = vmatprep.subr.bf16.mxu0 %v2973
    %4474 = vmatpush1.bf16.msra.mxu0 %v2972
    %4475 = vmatprep.subr.bf16.mxu0 %v2977
    %4476 = vmatpush1.bf16.msra.mxu0 %v2976
    %4477 = vmatprep.subr.bf16.mxu0 %v2981
    %4478 = vmatpush1.bf16.msra.mxu0 %v2980
    %4479 = vmatprep.subr.bf16.mxu0 %v2985
    %4480 = vmatpush1.bf16.msra.mxu0 %v2984
    %4481 = vmatprep.subr.bf16.mxu0 %v2989
    %4482 = vmatpush1.bf16.msra.mxu0 %v2988
    %4483 = vmatprep.subr.bf16.mxu0 %v2993
    %4484 = vmatpush1.bf16.msra.mxu0 %v2992
    %4485 = vmatprep.subr.bf16.mxu0 %v2997
    %4486 = vmatpush1.bf16.msra.mxu0 %v2996
    %4487 = vmatprep.subr.bf16.mxu0 %v3001
    %4488 = vmatpush1.bf16.msra.mxu0 %v3000
    %4489 = vmatprep.subr.bf16.mxu0 %v3005
    %4490 = vmatpush1.bf16.msra.mxu0 %v3004
    %4491 = vmatprep.subr.bf16.mxu0 %v3009
    %4492 = vmatpush1.bf16.msra.mxu0 %v3008
    %4493 = vmatprep.subr.bf16.mxu0 %v3013
    %4494 = vmatpush1.bf16.msra.mxu0 %v3012
    %4495 = vmatprep.subr.bf16.mxu0 %v3017
    %4496 = vmatpush1.bf16.msra.mxu0 %v3016
    %4497 = vmatprep.mubr.bf16.mxu0 %v783
    %4498 = vmatmul.mubr.bf16.gmra.mrb[0].mxu0 %v782
    %v4499 = vpop.f32.mrb[0].mxu0
    %v4500 = vadd.f32 %v4459, %v4499
    %v4501 = vpop.f32.mrb[0].mxu0
    %v4502 = vadd.f32 %v4461, %v4501
    %v4503 = vpop.f32.mrb[0].mxu0
    %v4504 = vpop.f32.mrb[0].mxu0
    %4505 = vdwg.mxu0
    %4506 = vmatprep.subr.bf16.mxu0 %v3021
    %4507 = vmatpush1.bf16.msra.mxu0 %v3020
    %4508 = vmatprep.subr.bf16.mxu0 %v3025
    %4509 = vmatpush1.bf16.msra.mxu0 %v3024
    %4510 = vmatprep.subr.bf16.mxu0 %v3029
    %4511 = vmatpush1.bf16.msra.mxu0 %v3028
    %4512 = vmatprep.subr.bf16.mxu0 %v3033
    %4513 = vmatpush1.bf16.msra.mxu0 %v3032
    %4514 = vmatprep.subr.bf16.mxu0 %v3037
    %4515 = vmatpush1.bf16.msra.mxu0 %v3036
    %4516 = vmatprep.subr.bf16.mxu0 %v3041
    %4517 = vmatpush1.bf16.msra.mxu0 %v3040
    %4518 = vmatprep.subr.bf16.mxu0 %v3045
    %4519 = vmatpush1.bf16.msra.mxu0 %v3044
    %4520 = vmatprep.subr.bf16.mxu0 %v3049
    %4521 = vmatpush1.bf16.msra.mxu0 %v3048
    %4522 = vmatprep.subr.bf16.mxu0 %v3053
    %4523 = vmatpush1.bf16.msra.mxu0 %v3052
    %4524 = vmatprep.subr.bf16.mxu0 %v3057
    %4525 = vmatpush1.bf16.msra.mxu0 %v3056
    %4526 = vmatprep.subr.bf16.mxu0 %v3061
    %4527 = vmatpush1.bf16.msra.mxu0 %v3060
    %4528 = vmatprep.subr.bf16.mxu0 %v3065
    %4529 = vmatpush1.bf16.msra.mxu0 %v3064
    %4530 = vmatprep.subr.bf16.mxu0 %v3069
    %4531 = vmatpush1.bf16.msra.mxu0 %v3068
    %4532 = vmatprep.subr.bf16.mxu0 %v3073
    %4533 = vmatpush1.bf16.msra.mxu0 %v3072
    %4534 = vmatprep.subr.bf16.mxu0 %v3077
    %4535 = vmatpush1.bf16.msra.mxu0 %v3076
    %4536 = vmatprep.subr.bf16.mxu0 %v3081
    %4537 = vmatpush1.bf16.msra.mxu0 %v3080
    %4538 = vmatprep.mubr.bf16.mxu0 %v785
    %4539 = vmatmul.mubr.bf16.gmra.mrb[0].mxu0 %v784
    %v4540 = vpop.f32.mrb[0].mxu0
    %v4541 = vadd.f32 %v4500, %v4540
    %v4542 = vpop.f32.mrb[0].mxu0
    %v4543 = vadd.f32 %v4502, %v4542
    %v4544 = vpop.f32.mrb[0].mxu0
    %v4545 = vpop.f32.mrb[0].mxu0
    %4546 = vdwg.mxu0
    %4547 = vmatprep.subr.bf16.mxu0 %v3085
    %4548 = vmatpush1.bf16.msra.mxu0 %v3084
    %4549 = vmatprep.subr.bf16.mxu0 %v3089
    %4550 = vmatpush1.bf16.msra.mxu0 %v3088
    %4551 = vmatprep.subr.bf16.mxu0 %v3093
    %4552 = vmatpush1.bf16.msra.mxu0 %v3092
    %4553 = vmatprep.subr.bf16.mxu0 %v3097
    %4554 = vmatpush1.bf16.msra.mxu0 %v3096
    %4555 = vmatprep.subr.bf16.mxu0 %v3101
    %4556 = vmatpush1.bf16.msra.mxu0 %v3100
    %4557 = vmatprep.subr.bf16.mxu0 %v3105
    %4558 = vmatpush1.bf16.msra.mxu0 %v3104
    %4559 = vmatprep.subr.bf16.mxu0 %v3109
    %4560 = vmatpush1.bf16.msra.mxu0 %v3108
    %4561 = vmatprep.subr.bf16.mxu0 %v3113
    %4562 = vmatpush1.bf16.msra.mxu0 %v3112
    %4563 = vmatprep.subr.bf16.mxu0 %v3117
    %4564 = vmatpush1.bf16.msra.mxu0 %v3116
    %4565 = vmatprep.subr.bf16.mxu0 %v3121
    %4566 = vmatpush1.bf16.msra.mxu0 %v3120
    %4567 = vmatprep.subr.bf16.mxu0 %v3125
    %4568 = vmatpush1.bf16.msra.mxu0 %v3124
    %4569 = vmatprep.subr.bf16.mxu0 %v3129
    %4570 = vmatpush1.bf16.msra.mxu0 %v3128
    %4571 = vmatprep.subr.bf16.mxu0 %v3133
    %4572 = vmatpush1.bf16.msra.mxu0 %v3132
    %4573 = vmatprep.subr.bf16.mxu0 %v3137
    %4574 = vmatpush1.bf16.msra.mxu0 %v3136
    %4575 = vmatprep.subr.bf16.mxu0 %v3141
    %4576 = vmatpush1.bf16.msra.mxu0 %v3140
    %4577 = vmatprep.subr.bf16.mxu0 %v3145
    %4578 = vmatpush1.bf16.msra.mxu0 %v3144
    %4579 = vmatprep.mubr.bf16.mxu0 %v787
    %4580 = vmatmul.mubr.bf16.gmra.mrb[0].mxu0 %v786
    %v4581 = vpop.f32.mrb[0].mxu0
    %v4582 = vadd.f32 %v4541, %v4581
    %v4583 = vpop.f32.mrb[0].mxu0
    %v4584 = vadd.f32 %v4543, %v4583
    %v4585 = vpop.f32.mrb[0].mxu0
    %v4586 = vpop.f32.mrb[0].mxu0
    %4587 = vdwg.mxu0
    %4588 = vmatprep.subr.bf16.mxu0 %v3149
    %4589 = vmatpush1.bf16.msra.mxu0 %v3148
    %4590 = vmatprep.subr.bf16.mxu0 %v3153
    %4591 = vmatpush1.bf16.msra.mxu0 %v3152
    %4592 = vmatprep.subr.bf16.mxu0 %v3157
    %4593 = vmatpush1.bf16.msra.mxu0 %v3156
    %4594 = vmatprep.subr.bf16.mxu0 %v3161
    %4595 = vmatpush1.bf16.msra.mxu0 %v3160
    %4596 = vmatprep.subr.bf16.mxu0 %v3165
    %4597 = vmatpush1.bf16.msra.mxu0 %v3164
    %4598 = vmatprep.subr.bf16.mxu0 %v3169
    %4599 = vmatpush1.bf16.msra.mxu0 %v3168
    %4600 = vmatprep.subr.bf16.mxu0 %v3173
    %4601 = vmatpush1.bf16.msra.mxu0 %v3172
    %4602 = vmatprep.subr.bf16.mxu0 %v3177
    %4603 = vmatpush1.bf16.msra.mxu0 %v3176
    %4604 = vmatprep.subr.bf16.mxu0 %v3181
    %4605 = vmatpush1.bf16.msra.mxu0 %v3180
    %4606 = vmatprep.subr.bf16.mxu0 %v3185
    %4607 = vmatpush1.bf16.msra.mxu0 %v3184
    %4608 = vmatprep.subr.bf16.mxu0 %v3189
    %4609 = vmatpush1.bf16.msra.mxu0 %v3188
    %4610 = vmatprep.subr.bf16.mxu0 %v3193
    %4611 = vmatpush1.bf16.msra.mxu0 %v3192
    %4612 = vmatprep.subr.bf16.mxu0 %v3197
    %4613 = vmatpush1.bf16.msra.mxu0 %v3196
    %4614 = vmatprep.subr.bf16.mxu0 %v3201
    %4615 = vmatpush1.bf16.msra.mxu0 %v3200
    %4616 = vmatprep.subr.bf16.mxu0 %v3205
    %4617 = vmatpush1.bf16.msra.mxu0 %v3204
    %4618 = vmatprep.subr.bf16.mxu0 %v3209
    %4619 = vmatpush1.bf16.msra.mxu0 %v3208
    %4620 = vmatprep.mubr.bf16.mxu0 %v789
    %4621 = vmatmul.mubr.bf16.gmra.mrb[0].mxu0 %v788
    %v4622 = vpop.f32.mrb[0].mxu0
    %v4623 = vadd.f32 %v4582, %v4622
    %v4624 = vpop.f32.mrb[0].mxu0
    %v4625 = vadd.f32 %v4584, %v4624
    %v4626 = vpop.f32.mrb[0].mxu0
    %v4627 = vpop.f32.mrb[0].mxu0
    %4628 = vdwg.mxu0
    %4629 = vmatprep.subr.bf16.mxu0 %v3213
    %4630 = vmatpush1.bf16.msra.mxu0 %v3212
    %4631 = vmatprep.subr.bf16.mxu0 %v3217
    %4632 = vmatpush1.bf16.msra.mxu0 %v3216
    %4633 = vmatprep.subr.bf16.mxu0 %v3221
    %4634 = vmatpush1.bf16.msra.mxu0 %v3220
    %4635 = vmatprep.subr.bf16.mxu0 %v3225
    %4636 = vmatpush1.bf16.msra.mxu0 %v3224
    %4637 = vmatprep.subr.bf16.mxu0 %v3229
    %4638 = vmatpush1.bf16.msra.mxu0 %v3228
    %4639 = vmatprep.subr.bf16.mxu0 %v3233
    %4640 = vmatpush1.bf16.msra.mxu0 %v3232
    %4641 = vmatprep.subr.bf16.mxu0 %v3237
    %4642 = vmatpush1.bf16.msra.mxu0 %v3236
    %4643 = vmatprep.subr.bf16.mxu0 %v3241
    %4644 = vmatpush1.bf16.msra.mxu0 %v3240
    %4645 = vmatprep.subr.bf16.mxu0 0
    %4646 = vmatpush1.bf16.msra.mxu0 0
    %4647 = vmatprep.subr.bf16.mxu0 0
    %4648 = vmatpush1.bf16.msra.mxu0 0
    %4649 = vmatprep.subr.bf16.mxu0 0
    %4650 = vmatpush1.bf16.msra.mxu0 0
    %4651 = vmatprep.subr.bf16.mxu0 0
    %4652 = vmatpush1.bf16.msra.mxu0 0
    %4653 = vmatprep.subr.bf16.mxu0 0
    %4654 = vmatpush1.bf16.msra.mxu0 0
    %4655 = vmatprep.subr.bf16.mxu0 0
    %4656 = vmatpush1.bf16.msra.mxu0 0
    %4657 = vmatprep.subr.bf16.mxu0 0
    %4658 = vmatpush1.bf16.msra.mxu0 0
    %4659 = vmatprep.subr.bf16.mxu0 0
    %4660 = vmatpush1.bf16.msra.mxu0 0
    %4661 = vmatprep.mubr.bf16.mxu0 0
    %4662 = vmatmul.mubr.bf16.gmra.mrb[0].mxu0 %v790
    %v4663 = vpop.f32.mrb[0].mxu0
    %v4664 = vadd.f32 %v4623, %v4663
    %v4665 = vpop.f32.mrb[0].mxu0
    %v4666 = vadd.f32 %v4625, %v4665
    %v4667 = vpop.f32.mrb[0].mxu0
    %v4668 = vpop.f32.mrb[0].mxu0
    %4669 = vdwg.mxu0
    %v4670 = vmax.f32 %v4254, 0.0
    %v4671 = vmax.f32 %v4256, 0.0
    %v4672 = vmax.f32 %v4664, 0.0
    %v4673 = vmax.f32 %v4666, 0.0
    %v4674 = vpack.c.bf16 %v4670, %v4670
    %v4675 = vpack.c.bf16 %v4671, %v4671
    %v4676 = vpack.c.bf16 %v4672, %v4672
    %v4677 = vpack.c.bf16 %v4673, %v4673
    %v4678 = vld [vmem:[#allocation6] sm:$0xff]
    %v4679 = vld [vmem:[#allocation6 + $0x8] sm:$0xff]
    %v4680 = vld [vmem:[#allocation6 + $0x10] sm:$0xff]
    %v4681 = vld [vmem:[#allocation6 + $0x18] sm:$0xff]
    %v4682 = vld [vmem:[#allocation6 + $0x20] sm:$0xff]
    %v4683 = vld [vmem:[#allocation6 + $0x28] sm:$0xff]
    %v4684 = vld [vmem:[#allocation6 + $0x30] sm:$0xff]
    %v4685 = vld [vmem:[#allocation6 + $0x38] sm:$0xff]
    %v4686 = vld [vmem:[#allocation6 + $0x40] sm:$0xff]
    %v4687 = vld [vmem:[#allocation6 + $0x48] sm:$0xff]
    %v4688 = vld [vmem:[#allocation6 + $0x50] sm:$0xff]
    %v4689 = vld [vmem:[#allocation6 + $0x58] sm:$0xff]
    %v4690 = vld [vmem:[#allocation6 + $0x60] sm:$0xff]
    %v4691 = vld [vmem:[#allocation6 + $0x68] sm:$0xff]
    %v4692 = vld [vmem:[#allocation6 + $0x70] sm:$0xff]
    %v4693 = vld [vmem:[#allocation6 + $0x78] sm:$0xff]
    %v4694 = vld [vmem:[#allocation6 + $0x80] sm:$0xff]
    %v4695 = vld [vmem:[#allocation6 + $0x88] sm:$0xff]
    %v4696 = vld [vmem:[#allocation6 + $0x90] sm:$0xff]
    %v4697 = vld [vmem:[#allocation6 + $0x98] sm:$0xff]
    %v4698 = vld [vmem:[#allocation6 + $0xa0] sm:$0xff]
    %v4699 = vld [vmem:[#allocation6 + $0xa8] sm:$0xff]
    %v4700 = vld [vmem:[#allocation6 + $0xb0] sm:$0xff]
    %v4701 = vld [vmem:[#allocation6 + $0xb8] sm:$0xff]
    %v4702 = vld [vmem:[#allocation6 + $0xc0] sm:$0xff]
    %v4703 = vld [vmem:[#allocation6 + $0xc8] sm:$0xff]
    %v4704 = vld [vmem:[#allocation6 + $0xd0] sm:$0xff]
    %v4705 = vld [vmem:[#allocation6 + $0xd8] sm:$0xff]
    %v4706 = vld [vmem:[#allocation6 + $0xe0] sm:$0xff]
    %v4707 = vld [vmem:[#allocation6 + $0xe8] sm:$0xff]
    %v4708 = vld [vmem:[#allocation6 + $0xf0] sm:$0xff]
    %v4709 = vld [vmem:[#allocation6 + $0xf8] sm:$0xff]
    %v4710 = vld [vmem:[#allocation6 + $0x100] sm:$0xff]
    %v4711 = vld [vmem:[#allocation6 + $0x108] sm:$0xff]
    %v4712 = vld [vmem:[#allocation6 + $0x110] sm:$0xff]
    %v4713 = vld [vmem:[#allocation6 + $0x118] sm:$0xff]
    %v4714 = vld [vmem:[#allocation6 + $0x120] sm:$0xff]
    %v4715 = vld [vmem:[#allocation6 + $0x128] sm:$0xff]
    %v4716 = vld [vmem:[#allocation6 + $0x130] sm:$0xff]
    %v4717 = vld [vmem:[#allocation6 + $0x138] sm:$0xff]
    %v4718 = vld [vmem:[#allocation6 + $0x140] sm:$0xff]
    %v4719 = vld [vmem:[#allocation6 + $0x148] sm:$0xff]
    %v4720 = vld [vmem:[#allocation6 + $0x150] sm:$0xff]
    %v4721 = vld [vmem:[#allocation6 + $0x158] sm:$0xff]
    %v4722 = vld [vmem:[#allocation6 + $0x160] sm:$0xff]
    %v4723 = vld [vmem:[#allocation6 + $0x168] sm:$0xff]
    %v4724 = vld [vmem:[#allocation6 + $0x170] sm:$0xff]
    %v4725 = vld [vmem:[#allocation6 + $0x178] sm:$0xff]
    %v4726 = vld [vmem:[#allocation6 + $0x180] sm:$0xff]
    %v4727 = vld [vmem:[#allocation6 + $0x188] sm:$0xff]
    %v4728 = vld [vmem:[#allocation6 + $0x190] sm:$0xff]
    %v4729 = vld [vmem:[#allocation6 + $0x198] sm:$0xff]
    %v4730 = vld [vmem:[#allocation6 + $0x1a0] sm:$0xff]
    %v4731 = vld [vmem:[#allocation6 + $0x1a8] sm:$0xff]
    %v4732 = vld [vmem:[#allocation6 + $0x1b0] sm:$0xff]
    %v4733 = vld [vmem:[#allocation6 + $0x1b8] sm:$0xff]
    %v4734 = vld [vmem:[#allocation6 + $0x1c0] sm:$0xff]
    %v4735 = vld [vmem:[#allocation6 + $0x1c8] sm:$0xff]
    %v4736 = vld [vmem:[#allocation6 + $0x1d0] sm:$0xff]
    %v4737 = vld [vmem:[#allocation6 + $0x1d8] sm:$0xff]
    %v4738 = vld [vmem:[#allocation6 + $0x1e0] sm:$0xff]
    %v4739 = vld [vmem:[#allocation6 + $0x1e8] sm:$0xff]
    %v4740 = vld [vmem:[#allocation6 + $0x1f0] sm:$0xff]
    %v4741 = vld [vmem:[#allocation6 + $0x1f8] sm:$0xff]
    %v4742 = vld [vmem:[#allocation6 + $0x200] sm:$0xff]
    %v4743 = vld [vmem:[#allocation6 + $0x208] sm:$0xff]
    %v4744 = vld [vmem:[#allocation6 + $0x210] sm:$0xff]
    %v4745 = vld [vmem:[#allocation6 + $0x218] sm:$0xff]
    %v4746 = vld [vmem:[#allocation6 + $0x220] sm:$0xff]
    %v4747 = vld [vmem:[#allocation6 + $0x228] sm:$0xff]
    %v4748 = vld [vmem:[#allocation6 + $0x230] sm:$0xff]
    %v4749 = vld [vmem:[#allocation6 + $0x238] sm:$0xff]
    %v4750 = vld [vmem:[#allocation6 + $0x240] sm:$0xff]
    %v4751 = vld [vmem:[#allocation6 + $0x248] sm:$0xff]
    %v4752 = vld [vmem:[#allocation6 + $0x250] sm:$0xff]
    %v4753 = vld [vmem:[#allocation6 + $0x258] sm:$0xff]
    %v4754 = vld [vmem:[#allocation6 + $0x260] sm:$0xff]
    %v4755 = vld [vmem:[#allocation6 + $0x268] sm:$0xff]
    %v4756 = vld [vmem:[#allocation6 + $0x270] sm:$0xff]
    %v4757 = vld [vmem:[#allocation6 + $0x278] sm:$0xff]
    %v4758 = vld [vmem:[#allocation6 + $0x280] sm:$0xff]
    %v4759 = vld [vmem:[#allocation6 + $0x288] sm:$0xff]
    %v4760 = vld [vmem:[#allocation6 + $0x290] sm:$0xff]
    %v4761 = vld [vmem:[#allocation6 + $0x298] sm:$0xff]
    %v4762 = vld [vmem:[#allocation6 + $0x2a0] sm:$0xff]
    %v4763 = vld [vmem:[#allocation6 + $0x2a8] sm:$0xff]
    %v4764 = vld [vmem:[#allocation6 + $0x2b0] sm:$0xff]
    %v4765 = vld [vmem:[#allocation6 + $0x2b8] sm:$0xff]
    %v4766 = vld [vmem:[#allocation6 + $0x2c0] sm:$0xff]
    %v4767 = vld [vmem:[#allocation6 + $0x2c8] sm:$0xff]
    %v4768 = vld [vmem:[#allocation6 + $0x2d0] sm:$0xff]
    %v4769 = vld [vmem:[#allocation6 + $0x2d8] sm:$0xff]
    %v4770 = vld [vmem:[#allocation6 + $0x2e0] sm:$0xff]
    %v4771 = vld [vmem:[#allocation6 + $0x2e8] sm:$0xff]
    %v4772 = vld [vmem:[#allocation6 + $0x2f0] sm:$0xff]
    %v4773 = vld [vmem:[#allocation6 + $0x2f8] sm:$0xff]
    %v4774 = vld [vmem:[#allocation6 + $0x300] sm:$0xff]
    %v4775 = vld [vmem:[#allocation6 + $0x308] sm:$0xff]
    %v4776 = vld [vmem:[#allocation6 + $0x310] sm:$0xff]
    %v4777 = vld [vmem:[#allocation6 + $0x318] sm:$0xff]
    %v4778 = vld [vmem:[#allocation6 + $0x320] sm:$0xff]
    %v4779 = vld [vmem:[#allocation6 + $0x328] sm:$0xff]
    %v4780 = vld [vmem:[#allocation6 + $0x330] sm:$0xff]
    %v4781 = vld [vmem:[#allocation6 + $0x338] sm:$0xff]
    %v4782 = vld [vmem:[#allocation6 + $0x340] sm:$0xff]
    %v4783 = vld [vmem:[#allocation6 + $0x348] sm:$0xff]
    %v4784 = vld [vmem:[#allocation6 + $0x350] sm:$0xff]
    %v4785 = vld [vmem:[#allocation6 + $0x358] sm:$0xff]
    %v4786 = vld [vmem:[#allocation6 + $0x360] sm:$0xff]
    %v4787 = vld [vmem:[#allocation6 + $0x368] sm:$0xff]
    %v4788 = vld [vmem:[#allocation6 + $0x370] sm:$0xff]
    %v4789 = vld [vmem:[#allocation6 + $0x378] sm:$0xff]
    %v4790 = vld [vmem:[#allocation6 + $0x380] sm:$0xff]
    %v4791 = vld [vmem:[#allocation6 + $0x388] sm:$0xff]
    %v4792 = vld [vmem:[#allocation6 + $0x390] sm:$0xff]
    %v4793 = vld [vmem:[#allocation6 + $0x398] sm:$0xff]
    %v4794 = vld [vmem:[#allocation6 + $0x3a0] sm:$0xff]
    %v4795 = vld [vmem:[#allocation6 + $0x3a8] sm:$0xff]
    %v4796 = vld [vmem:[#allocation6 + $0x3b0] sm:$0xff]
    %v4797 = vld [vmem:[#allocation6 + $0x3b8] sm:$0xff]
    %v4798 = vld [vmem:[#allocation6 + $0x3c0] sm:$0xff]
    %v4799 = vld [vmem:[#allocation6 + $0x3c8] sm:$0xff]
    %v4800 = vld [vmem:[#allocation6 + $0x3d0] sm:$0xff]
    %v4801 = vld [vmem:[#allocation6 + $0x3d8] sm:$0xff]
    %v4802 = vld [vmem:[#allocation6 + $0x3e0] sm:$0xff]
    %v4803 = vld [vmem:[#allocation6 + $0x3e8] sm:$0xff]
    %v4804 = vld [vmem:[#allocation6 + $0x3f0] sm:$0xff]
    %v4805 = vld [vmem:[#allocation6 + $0x3f8] sm:$0xff]
    %v4806 = vld [vmem:[#allocation7] sm:$0xf]
    %v4808 = vlaneseq
    %v4809 = vshrl.u32 %v4808, 7
    %v4810 = vsub.s32 0, %v4809
    %v4811 = vrot.slane %v4806, %v4810
    %v4812 = vlaneseq
    %v4813 = vshrl.u32 %v4812, 7
    %v4814 = vsub.s32 1, %v4813
    %v4815 = vrot.slane %v4806, %v4814
    %v4816 = vlaneseq
    %v4817 = vshrl.u32 %v4816, 7
    %v4818 = vsub.s32 2, %v4817
    %v4819 = vrot.slane %v4806, %v4818
    %v4820 = vlaneseq
    %v4821 = vshrl.u32 %v4820, 7
    %v4822 = vsub.s32 3, %v4821
    %v4823 = vrot.slane %v4806, %v4822
    %v4956 = vunpack.c.l.b16 %v4678
    %v4957 = vunpack.c.h.b16 %v4678
    %v4958 = vunpack.c.l.b16 %v4679
    %v4959 = vunpack.c.h.b16 %v4679
    %v4960 = vunpack.c.l.b16 %v4680
    %v4961 = vunpack.c.h.b16 %v4680
    %v4962 = vunpack.c.l.b16 %v4681
    %v4963 = vunpack.c.h.b16 %v4681
    %v4964 = vunpack.c.l.b16 %v4682
    %v4965 = vunpack.c.h.b16 %v4682
    %v4966 = vunpack.c.l.b16 %v4683
    %v4967 = vunpack.c.h.b16 %v4683
    %v4968 = vunpack.c.l.b16 %v4684
    %v4969 = vunpack.c.h.b16 %v4684
    %v4970 = vunpack.c.l.b16 %v4685
    %v4971 = vunpack.c.h.b16 %v4685
    %v4972 = vunpack.c.l.b16 %v4686
    %v4973 = vunpack.c.h.b16 %v4686
    %v4974 = vunpack.c.l.b16 %v4687
    %v4975 = vunpack.c.h.b16 %v4687
    %v4976 = vunpack.c.l.b16 %v4688
    %v4977 = vunpack.c.h.b16 %v4688
    %v4978 = vunpack.c.l.b16 %v4689
    %v4979 = vunpack.c.h.b16 %v4689
    %v4980 = vunpack.c.l.b16 %v4690
    %v4981 = vunpack.c.h.b16 %v4690
    %v4982 = vunpack.c.l.b16 %v4691
    %v4983 = vunpack.c.h.b16 %v4691
    %v4984 = vunpack.c.l.b16 %v4692
    %v4985 = vunpack.c.h.b16 %v4692
    %v4986 = vunpack.c.l.b16 %v4693
    %v4987 = vunpack.c.h.b16 %v4693
    %v4988 = vunpack.c.l.b16 %v4694
    %v4989 = vunpack.c.h.b16 %v4694
    %v4990 = vunpack.c.l.b16 %v4695
    %v4991 = vunpack.c.h.b16 %v4695
    %v4992 = vunpack.c.l.b16 %v4696
    %v4993 = vunpack.c.h.b16 %v4696
    %v4994 = vunpack.c.l.b16 %v4697
    %v4995 = vunpack.c.h.b16 %v4697
    %v4996 = vunpack.c.l.b16 %v4698
    %v4997 = vunpack.c.h.b16 %v4698
    %v4998 = vunpack.c.l.b16 %v4699
    %v4999 = vunpack.c.h.b16 %v4699
    %v5000 = vunpack.c.l.b16 %v4700
    %v5001 = vunpack.c.h.b16 %v4700
    %v5002 = vunpack.c.l.b16 %v4701
    %v5003 = vunpack.c.h.b16 %v4701
    %v5004 = vunpack.c.l.b16 %v4702
    %v5005 = vunpack.c.h.b16 %v4702
    %v5006 = vunpack.c.l.b16 %v4703
    %v5007 = vunpack.c.h.b16 %v4703
    %v5008 = vunpack.c.l.b16 %v4704
    %v5009 = vunpack.c.h.b16 %v4704
    %v5010 = vunpack.c.l.b16 %v4705
    %v5011 = vunpack.c.h.b16 %v4705
    %v5012 = vunpack.c.l.b16 %v4706
    %v5013 = vunpack.c.h.b16 %v4706
    %v5014 = vunpack.c.l.b16 %v4707
    %v5015 = vunpack.c.h.b16 %v4707
    %v5016 = vunpack.c.l.b16 %v4708
    %v5017 = vunpack.c.h.b16 %v4708
    %v5018 = vunpack.c.l.b16 %v4709
    %v5019 = vunpack.c.h.b16 %v4709
    %v5020 = vunpack.c.l.b16 %v4710
    %v5021 = vunpack.c.h.b16 %v4710
    %v5022 = vunpack.c.l.b16 %v4711
    %v5023 = vunpack.c.h.b16 %v4711
    %v5024 = vunpack.c.l.b16 %v4712
    %v5025 = vunpack.c.h.b16 %v4712
    %v5026 = vunpack.c.l.b16 %v4713
    %v5027 = vunpack.c.h.b16 %v4713
    %v5028 = vunpack.c.l.b16 %v4714
    %v5029 = vunpack.c.h.b16 %v4714
    %v5030 = vunpack.c.l.b16 %v4715
    %v5031 = vunpack.c.h.b16 %v4715
    %v5032 = vunpack.c.l.b16 %v4716
    %v5033 = vunpack.c.h.b16 %v4716
    %v5034 = vunpack.c.l.b16 %v4717
    %v5035 = vunpack.c.h.b16 %v4717
    %v5036 = vunpack.c.l.b16 %v4718
    %v5037 = vunpack.c.h.b16 %v4718
    %v5038 = vunpack.c.l.b16 %v4719
    %v5039 = vunpack.c.h.b16 %v4719
    %v5040 = vunpack.c.l.b16 %v4720
    %v5041 = vunpack.c.h.b16 %v4720
    %v5042 = vunpack.c.l.b16 %v4721
    %v5043 = vunpack.c.h.b16 %v4721
    %v5044 = vunpack.c.l.b16 %v4722
    %v5045 = vunpack.c.h.b16 %v4722
    %v5046 = vunpack.c.l.b16 %v4723
    %v5047 = vunpack.c.h.b16 %v4723
    %v5048 = vunpack.c.l.b16 %v4724
    %v5049 = vunpack.c.h.b16 %v4724
    %v5050 = vunpack.c.l.b16 %v4725
    %v5051 = vunpack.c.h.b16 %v4725
    %v5052 = vunpack.c.l.b16 %v4726
    %v5053 = vunpack.c.h.b16 %v4726
    %v5054 = vunpack.c.l.b16 %v4727
    %v5055 = vunpack.c.h.b16 %v4727
    %v5056 = vunpack.c.l.b16 %v4728
    %v5057 = vunpack.c.h.b16 %v4728
    %v5058 = vunpack.c.l.b16 %v4729
    %v5059 = vunpack.c.h.b16 %v4729
    %v5060 = vunpack.c.l.b16 %v4730
    %v5061 = vunpack.c.h.b16 %v4730
    %v5062 = vunpack.c.l.b16 %v4731
    %v5063 = vunpack.c.h.b16 %v4731
    %v5064 = vunpack.c.l.b16 %v4732
    %v5065 = vunpack.c.h.b16 %v4732
    %v5066 = vunpack.c.l.b16 %v4733
    %v5067 = vunpack.c.h.b16 %v4733
    %v5068 = vunpack.c.l.b16 %v4734
    %v5069 = vunpack.c.h.b16 %v4734
    %v5070 = vunpack.c.l.b16 %v4735
    %v5071 = vunpack.c.h.b16 %v4735
    %v5072 = vunpack.c.l.b16 %v4736
    %v5073 = vunpack.c.h.b16 %v4736
    %v5074 = vunpack.c.l.b16 %v4737
    %v5075 = vunpack.c.h.b16 %v4737
    %v5076 = vunpack.c.l.b16 %v4738
    %v5077 = vunpack.c.h.b16 %v4738
    %v5078 = vunpack.c.l.b16 %v4739
    %v5079 = vunpack.c.h.b16 %v4739
    %v5080 = vunpack.c.l.b16 %v4740
    %v5081 = vunpack.c.h.b16 %v4740
    %v5082 = vunpack.c.l.b16 %v4741
    %v5083 = vunpack.c.h.b16 %v4741
    %v5084 = vunpack.c.l.b16 %v4742
    %v5085 = vunpack.c.h.b16 %v4742
    %v5086 = vunpack.c.l.b16 %v4743
    %v5087 = vunpack.c.h.b16 %v4743
    %v5088 = vunpack.c.l.b16 %v4744
    %v5089 = vunpack.c.h.b16 %v4744
    %v5090 = vunpack.c.l.b16 %v4745
    %v5091 = vunpack.c.h.b16 %v4745
    %v5092 = vunpack.c.l.b16 %v4746
    %v5093 = vunpack.c.h.b16 %v4746
    %v5094 = vunpack.c.l.b16 %v4747
    %v5095 = vunpack.c.h.b16 %v4747
    %v5096 = vunpack.c.l.b16 %v4748
    %v5097 = vunpack.c.h.b16 %v4748
    %v5098 = vunpack.c.l.b16 %v4749
    %v5099 = vunpack.c.h.b16 %v4749
    %v5100 = vunpack.c.l.b16 %v4750
    %v5101 = vunpack.c.h.b16 %v4750
    %v5102 = vunpack.c.l.b16 %v4751
    %v5103 = vunpack.c.h.b16 %v4751
    %v5104 = vunpack.c.l.b16 %v4752
    %v5105 = vunpack.c.h.b16 %v4752
    %v5106 = vunpack.c.l.b16 %v4753
    %v5107 = vunpack.c.h.b16 %v4753
    %v5108 = vunpack.c.l.b16 %v4754
    %v5109 = vunpack.c.h.b16 %v4754
    %v5110 = vunpack.c.l.b16 %v4755
    %v5111 = vunpack.c.h.b16 %v4755
    %v5112 = vunpack.c.l.b16 %v4756
    %v5113 = vunpack.c.h.b16 %v4756
    %v5114 = vunpack.c.l.b16 %v4757
    %v5115 = vunpack.c.h.b16 %v4757
    %v5116 = vunpack.c.l.b16 %v4758
    %v5117 = vunpack.c.h.b16 %v4758
    %v5118 = vunpack.c.l.b16 %v4759
    %v5119 = vunpack.c.h.b16 %v4759
    %v5120 = vunpack.c.l.b16 %v4760
    %v5121 = vunpack.c.h.b16 %v4760
    %v5122 = vunpack.c.l.b16 %v4761
    %v5123 = vunpack.c.h.b16 %v4761
    %v5124 = vunpack.c.l.b16 %v4762
    %v5125 = vunpack.c.h.b16 %v4762
    %v5126 = vunpack.c.l.b16 %v4763
    %v5127 = vunpack.c.h.b16 %v4763
    %v5128 = vunpack.c.l.b16 %v4764
    %v5129 = vunpack.c.h.b16 %v4764
    %v5130 = vunpack.c.l.b16 %v4765
    %v5131 = vunpack.c.h.b16 %v4765
    %v5132 = vunpack.c.l.b16 %v4766
    %v5133 = vunpack.c.h.b16 %v4766
    %v5134 = vunpack.c.l.b16 %v4767
    %v5135 = vunpack.c.h.b16 %v4767
    %v5136 = vunpack.c.l.b16 %v4768
    %v5137 = vunpack.c.h.b16 %v4768
    %v5138 = vunpack.c.l.b16 %v4769
    %v5139 = vunpack.c.h.b16 %v4769
    %v5140 = vunpack.c.l.b16 %v4770
    %v5141 = vunpack.c.h.b16 %v4770
    %v5142 = vunpack.c.l.b16 %v4771
    %v5143 = vunpack.c.h.b16 %v4771
    %v5144 = vunpack.c.l.b16 %v4772
    %v5145 = vunpack.c.h.b16 %v4772
    %v5146 = vunpack.c.l.b16 %v4773
    %v5147 = vunpack.c.h.b16 %v4773
    %v5148 = vunpack.c.l.b16 %v4774
    %v5149 = vunpack.c.h.b16 %v4774
    %v5150 = vunpack.c.l.b16 %v4775
    %v5151 = vunpack.c.h.b16 %v4775
    %v5152 = vunpack.c.l.b16 %v4776
    %v5153 = vunpack.c.h.b16 %v4776
    %v5154 = vunpack.c.l.b16 %v4777
    %v5155 = vunpack.c.h.b16 %v4777
    %v5156 = vunpack.c.l.b16 %v4778
    %v5157 = vunpack.c.h.b16 %v4778
    %v5158 = vunpack.c.l.b16 %v4779
    %v5159 = vunpack.c.h.b16 %v4779
    %v5160 = vunpack.c.l.b16 %v4780
    %v5161 = vunpack.c.h.b16 %v4780
    %v5162 = vunpack.c.l.b16 %v4781
    %v5163 = vunpack.c.h.b16 %v4781
    %v5164 = vunpack.c.l.b16 %v4782
    %v5165 = vunpack.c.h.b16 %v4782
    %v5166 = vunpack.c.l.b16 %v4783
    %v5167 = vunpack.c.h.b16 %v4783
    %v5168 = vunpack.c.l.b16 %v4784
    %v5169 = vunpack.c.h.b16 %v4784
    %v5170 = vunpack.c.l.b16 %v4785
    %v5171 = vunpack.c.h.b16 %v4785
    %v5172 = vunpack.c.l.b16 %v4786
    %v5173 = vunpack.c.h.b16 %v4786
    %v5174 = vunpack.c.l.b16 %v4787
    %v5175 = vunpack.c.h.b16 %v4787
    %v5176 = vunpack.c.l.b16 %v4788
    %v5177 = vunpack.c.h.b16 %v4788
    %v5178 = vunpack.c.l.b16 %v4789
    %v5179 = vunpack.c.h.b16 %v4789
    %v5180 = vunpack.c.l.b16 %v4790
    %v5181 = vunpack.c.h.b16 %v4790
    %v5182 = vunpack.c.l.b16 %v4791
    %v5183 = vunpack.c.h.b16 %v4791
    %v5184 = vunpack.c.l.b16 %v4792
    %v5185 = vunpack.c.h.b16 %v4792
    %v5186 = vunpack.c.l.b16 %v4793
    %v5187 = vunpack.c.h.b16 %v4793
    %v5188 = vunpack.c.l.b16 %v4794
    %v5189 = vunpack.c.h.b16 %v4794
    %v5190 = vunpack.c.l.b16 %v4795
    %v5191 = vunpack.c.h.b16 %v4795
    %v5192 = vunpack.c.l.b16 %v4796
    %v5193 = vunpack.c.h.b16 %v4796
    %v5194 = vunpack.c.l.b16 %v4797
    %v5195 = vunpack.c.h.b16 %v4797
    %v5196 = vunpack.c.l.b16 %v4798
    %v5197 = vunpack.c.h.b16 %v4798
    %v5198 = vunpack.c.l.b16 %v4799
    %v5199 = vunpack.c.h.b16 %v4799
    %v5200 = vunpack.c.l.b16 %v4800
    %v5201 = vunpack.c.h.b16 %v4800
    %v5202 = vunpack.c.l.b16 %v4801
    %v5203 = vunpack.c.h.b16 %v4801
    %v5204 = vunpack.c.l.b16 %v4802
    %v5205 = vunpack.c.h.b16 %v4802
    %v5206 = vunpack.c.l.b16 %v4803
    %v5207 = vunpack.c.h.b16 %v4803
    %v5208 = vunpack.c.l.b16 %v4804
    %v5209 = vunpack.c.h.b16 %v4804
    %v5210 = vunpack.c.l.b16 %v4805
    %v5211 = vunpack.c.h.b16 %v4805
    %v5212 = vpack.c.b16 %v4960, %v4956
    %v5213 = vpack.c.b16 %v4961, %v4957
    %v5214 = vpack.c.b16 %v4962, %v4958
    %v5215 = vpack.c.b16 %v4963, %v4959
    %v5216 = vpack.c.b16 %v4968, %v4964
    %v5217 = vpack.c.b16 %v4969, %v4965
    %v5218 = vpack.c.b16 %v4970, %v4966
    %v5219 = vpack.c.b16 %v4971, %v4967
    %v5220 = vpack.c.b16 %v4976, %v4972
    %v5221 = vpack.c.b16 %v4977, %v4973
    %v5222 = vpack.c.b16 %v4978, %v4974
    %v5223 = vpack.c.b16 %v4979, %v4975
    %v5224 = vpack.c.b16 %v4984, %v4980
    %v5225 = vpack.c.b16 %v4985, %v4981
    %v5226 = vpack.c.b16 %v4986, %v4982
    %v5227 = vpack.c.b16 %v4987, %v4983
    %v5228 = vpack.c.b16 %v4992, %v4988
    %v5229 = vpack.c.b16 %v4993, %v4989
    %v5230 = vpack.c.b16 %v4994, %v4990
    %v5231 = vpack.c.b16 %v4995, %v4991
    %v5232 = vpack.c.b16 %v5000, %v4996
    %v5233 = vpack.c.b16 %v5001, %v4997
    %v5234 = vpack.c.b16 %v5002, %v4998
    %v5235 = vpack.c.b16 %v5003, %v4999
    %v5236 = vpack.c.b16 %v5008, %v5004
    %v5237 = vpack.c.b16 %v5009, %v5005
    %v5238 = vpack.c.b16 %v5010, %v5006
    %v5239 = vpack.c.b16 %v5011, %v5007
    %v5240 = vpack.c.b16 %v5016, %v5012
    %v5241 = vpack.c.b16 %v5017, %v5013
    %v5242 = vpack.c.b16 %v5018, %v5014
    %v5243 = vpack.c.b16 %v5019, %v5015
    %v5244 = vpack.c.b16 %v5024, %v5020
    %v5245 = vpack.c.b16 %v5025, %v5021
    %v5246 = vpack.c.b16 %v5026, %v5022
    %v5247 = vpack.c.b16 %v5027, %v5023
    %v5248 = vpack.c.b16 %v5032, %v5028
    %v5249 = vpack.c.b16 %v5033, %v5029
    %v5250 = vpack.c.b16 %v5034, %v5030
    %v5251 = vpack.c.b16 %v5035, %v5031
    %v5252 = vpack.c.b16 %v5040, %v5036
    %v5253 = vpack.c.b16 %v5041, %v5037
    %v5254 = vpack.c.b16 %v5042, %v5038
    %v5255 = vpack.c.b16 %v5043, %v5039
    %v5256 = vpack.c.b16 %v5048, %v5044
    %v5257 = vpack.c.b16 %v5049, %v5045
    %v5258 = vpack.c.b16 %v5050, %v5046
    %v5259 = vpack.c.b16 %v5051, %v5047
    %v5260 = vpack.c.b16 %v5056, %v5052
    %v5261 = vpack.c.b16 %v5057, %v5053
    %v5262 = vpack.c.b16 %v5058, %v5054
    %v5263 = vpack.c.b16 %v5059, %v5055
    %v5264 = vpack.c.b16 %v5064, %v5060
    %v5265 = vpack.c.b16 %v5065, %v5061
    %v5266 = vpack.c.b16 %v5066, %v5062
    %v5267 = vpack.c.b16 %v5067, %v5063
    %v5268 = vpack.c.b16 %v5072, %v5068
    %v5269 = vpack.c.b16 %v5073, %v5069
    %v5270 = vpack.c.b16 %v5074, %v5070
    %v5271 = vpack.c.b16 %v5075, %v5071
    %v5272 = vpack.c.b16 %v5080, %v5076
    %v5273 = vpack.c.b16 %v5081, %v5077
    %v5274 = vpack.c.b16 %v5082, %v5078
    %v5275 = vpack.c.b16 %v5083, %v5079
    %v5276 = vpack.c.b16 %v5088, %v5084
    %v5277 = vpack.c.b16 %v5089, %v5085
    %v5278 = vpack.c.b16 %v5090, %v5086
    %v5279 = vpack.c.b16 %v5091, %v5087
    %v5280 = vpack.c.b16 %v5096, %v5092
    %v5281 = vpack.c.b16 %v5097, %v5093
    %v5282 = vpack.c.b16 %v5098, %v5094
    %v5283 = vpack.c.b16 %v5099, %v5095
    %v5284 = vpack.c.b16 %v5104, %v5100
    %v5285 = vpack.c.b16 %v5105, %v5101
    %v5286 = vpack.c.b16 %v5106, %v5102
    %v5287 = vpack.c.b16 %v5107, %v5103
    %v5288 = vpack.c.b16 %v5112, %v5108
    %v5289 = vpack.c.b16 %v5113, %v5109
    %v5290 = vpack.c.b16 %v5114, %v5110
    %v5291 = vpack.c.b16 %v5115, %v5111
    %v5292 = vpack.c.b16 %v5120, %v5116
    %v5293 = vpack.c.b16 %v5121, %v5117
    %v5294 = vpack.c.b16 %v5122, %v5118
    %v5295 = vpack.c.b16 %v5123, %v5119
    %v5296 = vpack.c.b16 %v5128, %v5124
    %v5297 = vpack.c.b16 %v5129, %v5125
    %v5298 = vpack.c.b16 %v5130, %v5126
    %v5299 = vpack.c.b16 %v5131, %v5127
    %v5300 = vpack.c.b16 %v5136, %v5132
    %v5301 = vpack.c.b16 %v5137, %v5133
    %v5302 = vpack.c.b16 %v5138, %v5134
    %v5303 = vpack.c.b16 %v5139, %v5135
    %v5304 = vpack.c.b16 %v5144, %v5140
    %v5305 = vpack.c.b16 %v5145, %v5141
    %v5306 = vpack.c.b16 %v5146, %v5142
    %v5307 = vpack.c.b16 %v5147, %v5143
    %v5308 = vpack.c.b16 %v5152, %v5148
    %v5309 = vpack.c.b16 %v5153, %v5149
    %v5310 = vpack.c.b16 %v5154, %v5150
    %v5311 = vpack.c.b16 %v5155, %v5151
    %v5312 = vpack.c.b16 %v5160, %v5156
    %v5313 = vpack.c.b16 %v5161, %v5157
    %v5314 = vpack.c.b16 %v5162, %v5158
    %v5315 = vpack.c.b16 %v5163, %v5159
    %v5316 = vpack.c.b16 %v5168, %v5164
    %v5317 = vpack.c.b16 %v5169, %v5165
    %v5318 = vpack.c.b16 %v5170, %v5166
    %v5319 = vpack.c.b16 %v5171, %v5167
    %v5320 = vpack.c.b16 %v5176, %v5172
    %v5321 = vpack.c.b16 %v5177, %v5173
    %v5322 = vpack.c.b16 %v5178, %v5174
    %v5323 = vpack.c.b16 %v5179, %v5175
    %v5324 = vpack.c.b16 %v5184, %v5180
    %v5325 = vpack.c.b16 %v5185, %v5181
    %v5326 = vpack.c.b16 %v5186, %v5182
    %v5327 = vpack.c.b16 %v5187, %v5183
    %v5328 = vpack.c.b16 %v5192, %v5188
    %v5329 = vpack.c.b16 %v5193, %v5189
    %v5330 = vpack.c.b16 %v5194, %v5190
    %v5331 = vpack.c.b16 %v5195, %v5191
    %v5332 = vpack.c.b16 %v5200, %v5196
    %v5333 = vpack.c.b16 %v5201, %v5197
    %v5334 = vpack.c.b16 %v5202, %v5198
    %v5335 = vpack.c.b16 %v5203, %v5199
    %v5336 = vpack.c.b16 %v5208, %v5204
    %v5337 = vpack.c.b16 %v5209, %v5205
    %v5338 = vpack.c.b16 %v5210, %v5206
    %v5339 = vpack.c.b16 %v5211, %v5207
    %5468 = vmatprep.subr.bf16.mxu0 %v5213
    %5469 = vmatpush1.bf16.msra.mxu0 %v5212
    %5470 = vmatprep.subr.bf16.mxu0 %v5217
    %5471 = vmatpush1.bf16.msra.mxu0 %v5216
    %5472 = vmatprep.subr.bf16.mxu0 %v5221
    %5473 = vmatpush1.bf16.msra.mxu0 %v5220
    %5474 = vmatprep.subr.bf16.mxu0 %v5225
    %5475 = vmatpush1.bf16.msra.mxu0 %v5224
    %5476 = vmatprep.subr.bf16.mxu0 %v5229
    %5477 = vmatpush1.bf16.msra.mxu0 %v5228
    %5478 = vmatprep.subr.bf16.mxu0 %v5233
    %5479 = vmatpush1.bf16.msra.mxu0 %v5232
    %5480 = vmatprep.subr.bf16.mxu0 %v5237
    %5481 = vmatpush1.bf16.msra.mxu0 %v5236
    %5482 = vmatprep.subr.bf16.mxu0 %v5241
    %5483 = vmatpush1.bf16.msra.mxu0 %v5240
    %5484 = vmatprep.subr.bf16.mxu0 %v5245
    %5485 = vmatpush1.bf16.msra.mxu0 %v5244
    %5486 = vmatprep.subr.bf16.mxu0 %v5249
    %5487 = vmatpush1.bf16.msra.mxu0 %v5248
    %5488 = vmatprep.subr.bf16.mxu0 %v5253
    %5489 = vmatpush1.bf16.msra.mxu0 %v5252
    %5490 = vmatprep.subr.bf16.mxu0 %v5257
    %5491 = vmatpush1.bf16.msra.mxu0 %v5256
    %5492 = vmatprep.subr.bf16.mxu0 %v5261
    %5493 = vmatpush1.bf16.msra.mxu0 %v5260
    %5494 = vmatprep.subr.bf16.mxu0 %v5265
    %5495 = vmatpush1.bf16.msra.mxu0 %v5264
    %5496 = vmatprep.subr.bf16.mxu0 %v5269
    %5497 = vmatpush1.bf16.msra.mxu0 %v5268
    %5498 = vmatprep.subr.bf16.mxu0 %v5273
    %5499 = vmatpush1.bf16.msra.mxu0 %v5272
    %5500 = vmatprep.mubr.bf16.mxu0 %v4675
    %5501 = vmatmul.mubr.bf16.gmra.mrb[0].mxu0 %v4674
    %v5502 = vpop.f32.mrb[0].mxu0
    %v5503 = vadd.f32 %v4811, %v5502
    %v5504 = vpop.f32.mrb[0].mxu0
    %v5505 = vadd.f32 %v4815, %v5504
    %v5506 = vpop.f32.mrb[0].mxu0
    %v5507 = vpop.f32.mrb[0].mxu0
    %5508 = vdwg.mxu0
    %5509 = vmatprep.subr.bf16.mxu0 %v5277
    %5510 = vmatpush1.bf16.msra.mxu0 %v5276
    %5511 = vmatprep.subr.bf16.mxu0 %v5281
    %5512 = vmatpush1.bf16.msra.mxu0 %v5280
    %5513 = vmatprep.subr.bf16.mxu0 %v5285
    %5514 = vmatpush1.bf16.msra.mxu0 %v5284
    %5515 = vmatprep.subr.bf16.mxu0 %v5289
    %5516 = vmatpush1.bf16.msra.mxu0 %v5288
    %5517 = vmatprep.subr.bf16.mxu0 %v5293
    %5518 = vmatpush1.bf16.msra.mxu0 %v5292
    %5519 = vmatprep.subr.bf16.mxu0 %v5297
    %5520 = vmatpush1.bf16.msra.mxu0 %v5296
    %5521 = vmatprep.subr.bf16.mxu0 %v5301
    %5522 = vmatpush1.bf16.msra.mxu0 %v5300
    %5523 = vmatprep.subr.bf16.mxu0 %v5305
    %5524 = vmatpush1.bf16.msra.mxu0 %v5304
    %5525 = vmatprep.subr.bf16.mxu0 %v5309
    %5526 = vmatpush1.bf16.msra.mxu0 %v5308
    %5527 = vmatprep.subr.bf16.mxu0 %v5313
    %5528 = vmatpush1.bf16.msra.mxu0 %v5312
    %5529 = vmatprep.subr.bf16.mxu0 %v5317
    %5530 = vmatpush1.bf16.msra.mxu0 %v5316
    %5531 = vmatprep.subr.bf16.mxu0 %v5321
    %5532 = vmatpush1.bf16.msra.mxu0 %v5320
    %5533 = vmatprep.subr.bf16.mxu0 %v5325
    %5534 = vmatpush1.bf16.msra.mxu0 %v5324
    %5535 = vmatprep.subr.bf16.mxu0 %v5329
    %5536 = vmatpush1.bf16.msra.mxu0 %v5328
    %5537 = vmatprep.subr.bf16.mxu0 %v5333
    %5538 = vmatpush1.bf16.msra.mxu0 %v5332
    %5539 = vmatprep.subr.bf16.mxu0 %v5337
    %5540 = vmatpush1.bf16.msra.mxu0 %v5336
    %5541 = vmatprep.mubr.bf16.mxu0 %v4677
    %5542 = vmatmul.mubr.bf16.gmra.mrb[0].mxu0 %v4676
    %v5543 = vpop.f32.mrb[0].mxu0
    %v5544 = vadd.f32 %v5503, %v5543
    %v5545 = vpop.f32.mrb[0].mxu0
    %v5546 = vadd.f32 %v5505, %v5545
    %v5547 = vpop.f32.mrb[0].mxu0
    %v5548 = vpop.f32.mrb[0].mxu0
    %5549 = vdwg.mxu0
    %5550 = vmatprep.subr.bf16.mxu0 %v5215
    %5551 = vmatpush1.bf16.msra.mxu0 %v5214
    %5552 = vmatprep.subr.bf16.mxu0 %v5219
    %5553 = vmatpush1.bf16.msra.mxu0 %v5218
    %5554 = vmatprep.subr.bf16.mxu0 %v5223
    %5555 = vmatpush1.bf16.msra.mxu0 %v5222
    %5556 = vmatprep.subr.bf16.mxu0 %v5227
    %5557 = vmatpush1.bf16.msra.mxu0 %v5226
    %5558 = vmatprep.subr.bf16.mxu0 %v5231
    %5559 = vmatpush1.bf16.msra.mxu0 %v5230
    %5560 = vmatprep.subr.bf16.mxu0 %v5235
    %5561 = vmatpush1.bf16.msra.mxu0 %v5234
    %5562 = vmatprep.subr.bf16.mxu0 %v5239
    %5563 = vmatpush1.bf16.msra.mxu0 %v5238
    %5564 = vmatprep.subr.bf16.mxu0 %v5243
    %5565 = vmatpush1.bf16.msra.mxu0 %v5242
    %5566 = vmatprep.subr.bf16.mxu0 %v5247
    %5567 = vmatpush1.bf16.msra.mxu0 %v5246
    %5568 = vmatprep.subr.bf16.mxu0 %v5251
    %5569 = vmatpush1.bf16.msra.mxu0 %v5250
    %5570 = vmatprep.subr.bf16.mxu0 %v5255
    %5571 = vmatpush1.bf16.msra.mxu0 %v5254
    %5572 = vmatprep.subr.bf16.mxu0 %v5259
    %5573 = vmatpush1.bf16.msra.mxu0 %v5258
    %5574 = vmatprep.subr.bf16.mxu0 %v5263
    %5575 = vmatpush1.bf16.msra.mxu0 %v5262
    %5576 = vmatprep.subr.bf16.mxu0 %v5267
    %5577 = vmatpush1.bf16.msra.mxu0 %v5266
    %5578 = vmatprep.subr.bf16.mxu0 %v5271
    %5579 = vmatpush1.bf16.msra.mxu0 %v5270
    %5580 = vmatprep.subr.bf16.mxu0 %v5275
    %5581 = vmatpush1.bf16.msra.mxu0 %v5274
    %5582 = vmatprep.mubr.bf16.mxu0 %v4675
    %5583 = vmatmul.mubr.bf16.gmra.mrb[0].mxu0 %v4674
    %v5584 = vpop.f32.mrb[0].mxu0
    %v5585 = vadd.f32 %v4819, %v5584
    %v5586 = vpop.f32.mrb[0].mxu0
    %v5587 = vadd.f32 %v4823, %v5586
    %v5588 = vpop.f32.mrb[0].mxu0
    %v5589 = vpop.f32.mrb[0].mxu0
    %5590 = vdwg.mxu0
    %5591 = vmatprep.subr.bf16.mxu0 %v5279
    %5592 = vmatpush1.bf16.msra.mxu0 %v5278
    %5593 = vmatprep.subr.bf16.mxu0 %v5283
    %5594 = vmatpush1.bf16.msra.mxu0 %v5282
    %5595 = vmatprep.subr.bf16.mxu0 %v5287
    %5596 = vmatpush1.bf16.msra.mxu0 %v5286
    %5597 = vmatprep.subr.bf16.mxu0 %v5291
    %5598 = vmatpush1.bf16.msra.mxu0 %v5290
    %5599 = vmatprep.subr.bf16.mxu0 %v5295
    %5600 = vmatpush1.bf16.msra.mxu0 %v5294
    %5601 = vmatprep.subr.bf16.mxu0 %v5299
    %5602 = vmatpush1.bf16.msra.mxu0 %v5298
    %5603 = vmatprep.subr.bf16.mxu0 %v5303
    %5604 = vmatpush1.bf16.msra.mxu0 %v5302
    %5605 = vmatprep.subr.bf16.mxu0 %v5307
    %5606 = vmatpush1.bf16.msra.mxu0 %v5306
    %5607 = vmatprep.subr.bf16.mxu0 %v5311
    %5608 = vmatpush1.bf16.msra.mxu0 %v5310
    %5609 = vmatprep.subr.bf16.mxu0 %v5315
    %5610 = vmatpush1.bf16.msra.mxu0 %v5314
    %5611 = vmatprep.subr.bf16.mxu0 %v5319
    %5612 = vmatpush1.bf16.msra.mxu0 %v5318
    %5613 = vmatprep.subr.bf16.mxu0 %v5323
    %5614 = vmatpush1.bf16.msra.mxu0 %v5322
    %5615 = vmatprep.subr.bf16.mxu0 %v5327
    %5616 = vmatpush1.bf16.msra.mxu0 %v5326
    %5617 = vmatprep.subr.bf16.mxu0 %v5331
    %5618 = vmatpush1.bf16.msra.mxu0 %v5330
    %5619 = vmatprep.subr.bf16.mxu0 %v5335
    %5620 = vmatpush1.bf16.msra.mxu0 %v5334
    %5621 = vmatprep.subr.bf16.mxu0 %v5339
    %5622 = vmatpush1.bf16.msra.mxu0 %v5338
    %5623 = vmatprep.mubr.bf16.mxu0 %v4677
    %5624 = vmatmul.mubr.bf16.gmra.mrb[0].mxu0 %v4676
    %v5625 = vpop.f32.mrb[0].mxu0
    %v5626 = vadd.f32 %v5585, %v5625
    %v5627 = vpop.f32.mrb[0].mxu0
    %v5628 = vadd.f32 %v5587, %v5627
    %v5629 = vpop.f32.mrb[0].mxu0
    %v5630 = vpop.f32.mrb[0].mxu0
    %5631 = vdwg.mxu0
    %v5632 = vmax.f32 %v5544, 0.0
    %v5633 = vmax.f32 %v5546, 0.0
    %v5634 = vmax.f32 %v5626, 0.0
    %v5635 = vmax.f32 %v5628, 0.0
    %v5636 = vpack.c.bf16 %v5632, %v5632
    %v5637 = vpack.c.bf16 %v5633, %v5633
    %v5638 = vpack.c.bf16 %v5634, %v5634
    %v5639 = vpack.c.bf16 %v5635, %v5635
    %v5640 = vld [vmem:[#allocation9] sm:$0xf]
    %v5641 = vld [vmem:[#allocation9 + $0x4] sm:$0xf]
    %v5642 = vld [vmem:[#allocation9 + $0x8] sm:$0xf]
    %v5643 = vld [vmem:[#allocation9 + $0xc] sm:$0xf]
    %v5644 = vld [vmem:[#allocation9 + $0x10] sm:$0xf]
    %v5645 = vld [vmem:[#allocation9 + $0x14] sm:$0xf]
    %v5646 = vld [vmem:[#allocation9 + $0x18] sm:$0xf]
    %v5647 = vld [vmem:[#allocation9 + $0x1c] sm:$0xf]
    %v5648 = vld [vmem:[#allocation9 + $0x20] sm:$0xf]
    %v5649 = vld [vmem:[#allocation9 + $0x24] sm:$0xf]
    %v5650 = vld [vmem:[#allocation9 + $0x28] sm:$0xf]
    %v5651 = vld [vmem:[#allocation9 + $0x2c] sm:$0xf]
    %v5652 = vld [vmem:[#allocation9 + $0x30] sm:$0xf]
    %v5653 = vld [vmem:[#allocation9 + $0x34] sm:$0xf]
    %v5654 = vld [vmem:[#allocation9 + $0x38] sm:$0xf]
    %v5655 = vld [vmem:[#allocation9 + $0x3c] sm:$0xf]
    %v5656 = vld [vmem:[#allocation9 + $0x40] sm:$0xf]
    %v5657 = vld [vmem:[#allocation9 + $0x44] sm:$0xf]
    %v5658 = vld [vmem:[#allocation9 + $0x48] sm:$0xf]
    %v5659 = vld [vmem:[#allocation9 + $0x4c] sm:$0xf]
    %v5660 = vld [vmem:[#allocation9 + $0x50] sm:$0xf]
    %v5661 = vld [vmem:[#allocation9 + $0x54] sm:$0xf]
    %v5662 = vld [vmem:[#allocation9 + $0x58] sm:$0xf]
    %v5663 = vld [vmem:[#allocation9 + $0x5c] sm:$0xf]
    %v5664 = vld [vmem:[#allocation9 + $0x60] sm:$0xf]
    %v5665 = vld [vmem:[#allocation9 + $0x64] sm:$0xf]
    %v5666 = vld [vmem:[#allocation9 + $0x68] sm:$0xf]
    %v5667 = vld [vmem:[#allocation9 + $0x6c] sm:$0xf]
    %v5668 = vld [vmem:[#allocation9 + $0x70] sm:$0xf]
    %v5669 = vld [vmem:[#allocation9 + $0x74] sm:$0xf]
    %v5670 = vld [vmem:[#allocation9 + $0x78] sm:$0xf]
    %v5671 = vld [vmem:[#allocation9 + $0x7c] sm:$0xf]
    %v5672 = vld [vmem:[#allocation9 + $0x80] sm:$0xf]
    %v5673 = vld [vmem:[#allocation9 + $0x84] sm:$0xf]
    %v5674 = vld [vmem:[#allocation9 + $0x88] sm:$0xf]
    %v5675 = vld [vmem:[#allocation9 + $0x8c] sm:$0xf]
    %v5676 = vld [vmem:[#allocation9 + $0x90] sm:$0xf]
    %v5677 = vld [vmem:[#allocation9 + $0x94] sm:$0xf]
    %v5678 = vld [vmem:[#allocation9 + $0x98] sm:$0xf]
    %v5679 = vld [vmem:[#allocation9 + $0x9c] sm:$0xf]
    %v5680 = vld [vmem:[#allocation9 + $0xa0] sm:$0xf]
    %v5681 = vld [vmem:[#allocation9 + $0xa4] sm:$0xf]
    %v5682 = vld [vmem:[#allocation9 + $0xa8] sm:$0xf]
    %v5683 = vld [vmem:[#allocation9 + $0xac] sm:$0xf]
    %v5684 = vld [vmem:[#allocation9 + $0xb0] sm:$0xf]
    %v5685 = vld [vmem:[#allocation9 + $0xb4] sm:$0xf]
    %v5686 = vld [vmem:[#allocation9 + $0xb8] sm:$0xf]
    %v5687 = vld [vmem:[#allocation9 + $0xbc] sm:$0xf]
    %v5688 = vld [vmem:[#allocation9 + $0xc0] sm:$0xf]
    %v5689 = vld [vmem:[#allocation9 + $0xc4] sm:$0xf]
    %v5690 = vld [vmem:[#allocation9 + $0xc8] sm:$0xf]
    %v5691 = vld [vmem:[#allocation9 + $0xcc] sm:$0xf]
    %v5692 = vld [vmem:[#allocation9 + $0xd0] sm:$0xf]
    %v5693 = vld [vmem:[#allocation9 + $0xd4] sm:$0xf]
    %v5694 = vld [vmem:[#allocation9 + $0xd8] sm:$0xf]
    %v5695 = vld [vmem:[#allocation9 + $0xdc] sm:$0xf]
    %v5696 = vld [vmem:[#allocation9 + $0xe0] sm:$0xf]
    %v5697 = vld [vmem:[#allocation9 + $0xe4] sm:$0xf]
    %v5698 = vld [vmem:[#allocation9 + $0xe8] sm:$0xf]
    %v5699 = vld [vmem:[#allocation9 + $0xec] sm:$0xf]
    %v5700 = vld [vmem:[#allocation9 + $0xf0] sm:$0xf]
    %v5701 = vld [vmem:[#allocation9 + $0xf4] sm:$0xf]
    %v5702 = vld [vmem:[#allocation9 + $0xf8] sm:$0xf]
    %v5703 = vld [vmem:[#allocation9 + $0xfc] sm:$0xf]
    %v5704 = vld [vmem:[#allocation10] sm:$0x1]
    %v5706 = vlaneseq
    %v5707 = vshrl.u32 %v5706, 7
    %v5708 = vsub.s32 0, %v5707
    %v5709 = vrot.slane %v5704, %v5708
    %v5775 = vunpack.c.l.b16 %v5640
    %v5776 = vunpack.c.l.b16 %v5641
    %v5777 = vunpack.c.l.b16 %v5642
    %v5778 = vunpack.c.l.b16 %v5643
    %v5779 = vunpack.c.l.b16 %v5644
    %v5780 = vunpack.c.l.b16 %v5645
    %v5781 = vunpack.c.l.b16 %v5646
    %v5782 = vunpack.c.l.b16 %v5647
    %v5783 = vunpack.c.l.b16 %v5648
    %v5784 = vunpack.c.l.b16 %v5649
    %v5785 = vunpack.c.l.b16 %v5650
    %v5786 = vunpack.c.l.b16 %v5651
    %v5787 = vunpack.c.l.b16 %v5652
    %v5788 = vunpack.c.l.b16 %v5653
    %v5789 = vunpack.c.l.b16 %v5654
    %v5790 = vunpack.c.l.b16 %v5655
    %v5791 = vunpack.c.l.b16 %v5656
    %v5792 = vunpack.c.l.b16 %v5657
    %v5793 = vunpack.c.l.b16 %v5658
    %v5794 = vunpack.c.l.b16 %v5659
    %v5795 = vunpack.c.l.b16 %v5660
    %v5796 = vunpack.c.l.b16 %v5661
    %v5797 = vunpack.c.l.b16 %v5662
    %v5798 = vunpack.c.l.b16 %v5663
    %v5799 = vunpack.c.l.b16 %v5664
    %v5800 = vunpack.c.l.b16 %v5665
    %v5801 = vunpack.c.l.b16 %v5666
    %v5802 = vunpack.c.l.b16 %v5667
    %v5803 = vunpack.c.l.b16 %v5668
    %v5804 = vunpack.c.l.b16 %v5669
    %v5805 = vunpack.c.l.b16 %v5670
    %v5806 = vunpack.c.l.b16 %v5671
    %v5807 = vunpack.c.l.b16 %v5672
    %v5808 = vunpack.c.l.b16 %v5673
    %v5809 = vunpack.c.l.b16 %v5674
    %v5810 = vunpack.c.l.b16 %v5675
    %v5811 = vunpack.c.l.b16 %v5676
    %v5812 = vunpack.c.l.b16 %v5677
    %v5813 = vunpack.c.l.b16 %v5678
    %v5814 = vunpack.c.l.b16 %v5679
    %v5815 = vunpack.c.l.b16 %v5680
    %v5816 = vunpack.c.l.b16 %v5681
    %v5817 = vunpack.c.l.b16 %v5682
    %v5818 = vunpack.c.l.b16 %v5683
    %v5819 = vunpack.c.l.b16 %v5684
    %v5820 = vunpack.c.l.b16 %v5685
    %v5821 = vunpack.c.l.b16 %v5686
    %v5822 = vunpack.c.l.b16 %v5687
    %v5823 = vunpack.c.l.b16 %v5688
    %v5824 = vunpack.c.l.b16 %v5689
    %v5825 = vunpack.c.l.b16 %v5690
    %v5826 = vunpack.c.l.b16 %v5691
    %v5827 = vunpack.c.l.b16 %v5692
    %v5828 = vunpack.c.l.b16 %v5693
    %v5829 = vunpack.c.l.b16 %v5694
    %v5830 = vunpack.c.l.b16 %v5695
    %v5831 = vunpack.c.l.b16 %v5696
    %v5832 = vunpack.c.l.b16 %v5697
    %v5833 = vunpack.c.l.b16 %v5698
    %v5834 = vunpack.c.l.b16 %v5699
    %v5835 = vunpack.c.l.b16 %v5700
    %v5836 = vunpack.c.l.b16 %v5701
    %v5837 = vunpack.c.l.b16 %v5702
    %v5838 = vunpack.c.l.b16 %v5703
    %v5839 = vpack.c.b16 %v5776, %v5775
    %v5840 = vpack.c.b16 %v5778, %v5777
    %v5841 = vpack.c.b16 %v5780, %v5779
    %v5842 = vpack.c.b16 %v5782, %v5781
    %v5843 = vpack.c.b16 %v5784, %v5783
    %v5844 = vpack.c.b16 %v5786, %v5785
    %v5845 = vpack.c.b16 %v5788, %v5787
    %v5846 = vpack.c.b16 %v5790, %v5789
    %v5847 = vpack.c.b16 %v5792, %v5791
    %v5848 = vpack.c.b16 %v5794, %v5793
    %v5849 = vpack.c.b16 %v5796, %v5795
    %v5850 = vpack.c.b16 %v5798, %v5797
    %v5851 = vpack.c.b16 %v5800, %v5799
    %v5852 = vpack.c.b16 %v5802, %v5801
    %v5853 = vpack.c.b16 %v5804, %v5803
    %v5854 = vpack.c.b16 %v5806, %v5805
    %v5855 = vpack.c.b16 %v5808, %v5807
    %v5856 = vpack.c.b16 %v5810, %v5809
    %v5857 = vpack.c.b16 %v5812, %v5811
    %v5858 = vpack.c.b16 %v5814, %v5813
    %v5859 = vpack.c.b16 %v5816, %v5815
    %v5860 = vpack.c.b16 %v5818, %v5817
    %v5861 = vpack.c.b16 %v5820, %v5819
    %v5862 = vpack.c.b16 %v5822, %v5821
    %v5863 = vpack.c.b16 %v5824, %v5823
    %v5864 = vpack.c.b16 %v5826, %v5825
    %v5865 = vpack.c.b16 %v5828, %v5827
    %v5866 = vpack.c.b16 %v5830, %v5829
    %v5867 = vpack.c.b16 %v5832, %v5831
    %v5868 = vpack.c.b16 %v5834, %v5833
    %v5869 = vpack.c.b16 %v5836, %v5835
    %v5870 = vpack.c.b16 %v5838, %v5837
    %5903 = vmatprep.subr.bf16.mxu0 0
    %5904 = vmatpush1.bf16.msra.mxu0 %v5839
    %5905 = vmatprep.subr.bf16.mxu0 0
    %5906 = vmatpush1.bf16.msra.mxu0 %v5840
    %5907 = vmatprep.subr.bf16.mxu0 0
    %5908 = vmatpush1.bf16.msra.mxu0 %v5841
    %5909 = vmatprep.subr.bf16.mxu0 0
    %5910 = vmatpush1.bf16.msra.mxu0 %v5842
    %5911 = vmatprep.subr.bf16.mxu0 0
    %5912 = vmatpush1.bf16.msra.mxu0 %v5843
    %5913 = vmatprep.subr.bf16.mxu0 0
    %5914 = vmatpush1.bf16.msra.mxu0 %v5844
    %5915 = vmatprep.subr.bf16.mxu0 0
    %5916 = vmatpush1.bf16.msra.mxu0 %v5845
    %5917 = vmatprep.subr.bf16.mxu0 0
    %5918 = vmatpush1.bf16.msra.mxu0 %v5846
    %5919 = vmatprep.subr.bf16.mxu0 0
    %5920 = vmatpush1.bf16.msra.mxu0 %v5847
    %5921 = vmatprep.subr.bf16.mxu0 0
    %5922 = vmatpush1.bf16.msra.mxu0 %v5848
    %5923 = vmatprep.subr.bf16.mxu0 0
    %5924 = vmatpush1.bf16.msra.mxu0 %v5849
    %5925 = vmatprep.subr.bf16.mxu0 0
    %5926 = vmatpush1.bf16.msra.mxu0 %v5850
    %5927 = vmatprep.subr.bf16.mxu0 0
    %5928 = vmatpush1.bf16.msra.mxu0 %v5851
    %5929 = vmatprep.subr.bf16.mxu0 0
    %5930 = vmatpush1.bf16.msra.mxu0 %v5852
    %5931 = vmatprep.subr.bf16.mxu0 0
    %5932 = vmatpush1.bf16.msra.mxu0 %v5853
    %5933 = vmatprep.subr.bf16.mxu0 0
    %5934 = vmatpush1.bf16.msra.mxu0 %v5854
    %5935 = vmatprep.mubr.bf16.mxu0 %v5637
    %5936 = vmatmul.mubr.bf16.gmra.mrb[0].mxu0 %v5636
    %v5937 = vpop.f32.mrb[0].mxu0
    %v5938 = vadd.f32 %v5709, %v5937
    %v5939 = vpop.f32.mrb[0].mxu0
    %v5940 = vpop.f32.mrb[0].mxu0
    %v5941 = vpop.f32.mrb[0].mxu0
    %5942 = vdwg.mxu0
    %5943 = vmatprep.subr.bf16.mxu0 0
    %5944 = vmatpush1.bf16.msra.mxu0 %v5855
    %5945 = vmatprep.subr.bf16.mxu0 0
    %5946 = vmatpush1.bf16.msra.mxu0 %v5856
    %5947 = vmatprep.subr.bf16.mxu0 0
    %5948 = vmatpush1.bf16.msra.mxu0 %v5857
    %5949 = vmatprep.subr.bf16.mxu0 0
    %5950 = vmatpush1.bf16.msra.mxu0 %v5858
    %5951 = vmatprep.subr.bf16.mxu0 0
    %5952 = vmatpush1.bf16.msra.mxu0 %v5859
    %5953 = vmatprep.subr.bf16.mxu0 0
    %5954 = vmatpush1.bf16.msra.mxu0 %v5860
    %5955 = vmatprep.subr.bf16.mxu0 0
    %5956 = vmatpush1.bf16.msra.mxu0 %v5861
    %5957 = vmatprep.subr.bf16.mxu0 0
    %5958 = vmatpush1.bf16.msra.mxu0 %v5862
    %5959 = vmatprep.subr.bf16.mxu0 0
    %5960 = vmatpush1.bf16.msra.mxu0 %v5863
    %5961 = vmatprep.subr.bf16.mxu0 0
    %5962 = vmatpush1.bf16.msra.mxu0 %v5864
    %5963 = vmatprep.subr.bf16.mxu0 0
    %5964 = vmatpush1.bf16.msra.mxu0 %v5865
    %5965 = vmatprep.subr.bf16.mxu0 0
    %5966 = vmatpush1.bf16.msra.mxu0 %v5866
    %5967 = vmatprep.subr.bf16.mxu0 0
    %5968 = vmatpush1.bf16.msra.mxu0 %v5867
    %5969 = vmatprep.subr.bf16.mxu0 0
    %5970 = vmatpush1.bf16.msra.mxu0 %v5868
    %5971 = vmatprep.subr.bf16.mxu0 0
    %5972 = vmatpush1.bf16.msra.mxu0 %v5869
    %5973 = vmatprep.subr.bf16.mxu0 0
    %5974 = vmatpush1.bf16.msra.mxu0 %v5870
    %5975 = vmatprep.mubr.bf16.mxu0 %v5639
    %5976 = vmatmul.mubr.bf16.gmra.mrb[0].mxu0 %v5638
    %v5977 = vpop.f32.mrb[0].mxu0
    %v5978 = vadd.f32 %v5938, %v5977
    %v5979 = vpop.f32.mrb[0].mxu0
    %v5980 = vpop.f32.mrb[0].mxu0
    %v5981 = vpop.f32.mrb[0].mxu0
    %5982 = vdwg.mxu0
    %v5983 = vpack.c.bf16 %v5978, %v5978
    %5984 = vst [vmem:[%s7] sm:$0xf] %v5983
    // Predicated region
    $region54: #{neural_network_forward.1} parent=1 // pred_check
      _
    $region55: #{neural_network_forward.1} parent=1 // pred_check_branch
      %5986 = sbr.rel (0) target = $region57
    $region56: #{neural_network_forward.1} parent=1 // pred_region
      _
    $region57: #{neural_network_forward.1} parent=1 // pred_fallthru
      _
    // Predicated region
    $region58: #{neural_network_forward.1} parent=1 // pred_check
      _
    $region59: #{neural_network_forward.1} parent=1 // pred_check_branch
      %5988 = sbr.rel (0) target = $region61
    $region60: #{neural_network_forward.1} parent=1 // pred_region
      _
    $region61: #{neural_network_forward.1} parent=1 // pred_fallthru
      _
    %5989 = vsyncpa [#allocation3], 1
    %5990 = vsyncpa [#allocation5], 1
    %5991 = vsyncpa [#allocation8], 1
    %5992 = vsyncpa [#allocation11], 1

</llo_original>
